<compile_context>
chip_gen: v7x
topology: tpu7x:2x2x1
jax: 0.10.0
libtpu: 0.0.40
codegen_flags: <defaults>
</compile_context>

<pallas_src>
import functools

import jax
import jax.numpy as jnp
from jax import lax
from jax.experimental import pallas as pl
from jax.experimental.pallas import tpu as pltpu


def _round_up(x, m):
    return -(-x // m) * m


def _gat_kernel(h_ref, w_ref, out_ref, attn_ref, *, Bt, A, D, H, F,
                off_l, off_r, L_pad, is_concat, use_masking, neg_slope):
    """Processes Bt (sample, process) slices of GAT attention.

    h_ref   : (Bt, A, D)       input features for A agents, Bt slices
    w_ref   : (D, Wcols)       fused weights [w_r | wl.a_l | wr.a_r] (lane padded)
    out_ref : (A, Bt, F_out)   attended features, already in final layout
    attn_ref: (Bt, L_pad)      attention coeffs, (i, j, h)-flattened + lane pad
    """
    HF = H * F
    G = Bt * H

    # --- one fused projection matmul on the MXU (f32 accumulation) -----------
    # NOTE: the reshapes/transposes below are layout-free only when A is a
    # multiple of 8 and F a multiple of 128 (true for the intended configs);
    # otherwise they become in-VMEM relayout copies (correct, just slower).
    x = h_ref[...].reshape(Bt * A, D)
    y = jnp.dot(x, w_ref[...], preferred_element_type=jnp.float32)  # (Bt*A, Wcols)

    # --- attention logits: 128-lane aligned slices, head-major ----------------
    s_l = y[:, off_l:off_l + H].reshape(Bt, A, H)            # a_l . g_l[b, j, h]
    s_r = y[:, off_r:off_r + H].reshape(Bt, A, H)            # a_r . g_r[b, i, h]
    s_l = jnp.transpose(s_l, (0, 2, 1)).reshape(G, A)        # (G, A_j), g = b*H + h
    s_r = jnp.transpose(s_r, (0, 2, 1)).reshape(G, A)        # (G, A_i)

    e = s_l[:, None, :] + s_r[:, :, None]                    # (G, A_i, A_j)
    e = jnp.where(e >= 0.0, e, neg_slope * e)                # LeakyReLU

    if use_masking:
        row = lax.broadcasted_iota(jnp.int32, (A, A), 0)
        col = lax.broadcasted_iota(jnp.int32, (A, A), 1)
        e = jnp.where((row == col)[None, :, :], -jnp.inf, e)

    # --- numerically stable softmax over j (lane axis); exact divide ----------
    m = jnp.max(e, axis=-1, keepdims=True)
    p = jnp.exp(e - m)
    a = p / jnp.sum(p, axis=-1, keepdims=True)               # (G, A_i, A_j)

    # --- head-major values g_r[g, j, f]: one reshape + one transpose ----------
    g_r = y[:, :HF].reshape(Bt, A, H, F)
    g_r = jnp.transpose(g_r, (0, 2, 1, 3)).reshape(G, A, F)  # (G, A_j, F)

    # --- aggregation: batched MXU matmul over g = (b, h) ----------------------
    # With tiny A this matmul is pad-dominated; it is amortized by the large Bt
    # chosen in the wrapper (a VPU weighted-sum is an alternative for A <= 16,
    # to be decided by a bundle dump on real shapes).
    res = lax.dot_general(a, g_r,
                          dimension_numbers=(((2,), (1,)), ((0,), (0,))),
                          preferred_element_type=jnp.float32)  # (G, A_i, F)
    res = jnp.transpose(res, (1, 0, 2)).reshape(A, Bt, H, F)   # final-layout order

    if is_concat:
        out = res.reshape(A, Bt, H * F)                        # free reshape
    else:
        out = jnp.mean(res, axis=2)                            # (A, Bt, F)
    out_ref[...] = out.astype(out_ref.dtype)

    # --- attention coeffs in final (b, i, j, h) order, lane-dense flat --------
    a_out = jnp.transpose(a.reshape(Bt, H, A * A), (0, 2, 1)).reshape(Bt, A * A * H)
    pad = L_pad - A * A * H
    if pad:
        a_out = jnp.concatenate(
            [a_out, jnp.zeros((Bt, pad), dtype=a_out.dtype)], axis=-1)
    attn_ref[...] = a_out.astype(attn_ref.dtype)


def _choose_bt(B, A, row_target=512):
    """Pick (Bt, Bp): slices per grid step and the (possibly padded) batch.

    Single-TC chips (v5e/v6e) want one fat step when the batch is small; large
    batches are tiled at ~row_target MXU rows per step with Bt a multiple of 8
    sublanes.  If B has no suitable divisor we pad the batch (padded slices are
    computed on zeros and sliced off in the wrapper) rather than ever degrading
    to Bt=1.  On v7x (two TensorCores sharing the "parallel" grid axis) the
    step count is >= 2 whenever B > Bt.
    """
    bt_cap = max(8, _round_up(pl.cdiv(row_target, max(A, 1)), 8))
    if B <= bt_cap:
        return B, B                        # one grid step; Bt == full batch dim
    divs = [d for d in range(8, bt_cap + 1, 8) if B % d == 0]
    if divs and 2 * max(divs) >= bt_cap:
        return max(divs), B                # near-target divisor, no padding
    return bt_cap, _round_up(B, bt_cap)    # pad batch to a whole number of steps


def _vmem_bytes_estimate(Bt, A, D, H, F, Wcols, F_out, L_pad, itemsize):
    """Rough per-step VMEM footprint including (8,128) tile padding."""
    def tile(shape, isz):
        s = list(shape)
        s[-1] = _round_up(s[-1], 128)
        if len(s) >= 2:
            s[-2] = _round_up(s[-2], 8)
        n = 1
        for d in s:
            n *= d
        return n * isz
    G = Bt * H
    buf = 0
    buf += 2 * tile((Bt, A, D), itemsize)        # h block (double-buffered)
    buf += 2 * tile((D, Wcols), itemsize)        # fused weights (double-buffered)
    buf += 2 * tile((A, Bt, F_out), itemsize)    # out block
    buf += 2 * tile((Bt, L_pad), itemsize)       # attn block
    buf += tile((Bt * A, Wcols), 4)              # y
    buf += tile((G, A, F), 4)                    # head-major g_r copy
    buf += 3 * tile((G, A, A), 4)                # e / p / a
    buf += 2 * tile((G, A, F), 4)                # aggregation result + relayout
    return buf


def gat_forward(h, w_l, w_r, w_attn, *, n_heads, n_hidden, is_concat,
                use_masking, neg_slope=0.2):
    """Pallas implementation of GATNetwork.forward.

    h      : (agents, samples, process, in_features)
    w_l    : (in_features, n_heads*n_hidden)   (linear_l.weight.T)
    w_r    : (in_features, n_heads*n_hidden)   (linear_r.weight.T)
    w_attn : (1, 2*n_hidden)                   (attn.weight)
    returns (attn_res, a) matching the PyTorch module:
      attn_res : (agents, samples, process, out_dim)
      a        : (samples, process, agents, agents, n_heads) (squeezed if n_heads==1)
    """
    A, S, P, D = h.shape
    H, F = n_heads, n_hidden
    HF = H * F
    B = S * P
    F_out = HF if is_concat else F

    # h.permute(1, 2, 0, 3), flatten (samples, process) -> batch axis.
    hp = jnp.transpose(h, (1, 2, 0, 3)).reshape(B, A, D)

    # Fold the attention vector into the projection weights (exact linear
    # identity): (x @ w_l).reshape(A,H,F) . a_l  ==  x @ wl_al.
    a_l = w_attn[0, :F]
    a_r = w_attn[0, F:]
    wl_al = jnp.sum(w_l.reshape(D, H, F) * a_l[None, None, :], axis=-1)   # (D, H)
    wr_ar = jnp.sum(w_r.reshape(D, H, F) * a_r[None, None, :], axis=-1)   # (D, H)

    # Fused weight with the two logit column groups on 128-lane boundaries so
    # their in-kernel slices are tile aligned (no masked lane extraction).
    off_l = _round_up(HF, 128)
    off_r = off_l + 128
    Wcols = off_r + 128
    w_all = jnp.zeros((D, Wcols), dtype=w_r.dtype)
    w_all = w_all.at[:, :HF].set(w_r)
    w_all = w_all.at[:, off_l:off_l + H].set(wl_al)
    w_all = w_all.at[:, off_r:off_r + H].set(wr_ar)

    Bt, Bp = _choose_bt(B, A)
    if Bp != B:
        hp = jnp.pad(hp, ((0, Bp - B), (0, 0), (0, 0)))
    grid = (Bp // Bt,)

    L = A * A * H
    L_pad = _round_up(L, 128)
    attn_dtype = h.dtype            # follow input dtype (halves bf16 writeback)

    kernel = functools.partial(
        _gat_kernel, Bt=Bt, A=A, D=D, H=H, F=F, off_l=off_l, off_r=off_r,
        L_pad=L_pad, is_concat=is_concat, use_masking=use_masking,
        neg_slope=neg_slope)

    itemsize = jnp.dtype(h.dtype).itemsize
    cost = pl.CostEstimate(
        flops=2 * Bp * A * D * Wcols + 2 * Bp * H * A * A * F,
        transcendentals=Bp * H * A * A,
        bytes_accessed=(Bp * A * D * itemsize
                        + D * Wcols * w_all.dtype.itemsize
                        + A * Bp * F_out * itemsize
                        + Bp * L_pad * jnp.dtype(attn_dtype).itemsize),
    )

    vmem_est = _vmem_bytes_estimate(Bt, A, D, H, F, Wcols, F_out, L_pad, itemsize)
    # Leave 2x headroom over the static estimate; clamp to v7x's 64 MiB part so
    # the same request is valid on every generation (v5e/v6e have 128 MiB).
    vmem_limit = int(min(64 * 1024 * 1024, max(32 * 1024 * 1024, 2 * vmem_est)))

    out_ab, attn_flat = pl.pallas_call(
        kernel,
        out_shape=(
            jax.ShapeDtypeStruct((A, Bp, F_out), h.dtype),
            jax.ShapeDtypeStruct((Bp, L_pad), attn_dtype),
        ),
        grid_spec=pltpu.PrefetchScalarGridSpec(
            num_scalar_prefetch=0,
            grid=grid,
            in_specs=[
                pl.BlockSpec((Bt, A, D), lambda b: (b, 0, 0)),
                # Weight tile is re-fetched with index (0, 0) every step; it is
                # tiny at these shapes, so default double-buffering is kept
                # (single-buffering it would save negligible VMEM here).
                pl.BlockSpec((D, Wcols), lambda b: (0, 0)),
            ],
            out_specs=[
                pl.BlockSpec((A, Bt, F_out), lambda b: (0, b, 0)),
                pl.BlockSpec((Bt, L_pad), lambda b: (b, 0)),
            ],
        ),
        compiler_params=pltpu.CompilerParams(
            dimension_semantics=("parallel",),
            vmem_limit_bytes=vmem_limit,
        ),
        cost_estimate=cost,
    )(hp, w_all)

    # Outputs are already in their final layouts: only free reshapes (plus a
    # slice when batch / lane padding was applied) remain on the wrapper side.
    if Bp != B:
        out_ab = out_ab[:, :B]
        attn_flat = attn_flat[:B]
    if L_pad != L:
        attn_flat = attn_flat[:, :L]
    out = out_ab.reshape(A, S, P, F_out)                   # (A, S, P, F_out)
    attn = attn_flat.reshape(S, P, A, A, H)                # (S, P, A, A, H)
    if H == 1:                                             # mimic torch .squeeze(-1)
        attn = jnp.squeeze(attn, axis=-1)
    return out, attn


def gat_reference(h, w_l, w_r, w_attn, *, n_heads, n_hidden, is_concat,
                  use_masking, neg_slope=0.2):
    """Pure-JAX reference mirroring the PyTorch forward exactly."""
    A, S, P, D = h.shape
    H, F = n_heads, n_hidden
    hp = jnp.transpose(h, (1, 2, 0, 3))                    # (S, P, A, D)
    g_l = (hp @ w_l).reshape(S, P, A, H, F)
    g_r = (hp @ w_r).reshape(S, P, A, H, F)
    a_l = w_attn[0, :F]
    a_r = w_attn[0, F:]
    s_l = jnp.einsum('spjhf,f->spjh', g_l, a_l)
    s_r = jnp.einsum('spihf,f->spih', g_r, a_r)
    e = s_l[:, :, None, :, :] + s_r[:, :, :, None, :]      # (S, P, i, j, H)
    e = jnp.where(e >= 0.0, e, neg_slope * e)
    if use_masking:
        eye = jnp.eye(A, dtype=bool)[None, None, :, :, None]
        e = jnp.where(eye, -jnp.inf, e)
    a = jax.nn.softmax(e, axis=3)
    attn_res = jnp.einsum('spijh,spjhf->spihf', a, g_r)
    if is_concat:
        out = attn_res.reshape(S, P, A, H * F)
    else:
        out = attn_res.mean(axis=3)
    out = jnp.transpose(out, (2, 0, 1, 3))
    if H == 1:
        a = jnp.squeeze(a, axis=-1)
    return out, a


if __name__ == "__main__":
    # Small, deterministic configuration consistent with the module:
    #   in_features=32, out_features=128, n_heads=4, is_concat=False -> n_hidden=128
    #   use_masking=True, share_weights=False
    agents, samples, process, in_features = 8, 2, 2, 32
    out_features, n_heads = 128, 4
    is_concat = False
    n_hidden = out_features // n_heads if is_concat else out_features
    use_masking = True
    neg_slope = 0.2

    key = jax.random.PRNGKey(0)
    k_h, k_wl, k_wr, k_wa = jax.random.split(key, 4)

    h = jax.random.normal(k_h, (agents, samples, process, in_features), dtype=jnp.float32)
    # nn.Linear(in_features, n_hidden*n_heads, bias=False).weight is (out, in);
    # initialize deterministically and pass the transpose (in, out) to the kernel.
    bound_l = 1.0 / (in_features ** 0.5)
    w_l = jax.random.uniform(k_wl, (in_features, n_hidden * n_heads),
                             minval=-bound_l, maxval=bound_l, dtype=jnp.float32)
    w_r = jax.random.uniform(k_wr, (in_features, n_hidden * n_heads),
                             minval=-bound_l, maxval=bound_l, dtype=jnp.float32)
    bound_a = 1.0 / ((2 * n_hidden) ** 0.5)
    w_attn = jax.random.uniform(k_wa, (1, 2 * n_hidden),
                                minval=-bound_a, maxval=bound_a, dtype=jnp.float32)

    out, attn = gat_forward(h, w_l, w_r, w_attn,
                            n_heads=n_heads, n_hidden=n_hidden,
                            is_concat=is_concat, use_masking=use_masking,
                            neg_slope=neg_slope)
    out = jax.block_until_ready(out)
    attn = jax.block_until_ready(attn)

    out_ref, attn_ref = gat_reference(h, w_l, w_r, w_attn,
                                      n_heads=n_heads, n_hidden=n_hidden,
                                      is_concat=is_concat, use_masking=use_masking,
                                      neg_slope=neg_slope)

    assert out.shape == (agents, samples, process, n_hidden), out.shape
    assert attn.shape == (samples, process, agents, agents, n_heads), attn.shape
    # The softmax now uses an exact divide (no approximate reciprocal); the
    # remaining divergence from the reference comes from default-precision TPU
    # matmul rounding applied to the algebraically folded weights vs. the
    # reference's two-step projection (mathematically identical expressions).
    assert jnp.allclose(out, out_ref, rtol=2e-3, atol=2e-3), "attn_res mismatch"
    assert jnp.allclose(attn, attn_ref, rtol=2e-3, atol=2e-3), "attention coeff mismatch"

    print("KERNEL_OK")
</pallas_src>

<mosaic_0001>
module attributes {stable_mosaic.version = 11 : i64} {
  func.func @_gat_kernel(%arg0: i32, %arg1: memref<4x8x32xf32, #tpu.memory_space<vmem>>, %arg2: memref<32x768xf32, #tpu.memory_space<vmem>>, %arg3: memref<8x4x128xf32, #tpu.memory_space<vmem>>, %arg4: memref<4x256xf32, #tpu.memory_space<vmem>>) attributes {dimension_semantics = [#tpu.dimension_semantics<parallel>], iteration_bounds = array<i64: 1>, scalar_prefetch = 0 : i64, scratch_operands = 0 : i64, tpu.core_type = #tpu.core_type<tc>, window_params = [{transform_indices = @transform_0, window_bounds = array<i64: 4, 8, 32>}, {pipeline_mode = #tpu.pipeline_mode<synchronous>, transform_indices = @transform_1, window_bounds = array<i64: 32, 768>}, {transform_indices = @transform_2, window_bounds = array<i64: 8, 4, 128>}, {transform_indices = @transform_3, window_bounds = array<i64: 4, 256>}]} {
    %c0 = arith.constant 0 : index
    %c0_0 = arith.constant 0 : index
    %c0_1 = arith.constant 0 : index
    %0 = vector.load %arg1[%c0, %c0_0, %c0_1] : memref<4x8x32xf32, #tpu.memory_space<vmem>>, vector<4x8x32xf32>
    %1 = vector.shape_cast %0 : vector<4x8x32xf32> to vector<32x32xf32>
    %c0_2 = arith.constant 0 : index
    %c0_3 = arith.constant 0 : index
    %2 = vector.load %arg2[%c0_2, %c0_3] : memref<32x768xf32, #tpu.memory_space<vmem>>, vector<32x768xf32>
    %cst = arith.constant dense<0.000000e+00> : vector<32x768xf32>
    %3 = tpu.matmul %1, %2, %cst {dimension_numbers = #tpu.dot_dimension_numbers<[1], [0], [0], [1], [0, 0, 1, 1], [], []>} : vector<32x32xf32>, vector<32x768xf32>, vector<32x768xf32> -> vector<32x768xf32>
    %4 = vector.extract_strided_slice %3 {offsets = [0, 512], sizes = [32, 4], strides = [1, 1]} : vector<32x768xf32> to vector<32x4xf32>
    %5 = vector.shape_cast %4 : vector<32x4xf32> to vector<4x8x4xf32>
    %6 = vector.extract_strided_slice %3 {offsets = [0, 640], sizes = [32, 4], strides = [1, 1]} : vector<32x768xf32> to vector<32x4xf32>
    %7 = vector.shape_cast %6 : vector<32x4xf32> to vector<4x8x4xf32>
    %8 = tpu.transpose %5, [0, 2, 1] : vector<4x8x4xf32> -> vector<4x4x8xf32>
    %9 = vector.shape_cast %8 : vector<4x4x8xf32> to vector<16x8xf32>
    %10 = tpu.transpose %7, [0, 2, 1] : vector<4x8x4xf32> -> vector<4x4x8xf32>
    %11 = vector.shape_cast %10 : vector<4x4x8xf32> to vector<16x8xf32>
    %12 = vector.shape_cast %9 : vector<16x8xf32> to vector<16x1x8xf32>
    %13 = vector.shape_cast %11 : vector<16x8xf32> to vector<16x8x1xf32>
    %14 = vector.broadcast %12 : vector<16x1x8xf32> to vector<16x8x8xf32>
    %15 = vector.broadcast %13 : vector<16x8x1xf32> to vector<16x8x8xf32>
    %16 = arith.addf %14, %15 : vector<16x8x8xf32>
    %cst_4 = arith.constant 0.000000e+00 : f32
    %17 = vector.broadcast %cst_4 : f32 to vector<16x8x8xf32>
    %18 = arith.cmpf oge, %16, %17 : vector<16x8x8xf32>
    %cst_5 = arith.constant 2.000000e-01 : f32
    %19 = vector.broadcast %cst_5 : f32 to vector<16x8x8xf32>
    %20 = arith.mulf %19, %16 : vector<16x8x8xf32>
    %21 = arith.select %18, %16, %20 : vector<16x8x8xi1>, vector<16x8x8xf32>
    %22 = tpu.iota {dimensions = array<i32: 0>} : vector<8x8xi32>
    %23 = tpu.iota {dimensions = array<i32: 1>} : vector<8x8xi32>
    %24 = arith.cmpi eq, %22, %23 : vector<8x8xi32>
    %25 = vector.shape_cast %24 : vector<8x8xi1> to vector<1x8x8xi1>
    %cst_6 = arith.constant 0xFF800000 : f32
    %26 = vector.shape_cast %25 : vector<1x8x8xi1> to vector<1x8x8xi1>
    %27 = vector.broadcast %26 : vector<1x8x8xi1> to vector<16x8x8xi1>
    %28 = vector.broadcast %cst_6 : f32 to vector<16x8x8xf32>
    %29 = arith.select %27, %28, %21 : vector<16x8x8xi1>, vector<16x8x8xf32>
    %cst_7 = arith.constant dense<0xFF800000> : vector<16x8xf32>
    %30 = vector.multi_reduction <maximumf>, %29, %cst_7 [2] : vector<16x8x8xf32> to vector<16x8xf32>
    %31 = vector.shape_cast %30 : vector<16x8xf32> to vector<16x8x1xf32>
    %32 = vector.broadcast %31 : vector<16x8x1xf32> to vector<16x8x8xf32>
    %33 = arith.subf %29, %32 : vector<16x8x8xf32>
    %34 = math.exp %33 : vector<16x8x8xf32>
    %cst_8 = arith.constant dense<0.000000e+00> : vector<16x8xf32>
    %35 = vector.multi_reduction <add>, %34, %cst_8 [2] : vector<16x8x8xf32> to vector<16x8xf32>
    %36 = vector.shape_cast %35 : vector<16x8xf32> to vector<16x8x1xf32>
    %37 = vector.broadcast %36 : vector<16x8x1xf32> to vector<16x8x8xf32>
    %38 = arith.divf %34, %37 : vector<16x8x8xf32>
    %39 = vector.extract_strided_slice %3 {offsets = [0, 0], sizes = [32, 512], strides = [1, 1]} : vector<32x768xf32> to vector<32x512xf32>
    %40 = vector.shape_cast %39 : vector<32x512xf32> to vector<4x8x4x128xf32>
    %41 = tpu.transpose %40, [0, 2, 1, 3] : vector<4x8x4x128xf32> -> vector<4x4x8x128xf32>
    %42 = vector.shape_cast %41 : vector<4x4x8x128xf32> to vector<16x8x128xf32>
    %cst_9 = arith.constant dense<0.000000e+00> : vector<16x8x128xf32>
    %43 = tpu.matmul %38, %42, %cst_9 {dimension_numbers = #tpu.dot_dimension_numbers<[2], [1], [1], [2], [0, 0, 0, 1, 1, 2], [0], [0]>} : vector<16x8x8xf32>, vector<16x8x128xf32>, vector<16x8x128xf32> -> vector<16x8x128xf32>
    %44 = tpu.transpose %43, [1, 0, 2] : vector<16x8x128xf32> -> vector<8x16x128xf32>
    %45 = vector.shape_cast %44 : vector<8x16x128xf32> to vector<8x4x4x128xf32>
    %cst_10 = arith.constant dense<0.000000e+00> : vector<8x4x128xf32>
    %46 = vector.multi_reduction <add>, %45, %cst_10 [2] : vector<8x4x4x128xf32> to vector<8x4x128xf32>
    %cst_11 = arith.constant 4.000000e+00 : f32
    %47 = vector.broadcast %cst_11 : f32 to vector<8x4x128xf32>
    %48 = arith.divf %46, %47 : vector<8x4x128xf32>
    %c0_12 = arith.constant 0 : index
    %c0_13 = arith.constant 0 : index
    %c0_14 = arith.constant 0 : index
    %49 = vector.load %arg3[%c0_12, %c0_13, %c0_14] : memref<8x4x128xf32, #tpu.memory_space<vmem>>, vector<8x4x128xf32>
    tpu.vector_store %arg3[%c0_12, %c0_13, %c0_14], %48 {strides = array<i32>} : memref<8x4x128xf32, #tpu.memory_space<vmem>>, vector<8x4x128xf32>,
    %50 = vector.shape_cast %38 : vector<16x8x8xf32> to vector<4x4x64xf32>
    %51 = tpu.transpose %50, [0, 2, 1] : vector<4x4x64xf32> -> vector<4x64x4xf32>
    %52 = vector.shape_cast %51 : vector<4x64x4xf32> to vector<4x256xf32>
    %c0_15 = arith.constant 0 : index
    %c0_16 = arith.constant 0 : index
    %53 = vector.load %arg4[%c0_15, %c0_16] : memref<4x256xf32, #tpu.memory_space<vmem>>, vector<4x256xf32>
    tpu.vector_store %arg4[%c0_15, %c0_16], %52 {strides = array<i32>} : memref<4x256xf32, #tpu.memory_space<vmem>>, vector<4x256xf32>,
    return
  }
  func.func @transform_0(%arg0: i32) -> (i32, i32, i32) {
    %c0_i32 = arith.constant 0 : i32
    %c0_i32_0 = arith.constant 0 : i32
    %c0_i32_1 = arith.constant 0 : i32
    return %arg0, %c0_i32, %c0_i32_0 : i32, i32, i32
  }
  func.func @transform_1(%arg0: i32) -> (i32, i32) {
    %c0_i32 = arith.constant 0 : i32
    %c0_i32_0 = arith.constant 0 : i32
    %c0_i32_1 = arith.constant 0 : i32
    return %c0_i32, %c0_i32_0 : i32, i32
  }
  func.func @transform_2(%arg0: i32) -> (i32, i32, i32) {
    %c0_i32 = arith.constant 0 : i32
    %c0_i32_0 = arith.constant 0 : i32
    %c0_i32_1 = arith.constant 0 : i32
    return %c0_i32, %arg0, %c0_i32_0 : i32, i32, i32
  }
  func.func @transform_3(%arg0: i32) -> (i32, i32) {
    %c0_i32 = arith.constant 0 : i32
    %c0_i32_0 = arith.constant 0 : i32
    return %arg0, %c0_i32 : i32, i32
  }
}

</mosaic_0001>

<llo_original>
// kernel: tpu_custom_call.1
$region0: #{tpu_custom_call.1}
  #allocation0 [shape = 'u32[]', space=smem, size = 0x4, offset = 0x4, fixed_abs, tag = 'smem constant byte address 0x4 - core index']
  #allocation1 [shape = 'u32[144,128]{1,0:T(1,128)}', space=vmem, size = 0x12000, scoped, tag = 'internal scratch']
  %s0 = inlined_call_operand.hbm [shape: f32[4,8,32], index: 0, kind: input, shape index: {}]
  %s1 = inlined_call_operand.hbm [shape: f32[32,768], index: 1, kind: input, shape index: {}]
  %s2 = inlined_call_operand.hbm [shape: f32[8,4,128], index: 2, kind: output, shape index: {0}]
  %s3 = inlined_call_operand.hbm [shape: f32[4,256], index: 3, kind: output, shape index: {1}]
  %4 = xla_tuple %s2, %s3
  %s5 = sld [smem:[#allocation0]]
  $region34: #{tpu_custom_call.1} parent=0
    _
  %s7 = ssub.s32 1, %s5
  %s8 = scalar_select 0, %s7, %s5
  $region1: #{tpu_custom_call.1} parent=0
    #allocation2 [shape = 'u8[16384]{0}', space=vmem, size = 0x4000, scoped, tag = 'input window, operand 0, single buffered']
    #allocation3 [shape = 's32[1]{0}', space=sflag, size = 0x4, scoped, tag = 'scoped memory for tpu_custom_call.1']
    #allocation4 [shape = 's32[1]{0}', space=sflag, size = 0x4, scoped, tag = 'scoped memory for tpu_custom_call.1']
    #allocation5 [shape = 'u8[98304]{0}', space=vmem, size = 0x18000, scoped, tag = 'input window, operand 1, single buffered']
    #allocation6 [shape = 's32[1]{0}', space=sflag, size = 0x4, scoped, tag = 'scoped memory for tpu_custom_call.1']
    #allocation7 [shape = 'u8[16384]{0}', space=vmem, size = 0x4000, scoped, tag = 'output window, operand 0, single buffered']
    #allocation8 [shape = 'u8[4096]{0}', space=vmem, size = 0x1000, scoped, tag = 'output window, operand 1, single buffered']
    #allocation9 [shape = 's32[1]{0}', space=sflag, size = 0x4, scoped, tag = 'scoped memory for tpu_custom_call.1']
    %9 = vsyncpa [#allocation3], 0
    %10 = vsyncpa [#allocation6], 0
    %11 = vsyncpa [#allocation4], 0
    %12 = vsyncpa [#allocation9], 0
    // Predicated region
    $region2: #{tpu_custom_call.1} parent=1 // pred_check
      _
    $region3: #{tpu_custom_call.1} parent=1 // pred_check_branch
      %14 = sbr.rel (0) target = $region5
    $region4: #{tpu_custom_call.1} parent=1 // pred_region
      %s16 = ssub.s32 512, 512
      %17 = vsyncadd [#allocation3], %s16
      %s18 = sshll.u32 [#allocation2], 4
      %s19 = int_to_ptr.vmem [resolvable:$true] %s18
      %24 = dma.hbm_to_vmem [thread:$0]  %s0, 512, %s19, [#allocation3], 128, 128, 8
    $region5: #{tpu_custom_call.1} parent=1 // pred_fallthru
      _
    // Predicated region
    $region6: #{tpu_custom_call.1} parent=1 // pred_check
      _
    $region7: #{tpu_custom_call.1} parent=1 // pred_check_branch
      %26 = sbr.rel (0) target = $region9
    $region8: #{tpu_custom_call.1} parent=1 // pred_region
      %s28 = ssub.s32 3072, 3072
      %29 = vsyncadd [#allocation6], %s28
      %s30 = sshll.u32 [#allocation5], 4
      %s31 = int_to_ptr.vmem [resolvable:$true] %s30
      %36 = dma.hbm_to_vmem [thread:$0]  %s1, 3072, %s31, [#allocation6], 768, 768, 48
    $region9: #{tpu_custom_call.1} parent=1 // pred_fallthru
      _
    // Predicated region
    $region10: #{tpu_custom_call.1} parent=1 // pred_check
      _
    $region11: #{tpu_custom_call.1} parent=1 // pred_check_branch
      %38 = sbr.rel (0) target = $region13
    $region12: #{tpu_custom_call.1} parent=1 // pred_region
      %39 = dma.done [#allocation3], 512
    $region13: #{tpu_custom_call.1} parent=1 // pred_fallthru
      _
    // Predicated region
    $region14: #{tpu_custom_call.1} parent=1 // pred_check
      _
    $region15: #{tpu_custom_call.1} parent=1 // pred_check_branch
      %41 = sbr.rel (0) target = $region17
    $region16: #{tpu_custom_call.1} parent=1 // pred_region
      %42 = dma.done [#allocation6], 3072
    $region17: #{tpu_custom_call.1} parent=1 // pred_fallthru
      _
    %v43 = vld [vmem:[#allocation2] sm:$0xff]
    %v44 = vld [vmem:[#allocation2 + $0x8] sm:$0xff]
    %v45 = vld [vmem:[#allocation2 + $0x10] sm:$0xff]
    %v46 = vld [vmem:[#allocation2 + $0x18] sm:$0xff]
    %v47 = vld [vmem:[#allocation5] sm:$0xff]
    %v48 = vld [vmem:[#allocation5 + $0x8] sm:$0xff]
    %v49 = vld [vmem:[#allocation5 + $0x10] sm:$0xff]
    %v50 = vld [vmem:[#allocation5 + $0x18] sm:$0xff]
    %v51 = vld [vmem:[#allocation5 + $0x20] sm:$0xff]
    %v52 = vld [vmem:[#allocation5 + $0x28] sm:$0xff]
    %v53 = vld [vmem:[#allocation5 + $0x30] sm:$0xff]
    %v54 = vld [vmem:[#allocation5 + $0x38] sm:$0xff]
    %v55 = vld [vmem:[#allocation5 + $0x40] sm:$0xff]
    %v56 = vld [vmem:[#allocation5 + $0x48] sm:$0xff]
    %v57 = vld [vmem:[#allocation5 + $0x50] sm:$0xff]
    %v58 = vld [vmem:[#allocation5 + $0x58] sm:$0xff]
    %v59 = vld [vmem:[#allocation5 + $0x60] sm:$0xff]
    %v60 = vld [vmem:[#allocation5 + $0x68] sm:$0xff]
    %v61 = vld [vmem:[#allocation5 + $0x70] sm:$0xff]
    %v62 = vld [vmem:[#allocation5 + $0x78] sm:$0xff]
    %v63 = vld [vmem:[#allocation5 + $0x80] sm:$0xff]
    %v64 = vld [vmem:[#allocation5 + $0x88] sm:$0xff]
    %v65 = vld [vmem:[#allocation5 + $0x90] sm:$0xff]
    %v66 = vld [vmem:[#allocation5 + $0x98] sm:$0xff]
    %v67 = vld [vmem:[#allocation5 + $0xa0] sm:$0xff]
    %v68 = vld [vmem:[#allocation5 + $0xa8] sm:$0xff]
    %v69 = vld [vmem:[#allocation5 + $0xb0] sm:$0xff]
    %v70 = vld [vmem:[#allocation5 + $0xb8] sm:$0xff]
    %vm71 = vcmask 261120
    %v73 = vsel %vm71, %v43, 0
    %v76 = vsel %vm71, %v44, 0
    %v79 = vsel %vm71, %v45, 0
    %v82 = vsel %vm71, %v46, 0
    %84 = vmatprep.subr.mxu0 %v48
    %85 = vmatpush1.msra.mxu0 %v47
    %86 = vmatprep.subr.mxu0 %v54
    %87 = vmatpush1.msra.mxu0 %v53
    %88 = vmatprep.subr.mxu0 %v60
    %89 = vmatpush1.msra.mxu0 %v59
    %90 = vmatprep.subr.mxu0 %v66
    %91 = vmatpush1.msra.mxu0 %v65
    %92 = vmatprep.subr.mxu0 0.0
    %93 = vmatpush1.msra.mxu0 0.0
    %94 = vmatprep.subr.mxu0 0.0
    %95 = vmatpush1.msra.mxu0 0.0
    %96 = vmatprep.subr.mxu0 0.0
    %97 = vmatpush1.msra.mxu0 0.0
    %98 = vmatprep.subr.mxu0 0.0
    %99 = vmatpush1.msra.mxu0 0.0
    %100 = vmatprep.subr.mxu0 0.0
    %101 = vmatpush1.msra.mxu0 0.0
    %102 = vmatprep.subr.mxu0 0.0
    %103 = vmatpush1.msra.mxu0 0.0
    %104 = vmatprep.subr.mxu0 0.0
    %105 = vmatpush1.msra.mxu0 0.0
    %106 = vmatprep.subr.mxu0 0.0
    %107 = vmatpush1.msra.mxu0 0.0
    %108 = vmatprep.subr.mxu0 0.0
    %109 = vmatpush1.msra.mxu0 0.0
    %110 = vmatprep.subr.mxu0 0.0
    %111 = vmatpush1.msra.mxu0 0.0
    %112 = vmatprep.subr.mxu0 0.0
    %113 = vmatpush1.msra.mxu0 0.0
    %114 = vmatprep.subr.mxu0 0.0
    %115 = vmatpush1.msra.mxu0 0.0
    %116 = vmatprep.subr.mxu0 0.0
    %117 = vmatpush1.msra.mxu0 0.0
    %118 = vmatprep.subr.mxu0 0.0
    %119 = vmatpush1.msra.mxu0 0.0
    %120 = vmatprep.subr.mxu0 0.0
    %121 = vmatpush1.msra.mxu0 0.0
    %122 = vmatprep.subr.mxu0 0.0
    %123 = vmatpush1.msra.mxu0 0.0
    %124 = vmatprep.subr.mxu0 0.0
    %125 = vmatpush1.msra.mxu0 0.0
    %126 = vmatprep.subr.mxu0 0.0
    %127 = vmatpush1.msra.mxu0 0.0
    %128 = vmatprep.subr.mxu0 0.0
    %129 = vmatpush1.msra.mxu0 0.0
    %130 = vmatprep.subr.mxu0 0.0
    %131 = vmatpush1.msra.mxu0 0.0
    %132 = vmatprep.subr.mxu0 0.0
    %133 = vmatpush1.msra.mxu0 0.0
    %134 = vmatprep.subr.mxu0 0.0
    %135 = vmatpush1.msra.mxu0 0.0
    %136 = vmatprep.subr.mxu0 0.0
    %137 = vmatpush1.msra.mxu0 0.0
    %138 = vmatprep.subr.mxu0 0.0
    %139 = vmatpush1.msra.mxu0 0.0
    %140 = vmatprep.subr.mxu0 0.0
    %141 = vmatpush1.msra.mxu0 0.0
    %142 = vmatprep.subr.mxu0 0.0
    %143 = vmatpush1.msra.mxu0 0.0
    %144 = vmatprep.subr.mxu0 0.0
    %145 = vmatpush1.msra.mxu0 0.0
    %146 = vmatprep.subr.mxu0 0.0
    %147 = vmatpush1.msra.mxu0 0.0
    %148 = vmatprep.mubr.f32.mxu0 0.0
    %149 = vmatmul.mubr.f32.gmra.mrb[0].mxu0 %v73
    %v150 = vpop.f32.mrb[0].mxu0
    %v151 = vadd.f32 0.0, %v150
    %v152 = vpop.f32.mrb[0].mxu0
    %v153 = vadd.f32 0.0, %v152
    %154 = vmatprep.mubr.f32.mxu0 0.0
    %155 = vmatmul.mubr.f32.gmra.mrb[0].mxu0 %v76
    %v156 = vpop.f32.mrb[0].mxu0
    %v157 = vadd.f32 0.0, %v156
    %v158 = vpop.f32.mrb[0].mxu0
    %v159 = vadd.f32 0.0, %v158
    %160 = vmatprep.mubr.f32.mxu0 0.0
    %161 = vmatmul.mubr.f32.gmra.mrb[0].mxu0 %v79
    %v162 = vpop.f32.mrb[0].mxu0
    %v163 = vadd.f32 0.0, %v162
    %v164 = vpop.f32.mrb[0].mxu0
    %v165 = vadd.f32 0.0, %v164
    %166 = vmatprep.mubr.f32.mxu0 0.0
    %167 = vmatmul.mubr.f32.gmra.mrb[0].mxu0 %v82
    %v168 = vpop.f32.mrb[0].mxu0
    %v169 = vadd.f32 0.0, %v168
    %v170 = vpop.f32.mrb[0].mxu0
    %v171 = vadd.f32 0.0, %v170
    %172 = vdwg.mxu0
    %173 = vmatprep.subr.mxu0 %v50
    %174 = vmatpush1.msra.mxu0 %v49
    %175 = vmatprep.subr.mxu0 %v56
    %176 = vmatpush1.msra.mxu0 %v55
    %177 = vmatprep.subr.mxu0 %v62
    %178 = vmatpush1.msra.mxu0 %v61
    %179 = vmatprep.subr.mxu0 %v68
    %180 = vmatpush1.msra.mxu0 %v67
    %181 = vmatprep.subr.mxu0 0.0
    %182 = vmatpush1.msra.mxu0 0.0
    %183 = vmatprep.subr.mxu0 0.0
    %184 = vmatpush1.msra.mxu0 0.0
    %185 = vmatprep.subr.mxu0 0.0
    %186 = vmatpush1.msra.mxu0 0.0
    %187 = vmatprep.subr.mxu0 0.0
    %188 = vmatpush1.msra.mxu0 0.0
    %189 = vmatprep.subr.mxu0 0.0
    %190 = vmatpush1.msra.mxu0 0.0
    %191 = vmatprep.subr.mxu0 0.0
    %192 = vmatpush1.msra.mxu0 0.0
    %193 = vmatprep.subr.mxu0 0.0
    %194 = vmatpush1.msra.mxu0 0.0
    %195 = vmatprep.subr.mxu0 0.0
    %196 = vmatpush1.msra.mxu0 0.0
    %197 = vmatprep.subr.mxu0 0.0
    %198 = vmatpush1.msra.mxu0 0.0
    %199 = vmatprep.subr.mxu0 0.0
    %200 = vmatpush1.msra.mxu0 0.0
    %201 = vmatprep.subr.mxu0 0.0
    %202 = vmatpush1.msra.mxu0 0.0
    %203 = vmatprep.subr.mxu0 0.0
    %204 = vmatpush1.msra.mxu0 0.0
    %205 = vmatprep.subr.mxu0 0.0
    %206 = vmatpush1.msra.mxu0 0.0
    %207 = vmatprep.subr.mxu0 0.0
    %208 = vmatpush1.msra.mxu0 0.0
    %209 = vmatprep.subr.mxu0 0.0
    %210 = vmatpush1.msra.mxu0 0.0
    %211 = vmatprep.subr.mxu0 0.0
    %212 = vmatpush1.msra.mxu0 0.0
    %213 = vmatprep.subr.mxu0 0.0
    %214 = vmatpush1.msra.mxu0 0.0
    %215 = vmatprep.subr.mxu0 0.0
    %216 = vmatpush1.msra.mxu0 0.0
    %217 = vmatprep.subr.mxu0 0.0
    %218 = vmatpush1.msra.mxu0 0.0
    %219 = vmatprep.subr.mxu0 0.0
    %220 = vmatpush1.msra.mxu0 0.0
    %221 = vmatprep.subr.mxu0 0.0
    %222 = vmatpush1.msra.mxu0 0.0
    %223 = vmatprep.subr.mxu0 0.0
    %224 = vmatpush1.msra.mxu0 0.0
    %225 = vmatprep.subr.mxu0 0.0
    %226 = vmatpush1.msra.mxu0 0.0
    %227 = vmatprep.subr.mxu0 0.0
    %228 = vmatpush1.msra.mxu0 0.0
    %229 = vmatprep.subr.mxu0 0.0
    %230 = vmatpush1.msra.mxu0 0.0
    %231 = vmatprep.subr.mxu0 0.0
    %232 = vmatpush1.msra.mxu0 0.0
    %233 = vmatprep.subr.mxu0 0.0
    %234 = vmatpush1.msra.mxu0 0.0
    %235 = vmatprep.subr.mxu0 0.0
    %236 = vmatpush1.msra.mxu0 0.0
    %237 = vmatprep.mubr.f32.mxu0 0.0
    %238 = vmatmul.mubr.f32.gmra.mrb[0].mxu0 %v73
    %v239 = vpop.f32.mrb[0].mxu0
    %v240 = vadd.f32 0.0, %v239
    %v241 = vpop.f32.mrb[0].mxu0
    %v242 = vadd.f32 0.0, %v241
    %243 = vmatprep.mubr.f32.mxu0 0.0
    %244 = vmatmul.mubr.f32.gmra.mrb[0].mxu0 %v76
    %v245 = vpop.f32.mrb[0].mxu0
    %v246 = vadd.f32 0.0, %v245
    %v247 = vpop.f32.mrb[0].mxu0
    %v248 = vadd.f32 0.0, %v247
    %249 = vmatprep.mubr.f32.mxu0 0.0
    %250 = vmatmul.mubr.f32.gmra.mrb[0].mxu0 %v79
    %v251 = vpop.f32.mrb[0].mxu0
    %v252 = vadd.f32 0.0, %v251
    %v253 = vpop.f32.mrb[0].mxu0
    %v254 = vadd.f32 0.0, %v253
    %255 = vmatprep.mubr.f32.mxu0 0.0
    %256 = vmatmul.mubr.f32.gmra.mrb[0].mxu0 %v82
    %v257 = vpop.f32.mrb[0].mxu0
    %v258 = vadd.f32 0.0, %v257
    %v259 = vpop.f32.mrb[0].mxu0
    %v260 = vadd.f32 0.0, %v259
    %261 = vdwg.mxu0
    %262 = vmatprep.subr.mxu0 %v52
    %263 = vmatpush1.msra.mxu0 %v51
    %264 = vmatprep.subr.mxu0 %v58
    %265 = vmatpush1.msra.mxu0 %v57
    %266 = vmatprep.subr.mxu0 %v64
    %267 = vmatpush1.msra.mxu0 %v63
    %268 = vmatprep.subr.mxu0 %v70
    %269 = vmatpush1.msra.mxu0 %v69
    %270 = vmatprep.subr.mxu0 0.0
    %271 = vmatpush1.msra.mxu0 0.0
    %272 = vmatprep.subr.mxu0 0.0
    %273 = vmatpush1.msra.mxu0 0.0
    %274 = vmatprep.subr.mxu0 0.0
    %275 = vmatpush1.msra.mxu0 0.0
    %276 = vmatprep.subr.mxu0 0.0
    %277 = vmatpush1.msra.mxu0 0.0
    %278 = vmatprep.subr.mxu0 0.0
    %279 = vmatpush1.msra.mxu0 0.0
    %280 = vmatprep.subr.mxu0 0.0
    %281 = vmatpush1.msra.mxu0 0.0
    %282 = vmatprep.subr.mxu0 0.0
    %283 = vmatpush1.msra.mxu0 0.0
    %284 = vmatprep.subr.mxu0 0.0
    %285 = vmatpush1.msra.mxu0 0.0
    %286 = vmatprep.subr.mxu0 0.0
    %287 = vmatpush1.msra.mxu0 0.0
    %288 = vmatprep.subr.mxu0 0.0
    %289 = vmatpush1.msra.mxu0 0.0
    %290 = vmatprep.subr.mxu0 0.0
    %291 = vmatpush1.msra.mxu0 0.0
    %292 = vmatprep.subr.mxu0 0.0
    %293 = vmatpush1.msra.mxu0 0.0
    %294 = vmatprep.subr.mxu0 0.0
    %295 = vmatpush1.msra.mxu0 0.0
    %296 = vmatprep.subr.mxu0 0.0
    %297 = vmatpush1.msra.mxu0 0.0
    %298 = vmatprep.subr.mxu0 0.0
    %299 = vmatpush1.msra.mxu0 0.0
    %300 = vmatprep.subr.mxu0 0.0
    %301 = vmatpush1.msra.mxu0 0.0
    %302 = vmatprep.subr.mxu0 0.0
    %303 = vmatpush1.msra.mxu0 0.0
    %304 = vmatprep.subr.mxu0 0.0
    %305 = vmatpush1.msra.mxu0 0.0
    %306 = vmatprep.subr.mxu0 0.0
    %307 = vmatpush1.msra.mxu0 0.0
    %308 = vmatprep.subr.mxu0 0.0
    %309 = vmatpush1.msra.mxu0 0.0
    %310 = vmatprep.subr.mxu0 0.0
    %311 = vmatpush1.msra.mxu0 0.0
    %312 = vmatprep.subr.mxu0 0.0
    %313 = vmatpush1.msra.mxu0 0.0
    %314 = vmatprep.subr.mxu0 0.0
    %315 = vmatpush1.msra.mxu0 0.0
    %316 = vmatprep.subr.mxu0 0.0
    %317 = vmatpush1.msra.mxu0 0.0
    %318 = vmatprep.subr.mxu0 0.0
    %319 = vmatpush1.msra.mxu0 0.0
    %320 = vmatprep.subr.mxu0 0.0
    %321 = vmatpush1.msra.mxu0 0.0
    %322 = vmatprep.subr.mxu0 0.0
    %323 = vmatpush1.msra.mxu0 0.0
    %324 = vmatprep.subr.mxu0 0.0
    %325 = vmatpush1.msra.mxu0 0.0
    %326 = vmatprep.mubr.f32.mxu0 0.0
    %327 = vmatmul.mubr.f32.gmra.mrb[0].mxu0 %v73
    %v328 = vpop.f32.mrb[0].mxu0
    %v329 = vadd.f32 0.0, %v328
    %v330 = vpop.f32.mrb[0].mxu0
    %v331 = vadd.f32 0.0, %v330
    %332 = vmatprep.mubr.f32.mxu0 0.0
    %333 = vmatmul.mubr.f32.gmra.mrb[0].mxu0 %v76
    %v334 = vpop.f32.mrb[0].mxu0
    %v335 = vadd.f32 0.0, %v334
    %v336 = vpop.f32.mrb[0].mxu0
    %v337 = vadd.f32 0.0, %v336
    %338 = vmatprep.mubr.f32.mxu0 0.0
    %339 = vmatmul.mubr.f32.gmra.mrb[0].mxu0 %v79
    %v340 = vpop.f32.mrb[0].mxu0
    %v341 = vadd.f32 0.0, %v340
    %v342 = vpop.f32.mrb[0].mxu0
    %v343 = vadd.f32 0.0, %v342
    %344 = vmatprep.mubr.f32.mxu0 0.0
    %345 = vmatmul.mubr.f32.gmra.mrb[0].mxu0 %v82
    %v346 = vpop.f32.mrb[0].mxu0
    %v347 = vadd.f32 0.0, %v346
    %v348 = vpop.f32.mrb[0].mxu0
    %v349 = vadd.f32 0.0, %v348
    %350 = vdwg.mxu0
    %351 = vxpose.xlu0.b32.start [1/16] %v329, 128
    %352 = vxpose.xlu0.b32.cont [2/16] 0.0, 128
    %353 = vxpose.xlu0.b32.cont [3/16] 0.0, 128
    %354 = vxpose.xlu0.b32.cont [4/16] 0.0, 128
    %355 = vxpose.xlu0.b32.cont [5/16] 0.0, 128
    %356 = vxpose.xlu0.b32.cont [6/16] 0.0, 128
    %357 = vxpose.xlu0.b32.cont [7/16] 0.0, 128
    %358 = vxpose.xlu0.b32.cont [8/16] 0.0, 128
    %359 = vxpose.xlu0.b32.cont [9/16] 0.0, 128
    %360 = vxpose.xlu0.b32.cont [10/16] 0.0, 128
    %361 = vxpose.xlu0.b32.cont [11/16] 0.0, 128
    %362 = vxpose.xlu0.b32.cont [12/16] 0.0, 128
    %363 = vxpose.xlu0.b32.cont [13/16] 0.0, 128
    %364 = vxpose.xlu0.b32.cont [14/16] 0.0, 128
    %365 = vxpose.xlu0.b32.cont [15/16] 0.0, 128
    %366 = vxpose.xlu0.b32.end [16/16] 0.0, 128
    %v367 = vpop.trf.xlu0
    %v368 = vpop.trf.xlu0
    %v369 = vpop.trf.xlu0
    %v370 = vpop.trf.xlu0
    %v371 = vpop.trf.xlu0
    %v372 = vpop.trf.xlu0
    %v373 = vpop.trf.xlu0
    %v374 = vpop.trf.xlu0
    %v375 = vpop.trf.xlu0
    %v376 = vpop.trf.xlu0
    %v377 = vpop.trf.xlu0
    %v378 = vpop.trf.xlu0
    %v379 = vpop.trf.xlu0
    %v380 = vpop.trf.xlu0
    %v381 = vpop.trf.xlu0
    %v382 = vpop.trf.xlu0
    %383 = vxpose.xlu0.b32.start [1/16] %v335, 128
    %384 = vxpose.xlu0.b32.cont [2/16] 0.0, 128
    %385 = vxpose.xlu0.b32.cont [3/16] 0.0, 128
    %386 = vxpose.xlu0.b32.cont [4/16] 0.0, 128
    %387 = vxpose.xlu0.b32.cont [5/16] 0.0, 128
    %388 = vxpose.xlu0.b32.cont [6/16] 0.0, 128
    %389 = vxpose.xlu0.b32.cont [7/16] 0.0, 128
    %390 = vxpose.xlu0.b32.cont [8/16] 0.0, 128
    %391 = vxpose.xlu0.b32.cont [9/16] 0.0, 128
    %392 = vxpose.xlu0.b32.cont [10/16] 0.0, 128
    %393 = vxpose.xlu0.b32.cont [11/16] 0.0, 128
    %394 = vxpose.xlu0.b32.cont [12/16] 0.0, 128
    %395 = vxpose.xlu0.b32.cont [13/16] 0.0, 128
    %396 = vxpose.xlu0.b32.cont [14/16] 0.0, 128
    %397 = vxpose.xlu0.b32.cont [15/16] 0.0, 128
    %398 = vxpose.xlu0.b32.end [16/16] 0.0, 128
    %v399 = vpop.trf.xlu0
    %v400 = vpop.trf.xlu0
    %v401 = vpop.trf.xlu0
    %v402 = vpop.trf.xlu0
    %v403 = vpop.trf.xlu0
    %v404 = vpop.trf.xlu0
    %v405 = vpop.trf.xlu0
    %v406 = vpop.trf.xlu0
    %v407 = vpop.trf.xlu0
    %v408 = vpop.trf.xlu0
    %v409 = vpop.trf.xlu0
    %v410 = vpop.trf.xlu0
    %v411 = vpop.trf.xlu0
    %v412 = vpop.trf.xlu0
    %v413 = vpop.trf.xlu0
    %v414 = vpop.trf.xlu0
    %415 = vxpose.xlu0.b32.start [1/16] %v341, 128
    %416 = vxpose.xlu0.b32.cont [2/16] 0.0, 128
    %417 = vxpose.xlu0.b32.cont [3/16] 0.0, 128
    %418 = vxpose.xlu0.b32.cont [4/16] 0.0, 128
    %419 = vxpose.xlu0.b32.cont [5/16] 0.0, 128
    %420 = vxpose.xlu0.b32.cont [6/16] 0.0, 128
    %421 = vxpose.xlu0.b32.cont [7/16] 0.0, 128
    %422 = vxpose.xlu0.b32.cont [8/16] 0.0, 128
    %423 = vxpose.xlu0.b32.cont [9/16] 0.0, 128
    %424 = vxpose.xlu0.b32.cont [10/16] 0.0, 128
    %425 = vxpose.xlu0.b32.cont [11/16] 0.0, 128
    %426 = vxpose.xlu0.b32.cont [12/16] 0.0, 128
    %427 = vxpose.xlu0.b32.cont [13/16] 0.0, 128
    %428 = vxpose.xlu0.b32.cont [14/16] 0.0, 128
    %429 = vxpose.xlu0.b32.cont [15/16] 0.0, 128
    %430 = vxpose.xlu0.b32.end [16/16] 0.0, 128
    %v431 = vpop.trf.xlu0
    %v432 = vpop.trf.xlu0
    %v433 = vpop.trf.xlu0
    %v434 = vpop.trf.xlu0
    %v435 = vpop.trf.xlu0
    %v436 = vpop.trf.xlu0
    %v437 = vpop.trf.xlu0
    %v438 = vpop.trf.xlu0
    %v439 = vpop.trf.xlu0
    %v440 = vpop.trf.xlu0
    %v441 = vpop.trf.xlu0
    %v442 = vpop.trf.xlu0
    %v443 = vpop.trf.xlu0
    %v444 = vpop.trf.xlu0
    %v445 = vpop.trf.xlu0
    %v446 = vpop.trf.xlu0
    %447 = vxpose.xlu0.b32.start [1/16] %v347, 128
    %448 = vxpose.xlu0.b32.cont [2/16] 0.0, 128
    %449 = vxpose.xlu0.b32.cont [3/16] 0.0, 128
    %450 = vxpose.xlu0.b32.cont [4/16] 0.0, 128
    %451 = vxpose.xlu0.b32.cont [5/16] 0.0, 128
    %452 = vxpose.xlu0.b32.cont [6/16] 0.0, 128
    %453 = vxpose.xlu0.b32.cont [7/16] 0.0, 128
    %454 = vxpose.xlu0.b32.cont [8/16] 0.0, 128
    %455 = vxpose.xlu0.b32.cont [9/16] 0.0, 128
    %456 = vxpose.xlu0.b32.cont [10/16] 0.0, 128
    %457 = vxpose.xlu0.b32.cont [11/16] 0.0, 128
    %458 = vxpose.xlu0.b32.cont [12/16] 0.0, 128
    %459 = vxpose.xlu0.b32.cont [13/16] 0.0, 128
    %460 = vxpose.xlu0.b32.cont [14/16] 0.0, 128
    %461 = vxpose.xlu0.b32.cont [15/16] 0.0, 128
    %462 = vxpose.xlu0.b32.end [16/16] 0.0, 128
    %v463 = vpop.trf.xlu0
    %v464 = vpop.trf.xlu0
    %v465 = vpop.trf.xlu0
    %v466 = vpop.trf.xlu0
    %v467 = vpop.trf.xlu0
    %v468 = vpop.trf.xlu0
    %v469 = vpop.trf.xlu0
    %v470 = vpop.trf.xlu0
    %v471 = vpop.trf.xlu0
    %v472 = vpop.trf.xlu0
    %v473 = vpop.trf.xlu0
    %v474 = vpop.trf.xlu0
    %v475 = vpop.trf.xlu0
    %v476 = vpop.trf.xlu0
    %v477 = vpop.trf.xlu0
    %v478 = vpop.trf.xlu0
    %479 = vxpose.xlu0.b32.start [1/16] %v331, 128
    %480 = vxpose.xlu0.b32.cont [2/16] 0.0, 128
    %481 = vxpose.xlu0.b32.cont [3/16] 0.0, 128
    %482 = vxpose.xlu0.b32.cont [4/16] 0.0, 128
    %483 = vxpose.xlu0.b32.cont [5/16] 0.0, 128
    %484 = vxpose.xlu0.b32.cont [6/16] 0.0, 128
    %485 = vxpose.xlu0.b32.cont [7/16] 0.0, 128
    %486 = vxpose.xlu0.b32.cont [8/16] 0.0, 128
    %487 = vxpose.xlu0.b32.cont [9/16] 0.0, 128
    %488 = vxpose.xlu0.b32.cont [10/16] 0.0, 128
    %489 = vxpose.xlu0.b32.cont [11/16] 0.0, 128
    %490 = vxpose.xlu0.b32.cont [12/16] 0.0, 128
    %491 = vxpose.xlu0.b32.cont [13/16] 0.0, 128
    %492 = vxpose.xlu0.b32.cont [14/16] 0.0, 128
    %493 = vxpose.xlu0.b32.cont [15/16] 0.0, 128
    %494 = vxpose.xlu0.b32.end [16/16] 0.0, 128
    %v495 = vpop.trf.xlu0
    %v496 = vpop.trf.xlu0
    %v497 = vpop.trf.xlu0
    %v498 = vpop.trf.xlu0
    %v499 = vpop.trf.xlu0
    %v500 = vpop.trf.xlu0
    %v501 = vpop.trf.xlu0
    %v502 = vpop.trf.xlu0
    %v503 = vpop.trf.xlu0
    %v504 = vpop.trf.xlu0
    %v505 = vpop.trf.xlu0
    %v506 = vpop.trf.xlu0
    %v507 = vpop.trf.xlu0
    %v508 = vpop.trf.xlu0
    %v509 = vpop.trf.xlu0
    %v510 = vpop.trf.xlu0
    %511 = vxpose.xlu0.b32.start [1/16] %v337, 128
    %512 = vxpose.xlu0.b32.cont [2/16] 0.0, 128
    %513 = vxpose.xlu0.b32.cont [3/16] 0.0, 128
    %514 = vxpose.xlu0.b32.cont [4/16] 0.0, 128
    %515 = vxpose.xlu0.b32.cont [5/16] 0.0, 128
    %516 = vxpose.xlu0.b32.cont [6/16] 0.0, 128
    %517 = vxpose.xlu0.b32.cont [7/16] 0.0, 128
    %518 = vxpose.xlu0.b32.cont [8/16] 0.0, 128
    %519 = vxpose.xlu0.b32.cont [9/16] 0.0, 128
    %520 = vxpose.xlu0.b32.cont [10/16] 0.0, 128
    %521 = vxpose.xlu0.b32.cont [11/16] 0.0, 128
    %522 = vxpose.xlu0.b32.cont [12/16] 0.0, 128
    %523 = vxpose.xlu0.b32.cont [13/16] 0.0, 128
    %524 = vxpose.xlu0.b32.cont [14/16] 0.0, 128
    %525 = vxpose.xlu0.b32.cont [15/16] 0.0, 128
    %526 = vxpose.xlu0.b32.end [16/16] 0.0, 128
    %v527 = vpop.trf.xlu0
    %v528 = vpop.trf.xlu0
    %v529 = vpop.trf.xlu0
    %v530 = vpop.trf.xlu0
    %v531 = vpop.trf.xlu0
    %v532 = vpop.trf.xlu0
    %v533 = vpop.trf.xlu0
    %v534 = vpop.trf.xlu0
    %v535 = vpop.trf.xlu0
    %v536 = vpop.trf.xlu0
    %v537 = vpop.trf.xlu0
    %v538 = vpop.trf.xlu0
    %v539 = vpop.trf.xlu0
    %v540 = vpop.trf.xlu0
    %v541 = vpop.trf.xlu0
    %v542 = vpop.trf.xlu0
    %543 = vxpose.xlu0.b32.start [1/16] %v343, 128
    %544 = vxpose.xlu0.b32.cont [2/16] 0.0, 128
    %545 = vxpose.xlu0.b32.cont [3/16] 0.0, 128
    %546 = vxpose.xlu0.b32.cont [4/16] 0.0, 128
    %547 = vxpose.xlu0.b32.cont [5/16] 0.0, 128
    %548 = vxpose.xlu0.b32.cont [6/16] 0.0, 128
    %549 = vxpose.xlu0.b32.cont [7/16] 0.0, 128
    %550 = vxpose.xlu0.b32.cont [8/16] 0.0, 128
    %551 = vxpose.xlu0.b32.cont [9/16] 0.0, 128
    %552 = vxpose.xlu0.b32.cont [10/16] 0.0, 128
    %553 = vxpose.xlu0.b32.cont [11/16] 0.0, 128
    %554 = vxpose.xlu0.b32.cont [12/16] 0.0, 128
    %555 = vxpose.xlu0.b32.cont [13/16] 0.0, 128
    %556 = vxpose.xlu0.b32.cont [14/16] 0.0, 128
    %557 = vxpose.xlu0.b32.cont [15/16] 0.0, 128
    %558 = vxpose.xlu0.b32.end [16/16] 0.0, 128
    %v559 = vpop.trf.xlu0
    %v560 = vpop.trf.xlu0
    %v561 = vpop.trf.xlu0
    %v562 = vpop.trf.xlu0
    %v563 = vpop.trf.xlu0
    %v564 = vpop.trf.xlu0
    %v565 = vpop.trf.xlu0
    %v566 = vpop.trf.xlu0
    %v567 = vpop.trf.xlu0
    %v568 = vpop.trf.xlu0
    %v569 = vpop.trf.xlu0
    %v570 = vpop.trf.xlu0
    %v571 = vpop.trf.xlu0
    %v572 = vpop.trf.xlu0
    %v573 = vpop.trf.xlu0
    %v574 = vpop.trf.xlu0
    %575 = vxpose.xlu0.b32.start [1/16] %v349, 128
    %576 = vxpose.xlu0.b32.cont [2/16] 0.0, 128
    %577 = vxpose.xlu0.b32.cont [3/16] 0.0, 128
    %578 = vxpose.xlu0.b32.cont [4/16] 0.0, 128
    %579 = vxpose.xlu0.b32.cont [5/16] 0.0, 128
    %580 = vxpose.xlu0.b32.cont [6/16] 0.0, 128
    %581 = vxpose.xlu0.b32.cont [7/16] 0.0, 128
    %582 = vxpose.xlu0.b32.cont [8/16] 0.0, 128
    %583 = vxpose.xlu0.b32.cont [9/16] 0.0, 128
    %584 = vxpose.xlu0.b32.cont [10/16] 0.0, 128
    %585 = vxpose.xlu0.b32.cont [11/16] 0.0, 128
    %586 = vxpose.xlu0.b32.cont [12/16] 0.0, 128
    %587 = vxpose.xlu0.b32.cont [13/16] 0.0, 128
    %588 = vxpose.xlu0.b32.cont [14/16] 0.0, 128
    %589 = vxpose.xlu0.b32.cont [15/16] 0.0, 128
    %590 = vxpose.xlu0.b32.end [16/16] 0.0, 128
    %v591 = vpop.trf.xlu0
    %v592 = vpop.trf.xlu0
    %v593 = vpop.trf.xlu0
    %v594 = vpop.trf.xlu0
    %v595 = vpop.trf.xlu0
    %v596 = vpop.trf.xlu0
    %v597 = vpop.trf.xlu0
    %v598 = vpop.trf.xlu0
    %v599 = vpop.trf.xlu0
    %v600 = vpop.trf.xlu0
    %v601 = vpop.trf.xlu0
    %v602 = vpop.trf.xlu0
    %v603 = vpop.trf.xlu0
    %v604 = vpop.trf.xlu0
    %v605 = vpop.trf.xlu0
    %v606 = vpop.trf.xlu0
    %v612 = vunpack.c.l.s4 1966171168
    %v613 = vunpack.c.0.s8 %v612
    %v614 = vlaneseq
    %v615 = vshrl.u32 %v614, 7
    %v616 = vsub.s32 %v613, %v615
    %v617 = vrot.slane %v367, %v616
    %v618 = vcombine.high %v617, %v617
    %v620 = vunpack.c.l.s4 1966171168
    %v621 = vunpack.c.0.s8 %v620
    %v622 = vlaneseq
    %v623 = vshrl.u32 %v622, 7
    %v624 = vsub.s32 %v621, %v623
    %v625 = vrot.slane %v617, %v624
    %v627 = vunpack.c.l.s4 1966171168
    %v628 = vunpack.c.0.s8 %v627
    %v629 = vlaneseq
    %v630 = vshrl.u32 %v629, 7
    %v631 = vsub.s32 %v628, %v630
    %v632 = vrot.slane %v618, %v631
    %v633 = vcombine.high %v625, %v625
    %v634 = vcombine.high %v632, %v632
    %v636 = vunpack.c.l.s4 1966171168
    %v637 = vunpack.c.0.s8 %v636
    %v638 = vlaneseq
    %v639 = vshrl.u32 %v638, 7
    %v640 = vsub.s32 %v637, %v639
    %v641 = vrot.slane %v399, %v640
    %v642 = vcombine.high %v641, %v641
    %v644 = vunpack.c.l.s4 1966171168
    %v645 = vunpack.c.0.s8 %v644
    %v646 = vlaneseq
    %v647 = vshrl.u32 %v646, 7
    %v648 = vsub.s32 %v645, %v647
    %v649 = vrot.slane %v641, %v648
    %v651 = vunpack.c.l.s4 1966171168
    %v652 = vunpack.c.0.s8 %v651
    %v653 = vlaneseq
    %v654 = vshrl.u32 %v653, 7
    %v655 = vsub.s32 %v652, %v654
    %v656 = vrot.slane %v642, %v655
    %v657 = vcombine.high %v649, %v649
    %v658 = vcombine.high %v656, %v656
    %v660 = vunpack.c.l.s4 1966171168
    %v661 = vunpack.c.0.s8 %v660
    %v662 = vlaneseq
    %v663 = vshrl.u32 %v662, 7
    %v664 = vsub.s32 %v661, %v663
    %v665 = vrot.slane %v431, %v664
    %v666 = vcombine.high %v665, %v665
    %v668 = vunpack.c.l.s4 1966171168
    %v669 = vunpack.c.0.s8 %v668
    %v670 = vlaneseq
    %v671 = vshrl.u32 %v670, 7
    %v672 = vsub.s32 %v669, %v671
    %v673 = vrot.slane %v665, %v672
    %v675 = vunpack.c.l.s4 1966171168
    %v676 = vunpack.c.0.s8 %v675
    %v677 = vlaneseq
    %v678 = vshrl.u32 %v677, 7
    %v679 = vsub.s32 %v676, %v678
    %v680 = vrot.slane %v666, %v679
    %v681 = vcombine.high %v673, %v673
    %v682 = vcombine.high %v680, %v680
    %v684 = vunpack.c.l.s4 1966171168
    %v685 = vunpack.c.0.s8 %v684
    %v686 = vlaneseq
    %v687 = vshrl.u32 %v686, 7
    %v688 = vsub.s32 %v685, %v687
    %v689 = vrot.slane %v463, %v688
    %v690 = vcombine.high %v689, %v689
    %v692 = vunpack.c.l.s4 1966171168
    %v693 = vunpack.c.0.s8 %v692
    %v694 = vlaneseq
    %v695 = vshrl.u32 %v694, 7
    %v696 = vsub.s32 %v693, %v695
    %v697 = vrot.slane %v689, %v696
    %v699 = vunpack.c.l.s4 1966171168
    %v700 = vunpack.c.0.s8 %v699
    %v701 = vlaneseq
    %v702 = vshrl.u32 %v701, 7
    %v703 = vsub.s32 %v700, %v702
    %v704 = vrot.slane %v690, %v703
    %v705 = vcombine.high %v697, %v697
    %v706 = vcombine.high %v704, %v704
    %v707 = vlaneseq
    %v708 = vshrl.u32 %v707, 7
    %v709 = vsub.s32 0, %v708
    %v710 = vrot.slane %v495, %v709
    %712 = vbcast.lane.b32.xlu0 %v710, 256
    %v713 = vpop.permute.xlu0 %712
    %v714 = vlaneseq
    %v715 = vshrl.u32 %v714, 7
    %v716 = vsub.s32 1, %v715
    %v717 = vrot.slane %v495, %v716
    %719 = vbcast.lane.b32.xlu0 %v717, 256
    %v720 = vpop.permute.xlu0 %719
    %v721 = vlaneseq
    %v722 = vshrl.u32 %v721, 7
    %v723 = vsub.s32 2, %v722
    %v724 = vrot.slane %v495, %v723
    %726 = vbcast.lane.b32.xlu0 %v724, 256
    %v727 = vpop.permute.xlu0 %726
    %v728 = vlaneseq
    %v729 = vshrl.u32 %v728, 7
    %v730 = vsub.s32 3, %v729
    %v731 = vrot.slane %v495, %v730
    %733 = vbcast.lane.b32.xlu0 %v731, 256
    %v734 = vpop.permute.xlu0 %733
    %v735 = vlaneseq
    %v736 = vshrl.u32 %v735, 7
    %v737 = vsub.s32 0, %v736
    %v738 = vrot.slane %v527, %v737
    %740 = vbcast.lane.b32.xlu0 %v738, 256
    %v741 = vpop.permute.xlu0 %740
    %v742 = vlaneseq
    %v743 = vshrl.u32 %v742, 7
    %v744 = vsub.s32 1, %v743
    %v745 = vrot.slane %v527, %v744
    %747 = vbcast.lane.b32.xlu0 %v745, 256
    %v748 = vpop.permute.xlu0 %747
    %v749 = vlaneseq
    %v750 = vshrl.u32 %v749, 7
    %v751 = vsub.s32 2, %v750
    %v752 = vrot.slane %v527, %v751
    %754 = vbcast.lane.b32.xlu0 %v752, 256
    %v755 = vpop.permute.xlu0 %754
    %v756 = vlaneseq
    %v757 = vshrl.u32 %v756, 7
    %v758 = vsub.s32 3, %v757
    %v759 = vrot.slane %v527, %v758
    %761 = vbcast.lane.b32.xlu0 %v759, 256
    %v762 = vpop.permute.xlu0 %761
    %v763 = vlaneseq
    %v764 = vshrl.u32 %v763, 7
    %v765 = vsub.s32 0, %v764
    %v766 = vrot.slane %v559, %v765
    %768 = vbcast.lane.b32.xlu0 %v766, 256
    %v769 = vpop.permute.xlu0 %768
    %v770 = vlaneseq
    %v771 = vshrl.u32 %v770, 7
    %v772 = vsub.s32 1, %v771
    %v773 = vrot.slane %v559, %v772
    %775 = vbcast.lane.b32.xlu0 %v773, 256
    %v776 = vpop.permute.xlu0 %775
    %v777 = vlaneseq
    %v778 = vshrl.u32 %v777, 7
    %v779 = vsub.s32 2, %v778
    %v780 = vrot.slane %v559, %v779
    %782 = vbcast.lane.b32.xlu0 %v780, 256
    %v783 = vpop.permute.xlu0 %782
    %v784 = vlaneseq
    %v785 = vshrl.u32 %v784, 7
    %v786 = vsub.s32 3, %v785
    %v787 = vrot.slane %v559, %v786
    %789 = vbcast.lane.b32.xlu0 %v787, 256
    %v790 = vpop.permute.xlu0 %789
    %v791 = vlaneseq
    %v792 = vshrl.u32 %v791, 7
    %v793 = vsub.s32 0, %v792
    %v794 = vrot.slane %v591, %v793
    %796 = vbcast.lane.b32.xlu0 %v794, 256
    %v797 = vpop.permute.xlu0 %796
    %v798 = vlaneseq
    %v799 = vshrl.u32 %v798, 7
    %v800 = vsub.s32 1, %v799
    %v801 = vrot.slane %v591, %v800
    %803 = vbcast.lane.b32.xlu0 %v801, 256
    %v804 = vpop.permute.xlu0 %803
    %v805 = vlaneseq
    %v806 = vshrl.u32 %v805, 7
    %v807 = vsub.s32 2, %v806
    %v808 = vrot.slane %v591, %v807
    %810 = vbcast.lane.b32.xlu0 %v808, 256
    %v811 = vpop.permute.xlu0 %810
    %v812 = vlaneseq
    %v813 = vshrl.u32 %v812, 7
    %v814 = vsub.s32 3, %v813
    %v815 = vrot.slane %v591, %v814
    %817 = vbcast.lane.b32.xlu0 %v815, 256
    %v818 = vpop.permute.xlu0 %817
    %v819 = vlaneseq
    %v820 = vshrl.u32 %v819, 7
    %v821 = vsub.s32 0, %v820
    %v822 = vrot.slane %v625, %v821
    %v823 = vlaneseq
    %v824 = vshrl.u32 %v823, 7
    %v825 = vsub.s32 0, %v824
    %v826 = vrot.slane %v632, %v825
    %v827 = vlaneseq
    %v828 = vshrl.u32 %v827, 7
    %v829 = vsub.s32 0, %v828
    %v830 = vrot.slane %v633, %v829
    %v831 = vlaneseq
    %v832 = vshrl.u32 %v831, 7
    %v833 = vsub.s32 0, %v832
    %v834 = vrot.slane %v634, %v833
    %v835 = vlaneseq
    %v836 = vshrl.u32 %v835, 7
    %v837 = vsub.s32 0, %v836
    %v838 = vrot.slane %v649, %v837
    %v839 = vlaneseq
    %v840 = vshrl.u32 %v839, 7
    %v841 = vsub.s32 0, %v840
    %v842 = vrot.slane %v656, %v841
    %v843 = vlaneseq
    %v844 = vshrl.u32 %v843, 7
    %v845 = vsub.s32 0, %v844
    %v846 = vrot.slane %v657, %v845
    %v847 = vlaneseq
    %v848 = vshrl.u32 %v847, 7
    %v849 = vsub.s32 0, %v848
    %v850 = vrot.slane %v658, %v849
    %v851 = vlaneseq
    %v852 = vshrl.u32 %v851, 7
    %v853 = vsub.s32 0, %v852
    %v854 = vrot.slane %v673, %v853
    %v855 = vlaneseq
    %v856 = vshrl.u32 %v855, 7
    %v857 = vsub.s32 0, %v856
    %v858 = vrot.slane %v680, %v857
    %v859 = vlaneseq
    %v860 = vshrl.u32 %v859, 7
    %v861 = vsub.s32 0, %v860
    %v862 = vrot.slane %v681, %v861
    %v863 = vlaneseq
    %v864 = vshrl.u32 %v863, 7
    %v865 = vsub.s32 0, %v864
    %v866 = vrot.slane %v682, %v865
    %v867 = vlaneseq
    %v868 = vshrl.u32 %v867, 7
    %v869 = vsub.s32 0, %v868
    %v870 = vrot.slane %v697, %v869
    %v871 = vlaneseq
    %v872 = vshrl.u32 %v871, 7
    %v873 = vsub.s32 0, %v872
    %v874 = vrot.slane %v704, %v873
    %v875 = vlaneseq
    %v876 = vshrl.u32 %v875, 7
    %v877 = vsub.s32 0, %v876
    %v878 = vrot.slane %v705, %v877
    %v879 = vlaneseq
    %v880 = vshrl.u32 %v879, 7
    %v881 = vsub.s32 0, %v880
    %v882 = vrot.slane %v706, %v881
    %v899 = vadd.f32 %v822, %v713
    %v900 = vadd.f32 %v826, %v720
    %v901 = vadd.f32 %v830, %v727
    %v902 = vadd.f32 %v834, %v734
    %v903 = vadd.f32 %v838, %v741
    %v904 = vadd.f32 %v842, %v748
    %v905 = vadd.f32 %v846, %v755
    %v906 = vadd.f32 %v850, %v762
    %v907 = vadd.f32 %v854, %v769
    %v908 = vadd.f32 %v858, %v776
    %v909 = vadd.f32 %v862, %v783
    %v910 = vadd.f32 %v866, %v790
    %v911 = vadd.f32 %v870, %v797
    %v912 = vadd.f32 %v874, %v804
    %v913 = vadd.f32 %v878, %v811
    %v914 = vadd.f32 %v882, %v818
    %vm915 = vcmp.ge.f32.partialorder %v899, 0.0
    %vm916 = vcmp.ge.f32.partialorder %v900, 0.0
    %vm917 = vcmp.ge.f32.partialorder %v901, 0.0
    %vm918 = vcmp.ge.f32.partialorder %v902, 0.0
    %vm919 = vcmp.ge.f32.partialorder %v903, 0.0
    %vm920 = vcmp.ge.f32.partialorder %v904, 0.0
    %vm921 = vcmp.ge.f32.partialorder %v905, 0.0
    %vm922 = vcmp.ge.f32.partialorder %v906, 0.0
    %vm923 = vcmp.ge.f32.partialorder %v907, 0.0
    %vm924 = vcmp.ge.f32.partialorder %v908, 0.0
    %vm925 = vcmp.ge.f32.partialorder %v909, 0.0
    %vm926 = vcmp.ge.f32.partialorder %v910, 0.0
    %vm927 = vcmp.ge.f32.partialorder %v911, 0.0
    %vm928 = vcmp.ge.f32.partialorder %v912, 0.0
    %vm929 = vcmp.ge.f32.partialorder %v913, 0.0
    %vm930 = vcmp.ge.f32.partialorder %v914, 0.0
    %v931 = vmul.f32 %v899, 0.2
    %v932 = vmul.f32 %v900, 0.2
    %v933 = vmul.f32 %v901, 0.2
    %v934 = vmul.f32 %v902, 0.2
    %v935 = vmul.f32 %v903, 0.2
    %v936 = vmul.f32 %v904, 0.2
    %v937 = vmul.f32 %v905, 0.2
    %v938 = vmul.f32 %v906, 0.2
    %v939 = vmul.f32 %v907, 0.2
    %v940 = vmul.f32 %v908, 0.2
    %v941 = vmul.f32 %v909, 0.2
    %v942 = vmul.f32 %v910, 0.2
    %v943 = vmul.f32 %v911, 0.2
    %v944 = vmul.f32 %v912, 0.2
    %v945 = vmul.f32 %v913, 0.2
    %v946 = vmul.f32 %v914, 0.2
    %v947 = vsel %vm915, %v899, %v931
    %v948 = vsel %vm916, %v900, %v932
    %v949 = vsel %vm917, %v901, %v933
    %v950 = vsel %vm918, %v902, %v934
    %v951 = vsel %vm919, %v903, %v935
    %v952 = vsel %vm920, %v904, %v936
    %v953 = vsel %vm921, %v905, %v937
    %v954 = vsel %vm922, %v906, %v938
    %v955 = vsel %vm923, %v907, %v939
    %v956 = vsel %vm924, %v908, %v940
    %v957 = vsel %vm925, %v909, %v941
    %v958 = vsel %vm926, %v910, %v942
    %v959 = vsel %vm927, %v911, %v943
    %v960 = vsel %vm928, %v912, %v944
    %v961 = vsel %vm929, %v913, %v945
    %v962 = vsel %vm930, %v914, %v946
    %v963 = vlaneseq
    %v964 = vshrl.u32 %v963, 7
    %v965 = vlaneseq
    %v966 = vand.u32 %v965, 127
    %vm967 = vcmp.eq.s32.totalorder %v964, %v966
    %v968 = vsel %vm967, 1, 0
    %vm969 = vcmp.eq.s32.totalorder %v968, 1
    %v970 = vsel %vm969, -inf, %v947
    %v971 = vsel %vm969, -inf, %v948
    %v972 = vsel %vm969, -inf, %v949
    %v973 = vsel %vm969, -inf, %v950
    %v974 = vsel %vm969, -inf, %v951
    %v975 = vsel %vm969, -inf, %v952
    %v976 = vsel %vm969, -inf, %v953
    %v977 = vsel %vm969, -inf, %v954
    %v978 = vsel %vm969, -inf, %v955
    %v979 = vsel %vm969, -inf, %v956
    %v980 = vsel %vm969, -inf, %v957
    %v981 = vsel %vm969, -inf, %v958
    %v982 = vsel %vm969, -inf, %v959
    %v983 = vsel %vm969, -inf, %v960
    %v984 = vsel %vm969, -inf, %v961
    %v985 = vsel %vm969, -inf, %v962
    %vm986 = vcmask 64512
    %v987 = vsel %vm986, %v970, -inf
    %988 = vmax.xlane.f32.xlu0 %v987
    %v989 = vpop.xlane.xlu0 %988
    %v990 = vsel %vm986, %v971, -inf
    %991 = vmax.xlane.f32.xlu0 %v990
    %v992 = vpop.xlane.xlu0 %991
    %v993 = vsel %vm986, %v972, -inf
    %994 = vmax.xlane.f32.xlu0 %v993
    %v995 = vpop.xlane.xlu0 %994
    %v996 = vsel %vm986, %v973, -inf
    %997 = vmax.xlane.f32.xlu0 %v996
    %v998 = vpop.xlane.xlu0 %997
    %v999 = vsel %vm986, %v974, -inf
    %1000 = vmax.xlane.f32.xlu0 %v999
    %v1001 = vpop.xlane.xlu0 %1000
    %v1002 = vsel %vm986, %v975, -inf
    %1003 = vmax.xlane.f32.xlu0 %v1002
    %v1004 = vpop.xlane.xlu0 %1003
    %v1005 = vsel %vm986, %v976, -inf
    %1006 = vmax.xlane.f32.xlu0 %v1005
    %v1007 = vpop.xlane.xlu0 %1006
    %v1008 = vsel %vm986, %v977, -inf
    %1009 = vmax.xlane.f32.xlu0 %v1008
    %v1010 = vpop.xlane.xlu0 %1009
    %v1011 = vsel %vm986, %v978, -inf
    %1012 = vmax.xlane.f32.xlu0 %v1011
    %v1013 = vpop.xlane.xlu0 %1012
    %v1014 = vsel %vm986, %v979, -inf
    %1015 = vmax.xlane.f32.xlu0 %v1014
    %v1016 = vpop.xlane.xlu0 %1015
    %v1017 = vsel %vm986, %v980, -inf
    %1018 = vmax.xlane.f32.xlu0 %v1017
    %v1019 = vpop.xlane.xlu0 %1018
    %v1020 = vsel %vm986, %v981, -inf
    %1021 = vmax.xlane.f32.xlu0 %v1020
    %v1022 = vpop.xlane.xlu0 %1021
    %v1023 = vsel %vm986, %v982, -inf
    %1024 = vmax.xlane.f32.xlu0 %v1023
    %v1025 = vpop.xlane.xlu0 %1024
    %v1026 = vsel %vm986, %v983, -inf
    %1027 = vmax.xlane.f32.xlu0 %v1026
    %v1028 = vpop.xlane.xlu0 %1027
    %v1029 = vsel %vm986, %v984, -inf
    %1030 = vmax.xlane.f32.xlu0 %v1029
    %v1031 = vpop.xlane.xlu0 %1030
    %v1032 = vsel %vm986, %v985, -inf
    %1033 = vmax.xlane.f32.xlu0 %v1032
    %v1034 = vpop.xlane.xlu0 %1033
    %v1035 = vsub.f32 %v970, %v989
    %v1036 = vsub.f32 %v971, %v992
    %v1037 = vsub.f32 %v972, %v995
    %v1038 = vsub.f32 %v973, %v998
    %v1039 = vsub.f32 %v974, %v1001
    %v1040 = vsub.f32 %v975, %v1004
    %v1041 = vsub.f32 %v976, %v1007
    %v1042 = vsub.f32 %v977, %v1010
    %v1043 = vsub.f32 %v978, %v1013
    %v1044 = vsub.f32 %v979, %v1016
    %v1045 = vsub.f32 %v980, %v1019
    %v1046 = vsub.f32 %v981, %v1022
    %v1047 = vsub.f32 %v982, %v1025
    %v1048 = vsub.f32 %v983, %v1028
    %v1049 = vsub.f32 %v984, %v1031
    %v1050 = vsub.f32 %v985, %v1034
    %v1051 = vmul.f32 %v1035, 1.442695
    %v1052 = vpow.pop %v1051
    %v1053 = vmul.f32 %v1036, 1.442695
    %v1054 = vpow.pop %v1053
    %v1055 = vmul.f32 %v1037, 1.442695
    %v1056 = vpow.pop %v1055
    %v1057 = vmul.f32 %v1038, 1.442695
    %v1058 = vpow.pop %v1057
    %v1059 = vmul.f32 %v1039, 1.442695
    %v1060 = vpow.pop %v1059
    %v1061 = vmul.f32 %v1040, 1.442695
    %v1062 = vpow.pop %v1061
    %v1063 = vmul.f32 %v1041, 1.442695
    %v1064 = vpow.pop %v1063
    %v1065 = vmul.f32 %v1042, 1.442695
    %v1066 = vpow.pop %v1065
    %v1067 = vmul.f32 %v1043, 1.442695
    %v1068 = vpow.pop %v1067
    %v1069 = vmul.f32 %v1044, 1.442695
    %v1070 = vpow.pop %v1069
    %v1071 = vmul.f32 %v1045, 1.442695
    %v1072 = vpow.pop %v1071
    %v1073 = vmul.f32 %v1046, 1.442695
    %v1074 = vpow.pop %v1073
    %v1075 = vmul.f32 %v1047, 1.442695
    %v1076 = vpow.pop %v1075
    %v1077 = vmul.f32 %v1048, 1.442695
    %v1078 = vpow.pop %v1077
    %v1079 = vmul.f32 %v1049, 1.442695
    %v1080 = vpow.pop %v1079
    %v1081 = vmul.f32 %v1050, 1.442695
    %v1082 = vpow.pop %v1081
    %v1083 = vsel %vm986, %v1052, 0.0
    %1084 = vadd.xlane.f32.xlu0 %v1083
    %v1085 = vpop.xlane.xlu0 %1084
    %v1086 = vsel %vm986, %v1054, 0.0
    %1087 = vadd.xlane.f32.xlu0 %v1086
    %v1088 = vpop.xlane.xlu0 %1087
    %v1089 = vsel %vm986, %v1056, 0.0
    %1090 = vadd.xlane.f32.xlu0 %v1089
    %v1091 = vpop.xlane.xlu0 %1090
    %v1092 = vsel %vm986, %v1058, 0.0
    %1093 = vadd.xlane.f32.xlu0 %v1092
    %v1094 = vpop.xlane.xlu0 %1093
    %v1095 = vsel %vm986, %v1060, 0.0
    %1096 = vadd.xlane.f32.xlu0 %v1095
    %v1097 = vpop.xlane.xlu0 %1096
    %v1098 = vsel %vm986, %v1062, 0.0
    %1099 = vadd.xlane.f32.xlu0 %v1098
    %v1100 = vpop.xlane.xlu0 %1099
    %v1101 = vsel %vm986, %v1064, 0.0
    %1102 = vadd.xlane.f32.xlu0 %v1101
    %v1103 = vpop.xlane.xlu0 %1102
    %v1104 = vsel %vm986, %v1066, 0.0
    %1105 = vadd.xlane.f32.xlu0 %v1104
    %v1106 = vpop.xlane.xlu0 %1105
    %v1107 = vsel %vm986, %v1068, 0.0
    %1108 = vadd.xlane.f32.xlu0 %v1107
    %v1109 = vpop.xlane.xlu0 %1108
    %v1110 = vsel %vm986, %v1070, 0.0
    %1111 = vadd.xlane.f32.xlu0 %v1110
    %v1112 = vpop.xlane.xlu0 %1111
    %v1113 = vsel %vm986, %v1072, 0.0
    %1114 = vadd.xlane.f32.xlu0 %v1113
    %v1115 = vpop.xlane.xlu0 %1114
    %v1116 = vsel %vm986, %v1074, 0.0
    %1117 = vadd.xlane.f32.xlu0 %v1116
    %v1118 = vpop.xlane.xlu0 %1117
    %v1119 = vsel %vm986, %v1076, 0.0
    %1120 = vadd.xlane.f32.xlu0 %v1119
    %v1121 = vpop.xlane.xlu0 %1120
    %v1122 = vsel %vm986, %v1078, 0.0
    %1123 = vadd.xlane.f32.xlu0 %v1122
    %v1124 = vpop.xlane.xlu0 %1123
    %v1125 = vsel %vm986, %v1080, 0.0
    %1126 = vadd.xlane.f32.xlu0 %v1125
    %v1127 = vpop.xlane.xlu0 %1126
    %v1128 = vsel %vm986, %v1082, 0.0
    %1129 = vadd.xlane.f32.xlu0 %v1128
    %v1130 = vpop.xlane.xlu0 %1129
    %v1131 = vrcp.pop %v1085
    %v1132 = vmul.f32 %v1052, %v1131
    %v1133 = vrcp.pop %v1088
    %v1134 = vmul.f32 %v1054, %v1133
    %v1135 = vrcp.pop %v1091
    %v1136 = vmul.f32 %v1056, %v1135
    %v1137 = vrcp.pop %v1094
    %v1138 = vmul.f32 %v1058, %v1137
    %v1139 = vrcp.pop %v1097
    %v1140 = vmul.f32 %v1060, %v1139
    %v1141 = vrcp.pop %v1100
    %v1142 = vmul.f32 %v1062, %v1141
    %v1143 = vrcp.pop %v1103
    %v1144 = vmul.f32 %v1064, %v1143
    %v1145 = vrcp.pop %v1106
    %v1146 = vmul.f32 %v1066, %v1145
    %v1147 = vrcp.pop %v1109
    %v1148 = vmul.f32 %v1068, %v1147
    %v1149 = vrcp.pop %v1112
    %v1150 = vmul.f32 %v1070, %v1149
    %v1151 = vrcp.pop %v1115
    %v1152 = vmul.f32 %v1072, %v1151
    %v1153 = vrcp.pop %v1118
    %v1154 = vmul.f32 %v1074, %v1153
    %v1155 = vrcp.pop %v1121
    %v1156 = vmul.f32 %v1076, %v1155
    %v1157 = vrcp.pop %v1124
    %v1158 = vmul.f32 %v1078, %v1157
    %v1159 = vrcp.pop %v1127
    %v1160 = vmul.f32 %v1080, %v1159
    %v1161 = vrcp.pop %v1130
    %v1162 = vmul.f32 %v1082, %v1161
    %v1163 = vcombine.low %v151, %v240
    %v1164 = vcombine.high %v151, %v240
    %v1166 = vunpack.c.l.s4 1983009808
    %v1167 = vunpack.c.0.s8 %v1166
    %v1168 = vlaneseq
    %v1169 = vshrl.u32 %v1168, 7
    %v1170 = vsub.s32 %v1167, %v1169
    %v1171 = vrot.slane %v1163, %v1170
    %v1173 = vunpack.c.l.s4 1983009808
    %v1174 = vunpack.c.0.s8 %v1173
    %v1175 = vlaneseq
    %v1176 = vshrl.u32 %v1175, 7
    %v1177 = vsub.s32 %v1174, %v1176
    %v1178 = vrot.slane %v1164, %v1177
    %v1179 = vcombine.low %v153, %v242
    %v1180 = vcombine.high %v153, %v242
    %v1182 = vunpack.c.l.s4 1983009808
    %v1183 = vunpack.c.0.s8 %v1182
    %v1184 = vlaneseq
    %v1185 = vshrl.u32 %v1184, 7
    %v1186 = vsub.s32 %v1183, %v1185
    %v1187 = vrot.slane %v1179, %v1186
    %v1189 = vunpack.c.l.s4 1983009808
    %v1190 = vunpack.c.0.s8 %v1189
    %v1191 = vlaneseq
    %v1192 = vshrl.u32 %v1191, 7
    %v1193 = vsub.s32 %v1190, %v1192
    %v1194 = vrot.slane %v1180, %v1193
    %v1195 = vcombine.low %v1171, %v1187
    %v1196 = vcombine.high %v1171, %v1187
    %v1198 = vunpack.c.l.s4 1934713408
    %v1199 = vunpack.c.0.s8 %v1198
    %v1200 = vlaneseq
    %v1201 = vshrl.u32 %v1200, 7
    %v1202 = vsub.s32 %v1199, %v1201
    %v1203 = vrot.slane %v1195, %v1202
    %v1205 = vunpack.c.l.s4 1934713408
    %v1206 = vunpack.c.0.s8 %v1205
    %v1207 = vlaneseq
    %v1208 = vshrl.u32 %v1207, 7
    %v1209 = vsub.s32 %v1206, %v1208
    %v1210 = vrot.slane %v1196, %v1209
    %v1211 = vcombine.low %v1178, %v1194
    %v1212 = vcombine.high %v1178, %v1194
    %v1214 = vunpack.c.l.s4 1934713408
    %v1215 = vunpack.c.0.s8 %v1214
    %v1216 = vlaneseq
    %v1217 = vshrl.u32 %v1216, 7
    %v1218 = vsub.s32 %v1215, %v1217
    %v1219 = vrot.slane %v1211, %v1218
    %v1221 = vunpack.c.l.s4 1934713408
    %v1222 = vunpack.c.0.s8 %v1221
    %v1223 = vlaneseq
    %v1224 = vshrl.u32 %v1223, 7
    %v1225 = vsub.s32 %v1222, %v1224
    %v1226 = vrot.slane %v1212, %v1225
    %v1227 = vcombine.high %v1203, 0.0
    %v1228 = vcombine.high %v1210, 0.0
    %v1229 = vcombine.high %v1219, 0.0
    %v1230 = vcombine.high %v1226, 0.0
    %v1231 = vcombine.low %v157, %v246
    %v1232 = vcombine.high %v157, %v246
    %v1234 = vunpack.c.l.s4 1983009808
    %v1235 = vunpack.c.0.s8 %v1234
    %v1236 = vlaneseq
    %v1237 = vshrl.u32 %v1236, 7
    %v1238 = vsub.s32 %v1235, %v1237
    %v1239 = vrot.slane %v1231, %v1238
    %v1241 = vunpack.c.l.s4 1983009808
    %v1242 = vunpack.c.0.s8 %v1241
    %v1243 = vlaneseq
    %v1244 = vshrl.u32 %v1243, 7
    %v1245 = vsub.s32 %v1242, %v1244
    %v1246 = vrot.slane %v1232, %v1245
    %v1247 = vcombine.low %v159, %v248
    %v1248 = vcombine.high %v159, %v248
    %v1250 = vunpack.c.l.s4 1983009808
    %v1251 = vunpack.c.0.s8 %v1250
    %v1252 = vlaneseq
    %v1253 = vshrl.u32 %v1252, 7
    %v1254 = vsub.s32 %v1251, %v1253
    %v1255 = vrot.slane %v1247, %v1254
    %v1257 = vunpack.c.l.s4 1983009808
    %v1258 = vunpack.c.0.s8 %v1257
    %v1259 = vlaneseq
    %v1260 = vshrl.u32 %v1259, 7
    %v1261 = vsub.s32 %v1258, %v1260
    %v1262 = vrot.slane %v1248, %v1261
    %v1263 = vcombine.low %v1239, %v1255
    %v1264 = vcombine.high %v1239, %v1255
    %v1266 = vunpack.c.l.s4 1934713408
    %v1267 = vunpack.c.0.s8 %v1266
    %v1268 = vlaneseq
    %v1269 = vshrl.u32 %v1268, 7
    %v1270 = vsub.s32 %v1267, %v1269
    %v1271 = vrot.slane %v1263, %v1270
    %v1273 = vunpack.c.l.s4 1934713408
    %v1274 = vunpack.c.0.s8 %v1273
    %v1275 = vlaneseq
    %v1276 = vshrl.u32 %v1275, 7
    %v1277 = vsub.s32 %v1274, %v1276
    %v1278 = vrot.slane %v1264, %v1277
    %v1279 = vcombine.low %v1246, %v1262
    %v1280 = vcombine.high %v1246, %v1262
    %v1282 = vunpack.c.l.s4 1934713408
    %v1283 = vunpack.c.0.s8 %v1282
    %v1284 = vlaneseq
    %v1285 = vshrl.u32 %v1284, 7
    %v1286 = vsub.s32 %v1283, %v1285
    %v1287 = vrot.slane %v1279, %v1286
    %v1289 = vunpack.c.l.s4 1934713408
    %v1290 = vunpack.c.0.s8 %v1289
    %v1291 = vlaneseq
    %v1292 = vshrl.u32 %v1291, 7
    %v1293 = vsub.s32 %v1290, %v1292
    %v1294 = vrot.slane %v1280, %v1293
    %v1295 = vcombine.high %v1271, 0.0
    %v1296 = vcombine.high %v1278, 0.0
    %v1297 = vcombine.high %v1287, 0.0
    %v1298 = vcombine.high %v1294, 0.0
    %v1299 = vcombine.low %v163, %v252
    %v1300 = vcombine.high %v163, %v252
    %v1302 = vunpack.c.l.s4 1983009808
    %v1303 = vunpack.c.0.s8 %v1302
    %v1304 = vlaneseq
    %v1305 = vshrl.u32 %v1304, 7
    %v1306 = vsub.s32 %v1303, %v1305
    %v1307 = vrot.slane %v1299, %v1306
    %v1309 = vunpack.c.l.s4 1983009808
    %v1310 = vunpack.c.0.s8 %v1309
    %v1311 = vlaneseq
    %v1312 = vshrl.u32 %v1311, 7
    %v1313 = vsub.s32 %v1310, %v1312
    %v1314 = vrot.slane %v1300, %v1313
    %v1315 = vcombine.low %v165, %v254
    %v1316 = vcombine.high %v165, %v254
    %v1318 = vunpack.c.l.s4 1983009808
    %v1319 = vunpack.c.0.s8 %v1318
    %v1320 = vlaneseq
    %v1321 = vshrl.u32 %v1320, 7
    %v1322 = vsub.s32 %v1319, %v1321
    %v1323 = vrot.slane %v1315, %v1322
    %v1325 = vunpack.c.l.s4 1983009808
    %v1326 = vunpack.c.0.s8 %v1325
    %v1327 = vlaneseq
    %v1328 = vshrl.u32 %v1327, 7
    %v1329 = vsub.s32 %v1326, %v1328
    %v1330 = vrot.slane %v1316, %v1329
    %v1331 = vcombine.low %v1307, %v1323
    %v1332 = vcombine.high %v1307, %v1323
    %v1334 = vunpack.c.l.s4 1934713408
    %v1335 = vunpack.c.0.s8 %v1334
    %v1336 = vlaneseq
    %v1337 = vshrl.u32 %v1336, 7
    %v1338 = vsub.s32 %v1335, %v1337
    %v1339 = vrot.slane %v1331, %v1338
    %v1341 = vunpack.c.l.s4 1934713408
    %v1342 = vunpack.c.0.s8 %v1341
    %v1343 = vlaneseq
    %v1344 = vshrl.u32 %v1343, 7
    %v1345 = vsub.s32 %v1342, %v1344
    %v1346 = vrot.slane %v1332, %v1345
    %v1347 = vcombine.low %v1314, %v1330
    %v1348 = vcombine.high %v1314, %v1330
    %v1350 = vunpack.c.l.s4 1934713408
    %v1351 = vunpack.c.0.s8 %v1350
    %v1352 = vlaneseq
    %v1353 = vshrl.u32 %v1352, 7
    %v1354 = vsub.s32 %v1351, %v1353
    %v1355 = vrot.slane %v1347, %v1354
    %v1357 = vunpack.c.l.s4 1934713408
    %v1358 = vunpack.c.0.s8 %v1357
    %v1359 = vlaneseq
    %v1360 = vshrl.u32 %v1359, 7
    %v1361 = vsub.s32 %v1358, %v1360
    %v1362 = vrot.slane %v1348, %v1361
    %v1363 = vcombine.high %v1339, 0.0
    %v1364 = vcombine.high %v1346, 0.0
    %v1365 = vcombine.high %v1355, 0.0
    %v1366 = vcombine.high %v1362, 0.0
    %v1367 = vcombine.low %v169, %v258
    %v1368 = vcombine.high %v169, %v258
    %v1370 = vunpack.c.l.s4 1983009808
    %v1371 = vunpack.c.0.s8 %v1370
    %v1372 = vlaneseq
    %v1373 = vshrl.u32 %v1372, 7
    %v1374 = vsub.s32 %v1371, %v1373
    %v1375 = vrot.slane %v1367, %v1374
    %v1377 = vunpack.c.l.s4 1983009808
    %v1378 = vunpack.c.0.s8 %v1377
    %v1379 = vlaneseq
    %v1380 = vshrl.u32 %v1379, 7
    %v1381 = vsub.s32 %v1378, %v1380
    %v1382 = vrot.slane %v1368, %v1381
    %v1383 = vcombine.low %v171, %v260
    %v1384 = vcombine.high %v171, %v260
    %v1386 = vunpack.c.l.s4 1983009808
    %v1387 = vunpack.c.0.s8 %v1386
    %v1388 = vlaneseq
    %v1389 = vshrl.u32 %v1388, 7
    %v1390 = vsub.s32 %v1387, %v1389
    %v1391 = vrot.slane %v1383, %v1390
    %v1393 = vunpack.c.l.s4 1983009808
    %v1394 = vunpack.c.0.s8 %v1393
    %v1395 = vlaneseq
    %v1396 = vshrl.u32 %v1395, 7
    %v1397 = vsub.s32 %v1394, %v1396
    %v1398 = vrot.slane %v1384, %v1397
    %v1399 = vcombine.low %v1375, %v1391
    %v1400 = vcombine.high %v1375, %v1391
    %v1402 = vunpack.c.l.s4 1934713408
    %v1403 = vunpack.c.0.s8 %v1402
    %v1404 = vlaneseq
    %v1405 = vshrl.u32 %v1404, 7
    %v1406 = vsub.s32 %v1403, %v1405
    %v1407 = vrot.slane %v1399, %v1406
    %v1409 = vunpack.c.l.s4 1934713408
    %v1410 = vunpack.c.0.s8 %v1409
    %v1411 = vlaneseq
    %v1412 = vshrl.u32 %v1411, 7
    %v1413 = vsub.s32 %v1410, %v1412
    %v1414 = vrot.slane %v1400, %v1413
    %v1415 = vcombine.low %v1382, %v1398
    %v1416 = vcombine.high %v1382, %v1398
    %v1418 = vunpack.c.l.s4 1934713408
    %v1419 = vunpack.c.0.s8 %v1418
    %v1420 = vlaneseq
    %v1421 = vshrl.u32 %v1420, 7
    %v1422 = vsub.s32 %v1419, %v1421
    %v1423 = vrot.slane %v1415, %v1422
    %v1425 = vunpack.c.l.s4 1934713408
    %v1426 = vunpack.c.0.s8 %v1425
    %v1427 = vlaneseq
    %v1428 = vshrl.u32 %v1427, 7
    %v1429 = vsub.s32 %v1426, %v1428
    %v1430 = vrot.slane %v1416, %v1429
    %v1431 = vcombine.high %v1407, 0.0
    %v1432 = vcombine.high %v1414, 0.0
    %v1433 = vcombine.high %v1423, 0.0
    %v1434 = vcombine.high %v1430, 0.0
    %v1435 = vcombine.low %v1203, %v1210
    %v1437 = vunpack.c.l.s4 1983009808
    %v1438 = vunpack.c.0.s8 %v1437
    %v1439 = vlaneseq
    %v1440 = vshrl.u32 %v1439, 7
    %v1441 = vsub.s32 %v1438, %v1440
    %v1442 = vrot.slane %v1435, %v1441
    %v1443 = vcombine.low %v1227, %v1228
    %v1445 = vunpack.c.l.s4 1983009808
    %v1446 = vunpack.c.0.s8 %v1445
    %v1447 = vlaneseq
    %v1448 = vshrl.u32 %v1447, 7
    %v1449 = vsub.s32 %v1446, %v1448
    %v1450 = vrot.slane %v1443, %v1449
    %v1451 = vcombine.low %v1219, %v1226
    %v1453 = vunpack.c.l.s4 1983009808
    %v1454 = vunpack.c.0.s8 %v1453
    %v1455 = vlaneseq
    %v1456 = vshrl.u32 %v1455, 7
    %v1457 = vsub.s32 %v1454, %v1456
    %v1458 = vrot.slane %v1451, %v1457
    %v1459 = vcombine.low %v1229, %v1230
    %v1461 = vunpack.c.l.s4 1983009808
    %v1462 = vunpack.c.0.s8 %v1461
    %v1463 = vlaneseq
    %v1464 = vshrl.u32 %v1463, 7
    %v1465 = vsub.s32 %v1462, %v1464
    %v1466 = vrot.slane %v1459, %v1465
    %v1467 = vcombine.low %v1442, %v1450
    %v1468 = vcombine.high %v1442, %v1450
    %v1470 = vunpack.c.l.s4 1934713408
    %v1471 = vunpack.c.0.s8 %v1470
    %v1472 = vlaneseq
    %v1473 = vshrl.u32 %v1472, 7
    %v1474 = vsub.s32 %v1471, %v1473
    %v1475 = vrot.slane %v1467, %v1474
    %v1477 = vunpack.c.l.s4 1934713408
    %v1478 = vunpack.c.0.s8 %v1477
    %v1479 = vlaneseq
    %v1480 = vshrl.u32 %v1479, 7
    %v1481 = vsub.s32 %v1478, %v1480
    %v1482 = vrot.slane %v1468, %v1481
    %v1483 = vcombine.low %v1458, %v1466
    %v1484 = vcombine.high %v1458, %v1466
    %v1486 = vunpack.c.l.s4 1934713408
    %v1487 = vunpack.c.0.s8 %v1486
    %v1488 = vlaneseq
    %v1489 = vshrl.u32 %v1488, 7
    %v1490 = vsub.s32 %v1487, %v1489
    %v1491 = vrot.slane %v1483, %v1490
    %v1493 = vunpack.c.l.s4 1934713408
    %v1494 = vunpack.c.0.s8 %v1493
    %v1495 = vlaneseq
    %v1496 = vshrl.u32 %v1495, 7
    %v1497 = vsub.s32 %v1494, %v1496
    %v1498 = vrot.slane %v1484, %v1497
    %v1499 = vcombine.low %v1475, %v1491
    %v1500 = vcombine.high %v1475, %v1491
    %v1501 = vcombine.low %v1482, %v1498
    %v1502 = vcombine.high %v1482, %v1498
    %v1503 = vcombine.low %v1271, %v1278
    %v1505 = vunpack.c.l.s4 1983009808
    %v1506 = vunpack.c.0.s8 %v1505
    %v1507 = vlaneseq
    %v1508 = vshrl.u32 %v1507, 7
    %v1509 = vsub.s32 %v1506, %v1508
    %v1510 = vrot.slane %v1503, %v1509
    %v1511 = vcombine.low %v1295, %v1296
    %v1513 = vunpack.c.l.s4 1983009808
    %v1514 = vunpack.c.0.s8 %v1513
    %v1515 = vlaneseq
    %v1516 = vshrl.u32 %v1515, 7
    %v1517 = vsub.s32 %v1514, %v1516
    %v1518 = vrot.slane %v1511, %v1517
    %v1519 = vcombine.low %v1287, %v1294
    %v1521 = vunpack.c.l.s4 1983009808
    %v1522 = vunpack.c.0.s8 %v1521
    %v1523 = vlaneseq
    %v1524 = vshrl.u32 %v1523, 7
    %v1525 = vsub.s32 %v1522, %v1524
    %v1526 = vrot.slane %v1519, %v1525
    %v1527 = vcombine.low %v1297, %v1298
    %v1529 = vunpack.c.l.s4 1983009808
    %v1530 = vunpack.c.0.s8 %v1529
    %v1531 = vlaneseq
    %v1532 = vshrl.u32 %v1531, 7
    %v1533 = vsub.s32 %v1530, %v1532
    %v1534 = vrot.slane %v1527, %v1533
    %v1535 = vcombine.low %v1510, %v1518
    %v1536 = vcombine.high %v1510, %v1518
    %v1538 = vunpack.c.l.s4 1934713408
    %v1539 = vunpack.c.0.s8 %v1538
    %v1540 = vlaneseq
    %v1541 = vshrl.u32 %v1540, 7
    %v1542 = vsub.s32 %v1539, %v1541
    %v1543 = vrot.slane %v1535, %v1542
    %v1545 = vunpack.c.l.s4 1934713408
    %v1546 = vunpack.c.0.s8 %v1545
    %v1547 = vlaneseq
    %v1548 = vshrl.u32 %v1547, 7
    %v1549 = vsub.s32 %v1546, %v1548
    %v1550 = vrot.slane %v1536, %v1549
    %v1551 = vcombine.low %v1526, %v1534
    %v1552 = vcombine.high %v1526, %v1534
    %v1554 = vunpack.c.l.s4 1934713408
    %v1555 = vunpack.c.0.s8 %v1554
    %v1556 = vlaneseq
    %v1557 = vshrl.u32 %v1556, 7
    %v1558 = vsub.s32 %v1555, %v1557
    %v1559 = vrot.slane %v1551, %v1558
    %v1561 = vunpack.c.l.s4 1934713408
    %v1562 = vunpack.c.0.s8 %v1561
    %v1563 = vlaneseq
    %v1564 = vshrl.u32 %v1563, 7
    %v1565 = vsub.s32 %v1562, %v1564
    %v1566 = vrot.slane %v1552, %v1565
    %v1567 = vcombine.low %v1543, %v1559
    %v1568 = vcombine.high %v1543, %v1559
    %v1569 = vcombine.low %v1550, %v1566
    %v1570 = vcombine.high %v1550, %v1566
    %v1571 = vcombine.low %v1339, %v1346
    %v1573 = vunpack.c.l.s4 1983009808
    %v1574 = vunpack.c.0.s8 %v1573
    %v1575 = vlaneseq
    %v1576 = vshrl.u32 %v1575, 7
    %v1577 = vsub.s32 %v1574, %v1576
    %v1578 = vrot.slane %v1571, %v1577
    %v1579 = vcombine.low %v1363, %v1364
    %v1581 = vunpack.c.l.s4 1983009808
    %v1582 = vunpack.c.0.s8 %v1581
    %v1583 = vlaneseq
    %v1584 = vshrl.u32 %v1583, 7
    %v1585 = vsub.s32 %v1582, %v1584
    %v1586 = vrot.slane %v1579, %v1585
    %v1587 = vcombine.low %v1355, %v1362
    %v1589 = vunpack.c.l.s4 1983009808
    %v1590 = vunpack.c.0.s8 %v1589
    %v1591 = vlaneseq
    %v1592 = vshrl.u32 %v1591, 7
    %v1593 = vsub.s32 %v1590, %v1592
    %v1594 = vrot.slane %v1587, %v1593
    %v1595 = vcombine.low %v1365, %v1366
    %v1597 = vunpack.c.l.s4 1983009808
    %v1598 = vunpack.c.0.s8 %v1597
    %v1599 = vlaneseq
    %v1600 = vshrl.u32 %v1599, 7
    %v1601 = vsub.s32 %v1598, %v1600
    %v1602 = vrot.slane %v1595, %v1601
    %v1603 = vcombine.low %v1578, %v1586
    %v1604 = vcombine.high %v1578, %v1586
    %v1606 = vunpack.c.l.s4 1934713408
    %v1607 = vunpack.c.0.s8 %v1606
    %v1608 = vlaneseq
    %v1609 = vshrl.u32 %v1608, 7
    %v1610 = vsub.s32 %v1607, %v1609
    %v1611 = vrot.slane %v1603, %v1610
    %v1613 = vunpack.c.l.s4 1934713408
    %v1614 = vunpack.c.0.s8 %v1613
    %v1615 = vlaneseq
    %v1616 = vshrl.u32 %v1615, 7
    %v1617 = vsub.s32 %v1614, %v1616
    %v1618 = vrot.slane %v1604, %v1617
    %v1619 = vcombine.low %v1594, %v1602
    %v1620 = vcombine.high %v1594, %v1602
    %v1622 = vunpack.c.l.s4 1934713408
    %v1623 = vunpack.c.0.s8 %v1622
    %v1624 = vlaneseq
    %v1625 = vshrl.u32 %v1624, 7
    %v1626 = vsub.s32 %v1623, %v1625
    %v1627 = vrot.slane %v1619, %v1626
    %v1629 = vunpack.c.l.s4 1934713408
    %v1630 = vunpack.c.0.s8 %v1629
    %v1631 = vlaneseq
    %v1632 = vshrl.u32 %v1631, 7
    %v1633 = vsub.s32 %v1630, %v1632
    %v1634 = vrot.slane %v1620, %v1633
    %v1635 = vcombine.low %v1611, %v1627
    %v1636 = vcombine.high %v1611, %v1627
    %v1637 = vcombine.low %v1618, %v1634
    %v1638 = vcombine.high %v1618, %v1634
    %v1639 = vcombine.low %v1407, %v1414
    %v1641 = vunpack.c.l.s4 1983009808
    %v1642 = vunpack.c.0.s8 %v1641
    %v1643 = vlaneseq
    %v1644 = vshrl.u32 %v1643, 7
    %v1645 = vsub.s32 %v1642, %v1644
    %v1646 = vrot.slane %v1639, %v1645
    %v1647 = vcombine.low %v1431, %v1432
    %v1649 = vunpack.c.l.s4 1983009808
    %v1650 = vunpack.c.0.s8 %v1649
    %v1651 = vlaneseq
    %v1652 = vshrl.u32 %v1651, 7
    %v1653 = vsub.s32 %v1650, %v1652
    %v1654 = vrot.slane %v1647, %v1653
    %v1655 = vcombine.low %v1423, %v1430
    %v1657 = vunpack.c.l.s4 1983009808
    %v1658 = vunpack.c.0.s8 %v1657
    %v1659 = vlaneseq
    %v1660 = vshrl.u32 %v1659, 7
    %v1661 = vsub.s32 %v1658, %v1660
    %v1662 = vrot.slane %v1655, %v1661
    %v1663 = vcombine.low %v1433, %v1434
    %v1665 = vunpack.c.l.s4 1983009808
    %v1666 = vunpack.c.0.s8 %v1665
    %v1667 = vlaneseq
    %v1668 = vshrl.u32 %v1667, 7
    %v1669 = vsub.s32 %v1666, %v1668
    %v1670 = vrot.slane %v1663, %v1669
    %v1671 = vcombine.low %v1646, %v1654
    %v1672 = vcombine.high %v1646, %v1654
    %v1674 = vunpack.c.l.s4 1934713408
    %v1675 = vunpack.c.0.s8 %v1674
    %v1676 = vlaneseq
    %v1677 = vshrl.u32 %v1676, 7
    %v1678 = vsub.s32 %v1675, %v1677
    %v1679 = vrot.slane %v1671, %v1678
    %v1681 = vunpack.c.l.s4 1934713408
    %v1682 = vunpack.c.0.s8 %v1681
    %v1683 = vlaneseq
    %v1684 = vshrl.u32 %v1683, 7
    %v1685 = vsub.s32 %v1682, %v1684
    %v1686 = vrot.slane %v1672, %v1685
    %v1687 = vcombine.low %v1662, %v1670
    %v1688 = vcombine.high %v1662, %v1670
    %v1690 = vunpack.c.l.s4 1934713408
    %v1691 = vunpack.c.0.s8 %v1690
    %v1692 = vlaneseq
    %v1693 = vshrl.u32 %v1692, 7
    %v1694 = vsub.s32 %v1691, %v1693
    %v1695 = vrot.slane %v1687, %v1694
    %v1697 = vunpack.c.l.s4 1934713408
    %v1698 = vunpack.c.0.s8 %v1697
    %v1699 = vlaneseq
    %v1700 = vshrl.u32 %v1699, 7
    %v1701 = vsub.s32 %v1698, %v1700
    %v1702 = vrot.slane %v1688, %v1701
    %v1703 = vcombine.low %v1679, %v1695
    %v1704 = vcombine.high %v1679, %v1695
    %v1705 = vcombine.low %v1686, %v1702
    %v1706 = vcombine.high %v1686, %v1702
    %v1708 = vsel %vm986, %v1132, 0
    %1710 = vmatprep.subr.mxu0 0.0
    %1711 = vmatpush1.msra.mxu0 %v1499
    %1712 = vmatprep.subr.mxu0 0.0
    %1713 = vmatpush1.msra.mxu0 0.0
    %1714 = vmatprep.subr.mxu0 0.0
    %1715 = vmatpush1.msra.mxu0 0.0
    %1716 = vmatprep.subr.mxu0 0.0
    %1717 = vmatpush1.msra.mxu0 0.0
    %1718 = vmatprep.subr.mxu0 0.0
    %1719 = vmatpush1.msra.mxu0 0.0
    %1720 = vmatprep.subr.mxu0 0.0
    %1721 = vmatpush1.msra.mxu0 0.0
    %1722 = vmatprep.subr.mxu0 0.0
    %1723 = vmatpush1.msra.mxu0 0.0
    %1724 = vmatprep.subr.mxu0 0.0
    %1725 = vmatpush1.msra.mxu0 0.0
    %1726 = vmatprep.subr.mxu0 0.0
    %1727 = vmatpush1.msra.mxu0 0.0
    %1728 = vmatprep.subr.mxu0 0.0
    %1729 = vmatpush1.msra.mxu0 0.0
    %1730 = vmatprep.subr.mxu0 0.0
    %1731 = vmatpush1.msra.mxu0 0.0
    %1732 = vmatprep.subr.mxu0 0.0
    %1733 = vmatpush1.msra.mxu0 0.0
    %1734 = vmatprep.subr.mxu0 0.0
    %1735 = vmatpush1.msra.mxu0 0.0
    %1736 = vmatprep.subr.mxu0 0.0
    %1737 = vmatpush1.msra.mxu0 0.0
    %1738 = vmatprep.subr.mxu0 0.0
    %1739 = vmatpush1.msra.mxu0 0.0
    %1740 = vmatprep.subr.mxu0 0.0
    %1741 = vmatpush1.msra.mxu0 0.0
    %1742 = vmatprep.subr.mxu0 0.0
    %1743 = vmatpush1.msra.mxu0 0.0
    %1744 = vmatprep.subr.mxu0 0.0
    %1745 = vmatpush1.msra.mxu0 0.0
    %1746 = vmatprep.subr.mxu0 0.0
    %1747 = vmatpush1.msra.mxu0 0.0
    %1748 = vmatprep.subr.mxu0 0.0
    %1749 = vmatpush1.msra.mxu0 0.0
    %1750 = vmatprep.subr.mxu0 0.0
    %1751 = vmatpush1.msra.mxu0 0.0
    %1752 = vmatprep.subr.mxu0 0.0
    %1753 = vmatpush1.msra.mxu0 0.0
    %1754 = vmatprep.subr.mxu0 0.0
    %1755 = vmatpush1.msra.mxu0 0.0
    %1756 = vmatprep.subr.mxu0 0.0
    %1757 = vmatpush1.msra.mxu0 0.0
    %1758 = vmatprep.subr.mxu0 0.0
    %1759 = vmatpush1.msra.mxu0 0.0
    %1760 = vmatprep.subr.mxu0 0.0
    %1761 = vmatpush1.msra.mxu0 0.0
    %1762 = vmatprep.subr.mxu0 0.0
    %1763 = vmatpush1.msra.mxu0 0.0
    %1764 = vmatprep.subr.mxu0 0.0
    %1765 = vmatpush1.msra.mxu0 0.0
    %1766 = vmatprep.subr.mxu0 0.0
    %1767 = vmatpush1.msra.mxu0 0.0
    %1768 = vmatprep.subr.mxu0 0.0
    %1769 = vmatpush1.msra.mxu0 0.0
    %1770 = vmatprep.subr.mxu0 0.0
    %1771 = vmatpush1.msra.mxu0 0.0
    %1772 = vmatprep.subr.mxu0 0.0
    %1773 = vmatpush1.msra.mxu0 0.0
    %1774 = vmatprep.mubr.f32.mxu0 0.0
    %1775 = vmatmul.mubr.f32.gmra.mrb[0].mxu0 %v1708
    %v1776 = vpop.f32.mrb[0].mxu0
    %v1777 = vadd.f32 0.0, %v1776
    %v1778 = vpop.f32.mrb[0].mxu0
    %1779 = vdwg.mxu0
    %v1781 = vsel %vm986, %v1134, 0
    %1783 = vmatprep.subr.mxu0 0.0
    %1784 = vmatpush1.msra.mxu0 %v1500
    %1785 = vmatprep.subr.mxu0 0.0
    %1786 = vmatpush1.msra.mxu0 0.0
    %1787 = vmatprep.subr.mxu0 0.0
    %1788 = vmatpush1.msra.mxu0 0.0
    %1789 = vmatprep.subr.mxu0 0.0
    %1790 = vmatpush1.msra.mxu0 0.0
    %1791 = vmatprep.subr.mxu0 0.0
    %1792 = vmatpush1.msra.mxu0 0.0
    %1793 = vmatprep.subr.mxu0 0.0
    %1794 = vmatpush1.msra.mxu0 0.0
    %1795 = vmatprep.subr.mxu0 0.0
    %1796 = vmatpush1.msra.mxu0 0.0
    %1797 = vmatprep.subr.mxu0 0.0
    %1798 = vmatpush1.msra.mxu0 0.0
    %1799 = vmatprep.subr.mxu0 0.0
    %1800 = vmatpush1.msra.mxu0 0.0
    %1801 = vmatprep.subr.mxu0 0.0
    %1802 = vmatpush1.msra.mxu0 0.0
    %1803 = vmatprep.subr.mxu0 0.0
    %1804 = vmatpush1.msra.mxu0 0.0
    %1805 = vmatprep.subr.mxu0 0.0
    %1806 = vmatpush1.msra.mxu0 0.0
    %1807 = vmatprep.subr.mxu0 0.0
    %1808 = vmatpush1.msra.mxu0 0.0
    %1809 = vmatprep.subr.mxu0 0.0
    %1810 = vmatpush1.msra.mxu0 0.0
    %1811 = vmatprep.subr.mxu0 0.0
    %1812 = vmatpush1.msra.mxu0 0.0
    %1813 = vmatprep.subr.mxu0 0.0
    %1814 = vmatpush1.msra.mxu0 0.0
    %1815 = vmatprep.subr.mxu0 0.0
    %1816 = vmatpush1.msra.mxu0 0.0
    %1817 = vmatprep.subr.mxu0 0.0
    %1818 = vmatpush1.msra.mxu0 0.0
    %1819 = vmatprep.subr.mxu0 0.0
    %1820 = vmatpush1.msra.mxu0 0.0
    %1821 = vmatprep.subr.mxu0 0.0
    %1822 = vmatpush1.msra.mxu0 0.0
    %1823 = vmatprep.subr.mxu0 0.0
    %1824 = vmatpush1.msra.mxu0 0.0
    %1825 = vmatprep.subr.mxu0 0.0
    %1826 = vmatpush1.msra.mxu0 0.0
    %1827 = vmatprep.subr.mxu0 0.0
    %1828 = vmatpush1.msra.mxu0 0.0
    %1829 = vmatprep.subr.mxu0 0.0
    %1830 = vmatpush1.msra.mxu0 0.0
    %1831 = vmatprep.subr.mxu0 0.0
    %1832 = vmatpush1.msra.mxu0 0.0
    %1833 = vmatprep.subr.mxu0 0.0
    %1834 = vmatpush1.msra.mxu0 0.0
    %1835 = vmatprep.subr.mxu0 0.0
    %1836 = vmatpush1.msra.mxu0 0.0
    %1837 = vmatprep.subr.mxu0 0.0
    %1838 = vmatpush1.msra.mxu0 0.0
    %1839 = vmatprep.subr.mxu0 0.0
    %1840 = vmatpush1.msra.mxu0 0.0
    %1841 = vmatprep.subr.mxu0 0.0
    %1842 = vmatpush1.msra.mxu0 0.0
    %1843 = vmatprep.subr.mxu0 0.0
    %1844 = vmatpush1.msra.mxu0 0.0
    %1845 = vmatprep.subr.mxu0 0.0
    %1846 = vmatpush1.msra.mxu0 0.0
    %1847 = vmatprep.mubr.f32.mxu0 0.0
    %1848 = vmatmul.mubr.f32.gmra.mrb[0].mxu0 %v1781
    %v1849 = vpop.f32.mrb[0].mxu0
    %v1850 = vadd.f32 0.0, %v1849
    %v1851 = vpop.f32.mrb[0].mxu0
    %1852 = vdwg.mxu0
    %v1854 = vsel %vm986, %v1136, 0
    %1856 = vmatprep.subr.mxu0 0.0
    %1857 = vmatpush1.msra.mxu0 %v1501
    %1858 = vmatprep.subr.mxu0 0.0
    %1859 = vmatpush1.msra.mxu0 0.0
    %1860 = vmatprep.subr.mxu0 0.0
    %1861 = vmatpush1.msra.mxu0 0.0
    %1862 = vmatprep.subr.mxu0 0.0
    %1863 = vmatpush1.msra.mxu0 0.0
    %1864 = vmatprep.subr.mxu0 0.0
    %1865 = vmatpush1.msra.mxu0 0.0
    %1866 = vmatprep.subr.mxu0 0.0
    %1867 = vmatpush1.msra.mxu0 0.0
    %1868 = vmatprep.subr.mxu0 0.0
    %1869 = vmatpush1.msra.mxu0 0.0
    %1870 = vmatprep.subr.mxu0 0.0
    %1871 = vmatpush1.msra.mxu0 0.0
    %1872 = vmatprep.subr.mxu0 0.0
    %1873 = vmatpush1.msra.mxu0 0.0
    %1874 = vmatprep.subr.mxu0 0.0
    %1875 = vmatpush1.msra.mxu0 0.0
    %1876 = vmatprep.subr.mxu0 0.0
    %1877 = vmatpush1.msra.mxu0 0.0
    %1878 = vmatprep.subr.mxu0 0.0
    %1879 = vmatpush1.msra.mxu0 0.0
    %1880 = vmatprep.subr.mxu0 0.0
    %1881 = vmatpush1.msra.mxu0 0.0
    %1882 = vmatprep.subr.mxu0 0.0
    %1883 = vmatpush1.msra.mxu0 0.0
    %1884 = vmatprep.subr.mxu0 0.0
    %1885 = vmatpush1.msra.mxu0 0.0
    %1886 = vmatprep.subr.mxu0 0.0
    %1887 = vmatpush1.msra.mxu0 0.0
    %1888 = vmatprep.subr.mxu0 0.0
    %1889 = vmatpush1.msra.mxu0 0.0
    %1890 = vmatprep.subr.mxu0 0.0
    %1891 = vmatpush1.msra.mxu0 0.0
    %1892 = vmatprep.subr.mxu0 0.0
    %1893 = vmatpush1.msra.mxu0 0.0
    %1894 = vmatprep.subr.mxu0 0.0
    %1895 = vmatpush1.msra.mxu0 0.0
    %1896 = vmatprep.subr.mxu0 0.0
    %1897 = vmatpush1.msra.mxu0 0.0
    %1898 = vmatprep.subr.mxu0 0.0
    %1899 = vmatpush1.msra.mxu0 0.0
    %1900 = vmatprep.subr.mxu0 0.0
    %1901 = vmatpush1.msra.mxu0 0.0
    %1902 = vmatprep.subr.mxu0 0.0
    %1903 = vmatpush1.msra.mxu0 0.0
    %1904 = vmatprep.subr.mxu0 0.0
    %1905 = vmatpush1.msra.mxu0 0.0
    %1906 = vmatprep.subr.mxu0 0.0
    %1907 = vmatpush1.msra.mxu0 0.0
    %1908 = vmatprep.subr.mxu0 0.0
    %1909 = vmatpush1.msra.mxu0 0.0
    %1910 = vmatprep.subr.mxu0 0.0
    %1911 = vmatpush1.msra.mxu0 0.0
    %1912 = vmatprep.subr.mxu0 0.0
    %1913 = vmatpush1.msra.mxu0 0.0
    %1914 = vmatprep.subr.mxu0 0.0
    %1915 = vmatpush1.msra.mxu0 0.0
    %1916 = vmatprep.subr.mxu0 0.0
    %1917 = vmatpush1.msra.mxu0 0.0
    %1918 = vmatprep.subr.mxu0 0.0
    %1919 = vmatpush1.msra.mxu0 0.0
    %1920 = vmatprep.mubr.f32.mxu0 0.0
    %1921 = vmatmul.mubr.f32.gmra.mrb[0].mxu0 %v1854
    %v1922 = vpop.f32.mrb[0].mxu0
    %v1923 = vadd.f32 0.0, %v1922
    %v1924 = vpop.f32.mrb[0].mxu0
    %1925 = vdwg.mxu0
    %v1927 = vsel %vm986, %v1138, 0
    %1929 = vmatprep.subr.mxu0 0.0
    %1930 = vmatpush1.msra.mxu0 %v1502
    %1931 = vmatprep.subr.mxu0 0.0
    %1932 = vmatpush1.msra.mxu0 0.0
    %1933 = vmatprep.subr.mxu0 0.0
    %1934 = vmatpush1.msra.mxu0 0.0
    %1935 = vmatprep.subr.mxu0 0.0
    %1936 = vmatpush1.msra.mxu0 0.0
    %1937 = vmatprep.subr.mxu0 0.0
    %1938 = vmatpush1.msra.mxu0 0.0
    %1939 = vmatprep.subr.mxu0 0.0
    %1940 = vmatpush1.msra.mxu0 0.0
    %1941 = vmatprep.subr.mxu0 0.0
    %1942 = vmatpush1.msra.mxu0 0.0
    %1943 = vmatprep.subr.mxu0 0.0
    %1944 = vmatpush1.msra.mxu0 0.0
    %1945 = vmatprep.subr.mxu0 0.0
    %1946 = vmatpush1.msra.mxu0 0.0
    %1947 = vmatprep.subr.mxu0 0.0
    %1948 = vmatpush1.msra.mxu0 0.0
    %1949 = vmatprep.subr.mxu0 0.0
    %1950 = vmatpush1.msra.mxu0 0.0
    %1951 = vmatprep.subr.mxu0 0.0
    %1952 = vmatpush1.msra.mxu0 0.0
    %1953 = vmatprep.subr.mxu0 0.0
    %1954 = vmatpush1.msra.mxu0 0.0
    %1955 = vmatprep.subr.mxu0 0.0
    %1956 = vmatpush1.msra.mxu0 0.0
    %1957 = vmatprep.subr.mxu0 0.0
    %1958 = vmatpush1.msra.mxu0 0.0
    %1959 = vmatprep.subr.mxu0 0.0
    %1960 = vmatpush1.msra.mxu0 0.0
    %1961 = vmatprep.subr.mxu0 0.0
    %1962 = vmatpush1.msra.mxu0 0.0
    %1963 = vmatprep.subr.mxu0 0.0
    %1964 = vmatpush1.msra.mxu0 0.0
    %1965 = vmatprep.subr.mxu0 0.0
    %1966 = vmatpush1.msra.mxu0 0.0
    %1967 = vmatprep.subr.mxu0 0.0
    %1968 = vmatpush1.msra.mxu0 0.0
    %1969 = vmatprep.subr.mxu0 0.0
    %1970 = vmatpush1.msra.mxu0 0.0
    %1971 = vmatprep.subr.mxu0 0.0
    %1972 = vmatpush1.msra.mxu0 0.0
    %1973 = vmatprep.subr.mxu0 0.0
    %1974 = vmatpush1.msra.mxu0 0.0
    %1975 = vmatprep.subr.mxu0 0.0
    %1976 = vmatpush1.msra.mxu0 0.0
    %1977 = vmatprep.subr.mxu0 0.0
    %1978 = vmatpush1.msra.mxu0 0.0
    %1979 = vmatprep.subr.mxu0 0.0
    %1980 = vmatpush1.msra.mxu0 0.0
    %1981 = vmatprep.subr.mxu0 0.0
    %1982 = vmatpush1.msra.mxu0 0.0
    %1983 = vmatprep.subr.mxu0 0.0
    %1984 = vmatpush1.msra.mxu0 0.0
    %1985 = vmatprep.subr.mxu0 0.0
    %1986 = vmatpush1.msra.mxu0 0.0
    %1987 = vmatprep.subr.mxu0 0.0
    %1988 = vmatpush1.msra.mxu0 0.0
    %1989 = vmatprep.subr.mxu0 0.0
    %1990 = vmatpush1.msra.mxu0 0.0
    %1991 = vmatprep.subr.mxu0 0.0
    %1992 = vmatpush1.msra.mxu0 0.0
    %1993 = vmatprep.mubr.f32.mxu0 0.0
    %1994 = vmatmul.mubr.f32.gmra.mrb[0].mxu0 %v1927
    %v1995 = vpop.f32.mrb[0].mxu0
    %v1996 = vadd.f32 0.0, %v1995
    %v1997 = vpop.f32.mrb[0].mxu0
    %1998 = vdwg.mxu0
    %v2000 = vsel %vm986, %v1140, 0
    %2002 = vmatprep.subr.mxu0 0.0
    %2003 = vmatpush1.msra.mxu0 %v1567
    %2004 = vmatprep.subr.mxu0 0.0
    %2005 = vmatpush1.msra.mxu0 0.0
    %2006 = vmatprep.subr.mxu0 0.0
    %2007 = vmatpush1.msra.mxu0 0.0
    %2008 = vmatprep.subr.mxu0 0.0
    %2009 = vmatpush1.msra.mxu0 0.0
    %2010 = vmatprep.subr.mxu0 0.0
    %2011 = vmatpush1.msra.mxu0 0.0
    %2012 = vmatprep.subr.mxu0 0.0
    %2013 = vmatpush1.msra.mxu0 0.0
    %2014 = vmatprep.subr.mxu0 0.0
    %2015 = vmatpush1.msra.mxu0 0.0
    %2016 = vmatprep.subr.mxu0 0.0
    %2017 = vmatpush1.msra.mxu0 0.0
    %2018 = vmatprep.subr.mxu0 0.0
    %2019 = vmatpush1.msra.mxu0 0.0
    %2020 = vmatprep.subr.mxu0 0.0
    %2021 = vmatpush1.msra.mxu0 0.0
    %2022 = vmatprep.subr.mxu0 0.0
    %2023 = vmatpush1.msra.mxu0 0.0
    %2024 = vmatprep.subr.mxu0 0.0
    %2025 = vmatpush1.msra.mxu0 0.0
    %2026 = vmatprep.subr.mxu0 0.0
    %2027 = vmatpush1.msra.mxu0 0.0
    %2028 = vmatprep.subr.mxu0 0.0
    %2029 = vmatpush1.msra.mxu0 0.0
    %2030 = vmatprep.subr.mxu0 0.0
    %2031 = vmatpush1.msra.mxu0 0.0
    %2032 = vmatprep.subr.mxu0 0.0
    %2033 = vmatpush1.msra.mxu0 0.0
    %2034 = vmatprep.subr.mxu0 0.0
    %2035 = vmatpush1.msra.mxu0 0.0
    %2036 = vmatprep.subr.mxu0 0.0
    %2037 = vmatpush1.msra.mxu0 0.0
    %2038 = vmatprep.subr.mxu0 0.0
    %2039 = vmatpush1.msra.mxu0 0.0
    %2040 = vmatprep.subr.mxu0 0.0
    %2041 = vmatpush1.msra.mxu0 0.0
    %2042 = vmatprep.subr.mxu0 0.0
    %2043 = vmatpush1.msra.mxu0 0.0
    %2044 = vmatprep.subr.mxu0 0.0
    %2045 = vmatpush1.msra.mxu0 0.0
    %2046 = vmatprep.subr.mxu0 0.0
    %2047 = vmatpush1.msra.mxu0 0.0
    %2048 = vmatprep.subr.mxu0 0.0
    %2049 = vmatpush1.msra.mxu0 0.0
    %2050 = vmatprep.subr.mxu0 0.0
    %2051 = vmatpush1.msra.mxu0 0.0
    %2052 = vmatprep.subr.mxu0 0.0
    %2053 = vmatpush1.msra.mxu0 0.0
    %2054 = vmatprep.subr.mxu0 0.0
    %2055 = vmatpush1.msra.mxu0 0.0
    %2056 = vmatprep.subr.mxu0 0.0
    %2057 = vmatpush1.msra.mxu0 0.0
    %2058 = vmatprep.subr.mxu0 0.0
    %2059 = vmatpush1.msra.mxu0 0.0
    %2060 = vmatprep.subr.mxu0 0.0
    %2061 = vmatpush1.msra.mxu0 0.0
    %2062 = vmatprep.subr.mxu0 0.0
    %2063 = vmatpush1.msra.mxu0 0.0
    %2064 = vmatprep.subr.mxu0 0.0
    %2065 = vmatpush1.msra.mxu0 0.0
    %2066 = vmatprep.mubr.f32.mxu0 0.0
    %2067 = vmatmul.mubr.f32.gmra.mrb[0].mxu0 %v2000
    %v2068 = vpop.f32.mrb[0].mxu0
    %v2069 = vadd.f32 0.0, %v2068
    %v2070 = vpop.f32.mrb[0].mxu0
    %2071 = vdwg.mxu0
    %v2073 = vsel %vm986, %v1142, 0
    %2075 = vmatprep.subr.mxu0 0.0
    %2076 = vmatpush1.msra.mxu0 %v1568
    %2077 = vmatprep.subr.mxu0 0.0
    %2078 = vmatpush1.msra.mxu0 0.0
    %2079 = vmatprep.subr.mxu0 0.0
    %2080 = vmatpush1.msra.mxu0 0.0
    %2081 = vmatprep.subr.mxu0 0.0
    %2082 = vmatpush1.msra.mxu0 0.0
    %2083 = vmatprep.subr.mxu0 0.0
    %2084 = vmatpush1.msra.mxu0 0.0
    %2085 = vmatprep.subr.mxu0 0.0
    %2086 = vmatpush1.msra.mxu0 0.0
    %2087 = vmatprep.subr.mxu0 0.0
    %2088 = vmatpush1.msra.mxu0 0.0
    %2089 = vmatprep.subr.mxu0 0.0
    %2090 = vmatpush1.msra.mxu0 0.0
    %2091 = vmatprep.subr.mxu0 0.0
    %2092 = vmatpush1.msra.mxu0 0.0
    %2093 = vmatprep.subr.mxu0 0.0
    %2094 = vmatpush1.msra.mxu0 0.0
    %2095 = vmatprep.subr.mxu0 0.0
    %2096 = vmatpush1.msra.mxu0 0.0
    %2097 = vmatprep.subr.mxu0 0.0
    %2098 = vmatpush1.msra.mxu0 0.0
    %2099 = vmatprep.subr.mxu0 0.0
    %2100 = vmatpush1.msra.mxu0 0.0
    %2101 = vmatprep.subr.mxu0 0.0
    %2102 = vmatpush1.msra.mxu0 0.0
    %2103 = vmatprep.subr.mxu0 0.0
    %2104 = vmatpush1.msra.mxu0 0.0
    %2105 = vmatprep.subr.mxu0 0.0
    %2106 = vmatpush1.msra.mxu0 0.0
    %2107 = vmatprep.subr.mxu0 0.0
    %2108 = vmatpush1.msra.mxu0 0.0
    %2109 = vmatprep.subr.mxu0 0.0
    %2110 = vmatpush1.msra.mxu0 0.0
    %2111 = vmatprep.subr.mxu0 0.0
    %2112 = vmatpush1.msra.mxu0 0.0
    %2113 = vmatprep.subr.mxu0 0.0
    %2114 = vmatpush1.msra.mxu0 0.0
    %2115 = vmatprep.subr.mxu0 0.0
    %2116 = vmatpush1.msra.mxu0 0.0
    %2117 = vmatprep.subr.mxu0 0.0
    %2118 = vmatpush1.msra.mxu0 0.0
    %2119 = vmatprep.subr.mxu0 0.0
    %2120 = vmatpush1.msra.mxu0 0.0
    %2121 = vmatprep.subr.mxu0 0.0
    %2122 = vmatpush1.msra.mxu0 0.0
    %2123 = vmatprep.subr.mxu0 0.0
    %2124 = vmatpush1.msra.mxu0 0.0
    %2125 = vmatprep.subr.mxu0 0.0
    %2126 = vmatpush1.msra.mxu0 0.0
    %2127 = vmatprep.subr.mxu0 0.0
    %2128 = vmatpush1.msra.mxu0 0.0
    %2129 = vmatprep.subr.mxu0 0.0
    %2130 = vmatpush1.msra.mxu0 0.0
    %2131 = vmatprep.subr.mxu0 0.0
    %2132 = vmatpush1.msra.mxu0 0.0
    %2133 = vmatprep.subr.mxu0 0.0
    %2134 = vmatpush1.msra.mxu0 0.0
    %2135 = vmatprep.subr.mxu0 0.0
    %2136 = vmatpush1.msra.mxu0 0.0
    %2137 = vmatprep.subr.mxu0 0.0
    %2138 = vmatpush1.msra.mxu0 0.0
    %2139 = vmatprep.mubr.f32.mxu0 0.0
    %2140 = vmatmul.mubr.f32.gmra.mrb[0].mxu0 %v2073
    %v2141 = vpop.f32.mrb[0].mxu0
    %v2142 = vadd.f32 0.0, %v2141
    %v2143 = vpop.f32.mrb[0].mxu0
    %2144 = vdwg.mxu0
    %v2146 = vsel %vm986, %v1144, 0
    %2148 = vmatprep.subr.mxu0 0.0
    %2149 = vmatpush1.msra.mxu0 %v1569
    %2150 = vmatprep.subr.mxu0 0.0
    %2151 = vmatpush1.msra.mxu0 0.0
    %2152 = vmatprep.subr.mxu0 0.0
    %2153 = vmatpush1.msra.mxu0 0.0
    %2154 = vmatprep.subr.mxu0 0.0
    %2155 = vmatpush1.msra.mxu0 0.0
    %2156 = vmatprep.subr.mxu0 0.0
    %2157 = vmatpush1.msra.mxu0 0.0
    %2158 = vmatprep.subr.mxu0 0.0
    %2159 = vmatpush1.msra.mxu0 0.0
    %2160 = vmatprep.subr.mxu0 0.0
    %2161 = vmatpush1.msra.mxu0 0.0
    %2162 = vmatprep.subr.mxu0 0.0
    %2163 = vmatpush1.msra.mxu0 0.0
    %2164 = vmatprep.subr.mxu0 0.0
    %2165 = vmatpush1.msra.mxu0 0.0
    %2166 = vmatprep.subr.mxu0 0.0
    %2167 = vmatpush1.msra.mxu0 0.0
    %2168 = vmatprep.subr.mxu0 0.0
    %2169 = vmatpush1.msra.mxu0 0.0
    %2170 = vmatprep.subr.mxu0 0.0
    %2171 = vmatpush1.msra.mxu0 0.0
    %2172 = vmatprep.subr.mxu0 0.0
    %2173 = vmatpush1.msra.mxu0 0.0
    %2174 = vmatprep.subr.mxu0 0.0
    %2175 = vmatpush1.msra.mxu0 0.0
    %2176 = vmatprep.subr.mxu0 0.0
    %2177 = vmatpush1.msra.mxu0 0.0
    %2178 = vmatprep.subr.mxu0 0.0
    %2179 = vmatpush1.msra.mxu0 0.0
    %2180 = vmatprep.subr.mxu0 0.0
    %2181 = vmatpush1.msra.mxu0 0.0
    %2182 = vmatprep.subr.mxu0 0.0
    %2183 = vmatpush1.msra.mxu0 0.0
    %2184 = vmatprep.subr.mxu0 0.0
    %2185 = vmatpush1.msra.mxu0 0.0
    %2186 = vmatprep.subr.mxu0 0.0
    %2187 = vmatpush1.msra.mxu0 0.0
    %2188 = vmatprep.subr.mxu0 0.0
    %2189 = vmatpush1.msra.mxu0 0.0
    %2190 = vmatprep.subr.mxu0 0.0
    %2191 = vmatpush1.msra.mxu0 0.0
    %2192 = vmatprep.subr.mxu0 0.0
    %2193 = vmatpush1.msra.mxu0 0.0
    %2194 = vmatprep.subr.mxu0 0.0
    %2195 = vmatpush1.msra.mxu0 0.0
    %2196 = vmatprep.subr.mxu0 0.0
    %2197 = vmatpush1.msra.mxu0 0.0
    %2198 = vmatprep.subr.mxu0 0.0
    %2199 = vmatpush1.msra.mxu0 0.0
    %2200 = vmatprep.subr.mxu0 0.0
    %2201 = vmatpush1.msra.mxu0 0.0
    %2202 = vmatprep.subr.mxu0 0.0
    %2203 = vmatpush1.msra.mxu0 0.0
    %2204 = vmatprep.subr.mxu0 0.0
    %2205 = vmatpush1.msra.mxu0 0.0
    %2206 = vmatprep.subr.mxu0 0.0
    %2207 = vmatpush1.msra.mxu0 0.0
    %2208 = vmatprep.subr.mxu0 0.0
    %2209 = vmatpush1.msra.mxu0 0.0
    %2210 = vmatprep.subr.mxu0 0.0
    %2211 = vmatpush1.msra.mxu0 0.0
    %2212 = vmatprep.mubr.f32.mxu0 0.0
    %2213 = vmatmul.mubr.f32.gmra.mrb[0].mxu0 %v2146
    %v2214 = vpop.f32.mrb[0].mxu0
    %v2215 = vadd.f32 0.0, %v2214
    %v2216 = vpop.f32.mrb[0].mxu0
    %2217 = vdwg.mxu0
    %v2219 = vsel %vm986, %v1146, 0
    %2221 = vmatprep.subr.mxu0 0.0
    %2222 = vmatpush1.msra.mxu0 %v1570
    %2223 = vmatprep.subr.mxu0 0.0
    %2224 = vmatpush1.msra.mxu0 0.0
    %2225 = vmatprep.subr.mxu0 0.0
    %2226 = vmatpush1.msra.mxu0 0.0
    %2227 = vmatprep.subr.mxu0 0.0
    %2228 = vmatpush1.msra.mxu0 0.0
    %2229 = vmatprep.subr.mxu0 0.0
    %2230 = vmatpush1.msra.mxu0 0.0
    %2231 = vmatprep.subr.mxu0 0.0
    %2232 = vmatpush1.msra.mxu0 0.0
    %2233 = vmatprep.subr.mxu0 0.0
    %2234 = vmatpush1.msra.mxu0 0.0
    %2235 = vmatprep.subr.mxu0 0.0
    %2236 = vmatpush1.msra.mxu0 0.0
    %2237 = vmatprep.subr.mxu0 0.0
    %2238 = vmatpush1.msra.mxu0 0.0
    %2239 = vmatprep.subr.mxu0 0.0
    %2240 = vmatpush1.msra.mxu0 0.0
    %2241 = vmatprep.subr.mxu0 0.0
    %2242 = vmatpush1.msra.mxu0 0.0
    %2243 = vmatprep.subr.mxu0 0.0
    %2244 = vmatpush1.msra.mxu0 0.0
    %2245 = vmatprep.subr.mxu0 0.0
    %2246 = vmatpush1.msra.mxu0 0.0
    %2247 = vmatprep.subr.mxu0 0.0
    %2248 = vmatpush1.msra.mxu0 0.0
    %2249 = vmatprep.subr.mxu0 0.0
    %2250 = vmatpush1.msra.mxu0 0.0
    %2251 = vmatprep.subr.mxu0 0.0
    %2252 = vmatpush1.msra.mxu0 0.0
    %2253 = vmatprep.subr.mxu0 0.0
    %2254 = vmatpush1.msra.mxu0 0.0
    %2255 = vmatprep.subr.mxu0 0.0
    %2256 = vmatpush1.msra.mxu0 0.0
    %2257 = vmatprep.subr.mxu0 0.0
    %2258 = vmatpush1.msra.mxu0 0.0
    %2259 = vmatprep.subr.mxu0 0.0
    %2260 = vmatpush1.msra.mxu0 0.0
    %2261 = vmatprep.subr.mxu0 0.0
    %2262 = vmatpush1.msra.mxu0 0.0
    %2263 = vmatprep.subr.mxu0 0.0
    %2264 = vmatpush1.msra.mxu0 0.0
    %2265 = vmatprep.subr.mxu0 0.0
    %2266 = vmatpush1.msra.mxu0 0.0
    %2267 = vmatprep.subr.mxu0 0.0
    %2268 = vmatpush1.msra.mxu0 0.0
    %2269 = vmatprep.subr.mxu0 0.0
    %2270 = vmatpush1.msra.mxu0 0.0
    %2271 = vmatprep.subr.mxu0 0.0
    %2272 = vmatpush1.msra.mxu0 0.0
    %2273 = vmatprep.subr.mxu0 0.0
    %2274 = vmatpush1.msra.mxu0 0.0
    %2275 = vmatprep.subr.mxu0 0.0
    %2276 = vmatpush1.msra.mxu0 0.0
    %2277 = vmatprep.subr.mxu0 0.0
    %2278 = vmatpush1.msra.mxu0 0.0
    %2279 = vmatprep.subr.mxu0 0.0
    %2280 = vmatpush1.msra.mxu0 0.0
    %2281 = vmatprep.subr.mxu0 0.0
    %2282 = vmatpush1.msra.mxu0 0.0
    %2283 = vmatprep.subr.mxu0 0.0
    %2284 = vmatpush1.msra.mxu0 0.0
    %2285 = vmatprep.mubr.f32.mxu0 0.0
    %2286 = vmatmul.mubr.f32.gmra.mrb[0].mxu0 %v2219
    %v2287 = vpop.f32.mrb[0].mxu0
    %v2288 = vadd.f32 0.0, %v2287
    %v2289 = vpop.f32.mrb[0].mxu0
    %2290 = vdwg.mxu0
    %v2292 = vsel %vm986, %v1148, 0
    %2294 = vmatprep.subr.mxu0 0.0
    %2295 = vmatpush1.msra.mxu0 %v1635
    %2296 = vmatprep.subr.mxu0 0.0
    %2297 = vmatpush1.msra.mxu0 0.0
    %2298 = vmatprep.subr.mxu0 0.0
    %2299 = vmatpush1.msra.mxu0 0.0
    %2300 = vmatprep.subr.mxu0 0.0
    %2301 = vmatpush1.msra.mxu0 0.0
    %2302 = vmatprep.subr.mxu0 0.0
    %2303 = vmatpush1.msra.mxu0 0.0
    %2304 = vmatprep.subr.mxu0 0.0
    %2305 = vmatpush1.msra.mxu0 0.0
    %2306 = vmatprep.subr.mxu0 0.0
    %2307 = vmatpush1.msra.mxu0 0.0
    %2308 = vmatprep.subr.mxu0 0.0
    %2309 = vmatpush1.msra.mxu0 0.0
    %2310 = vmatprep.subr.mxu0 0.0
    %2311 = vmatpush1.msra.mxu0 0.0
    %2312 = vmatprep.subr.mxu0 0.0
    %2313 = vmatpush1.msra.mxu0 0.0
    %2314 = vmatprep.subr.mxu0 0.0
    %2315 = vmatpush1.msra.mxu0 0.0
    %2316 = vmatprep.subr.mxu0 0.0
    %2317 = vmatpush1.msra.mxu0 0.0
    %2318 = vmatprep.subr.mxu0 0.0
    %2319 = vmatpush1.msra.mxu0 0.0
    %2320 = vmatprep.subr.mxu0 0.0
    %2321 = vmatpush1.msra.mxu0 0.0
    %2322 = vmatprep.subr.mxu0 0.0
    %2323 = vmatpush1.msra.mxu0 0.0
    %2324 = vmatprep.subr.mxu0 0.0
    %2325 = vmatpush1.msra.mxu0 0.0
    %2326 = vmatprep.subr.mxu0 0.0
    %2327 = vmatpush1.msra.mxu0 0.0
    %2328 = vmatprep.subr.mxu0 0.0
    %2329 = vmatpush1.msra.mxu0 0.0
    %2330 = vmatprep.subr.mxu0 0.0
    %2331 = vmatpush1.msra.mxu0 0.0
    %2332 = vmatprep.subr.mxu0 0.0
    %2333 = vmatpush1.msra.mxu0 0.0
    %2334 = vmatprep.subr.mxu0 0.0
    %2335 = vmatpush1.msra.mxu0 0.0
    %2336 = vmatprep.subr.mxu0 0.0
    %2337 = vmatpush1.msra.mxu0 0.0
    %2338 = vmatprep.subr.mxu0 0.0
    %2339 = vmatpush1.msra.mxu0 0.0
    %2340 = vmatprep.subr.mxu0 0.0
    %2341 = vmatpush1.msra.mxu0 0.0
    %2342 = vmatprep.subr.mxu0 0.0
    %2343 = vmatpush1.msra.mxu0 0.0
    %2344 = vmatprep.subr.mxu0 0.0
    %2345 = vmatpush1.msra.mxu0 0.0
    %2346 = vmatprep.subr.mxu0 0.0
    %2347 = vmatpush1.msra.mxu0 0.0
    %2348 = vmatprep.subr.mxu0 0.0
    %2349 = vmatpush1.msra.mxu0 0.0
    %2350 = vmatprep.subr.mxu0 0.0
    %2351 = vmatpush1.msra.mxu0 0.0
    %2352 = vmatprep.subr.mxu0 0.0
    %2353 = vmatpush1.msra.mxu0 0.0
    %2354 = vmatprep.subr.mxu0 0.0
    %2355 = vmatpush1.msra.mxu0 0.0
    %2356 = vmatprep.subr.mxu0 0.0
    %2357 = vmatpush1.msra.mxu0 0.0
    %2358 = vmatprep.mubr.f32.mxu0 0.0
    %2359 = vmatmul.mubr.f32.gmra.mrb[0].mxu0 %v2292
    %v2360 = vpop.f32.mrb[0].mxu0
    %v2361 = vadd.f32 0.0, %v2360
    %v2362 = vpop.f32.mrb[0].mxu0
    %2363 = vdwg.mxu0
    %v2365 = vsel %vm986, %v1150, 0
    %2367 = vmatprep.subr.mxu0 0.0
    %2368 = vmatpush1.msra.mxu0 %v1636
    %2369 = vmatprep.subr.mxu0 0.0
    %2370 = vmatpush1.msra.mxu0 0.0
    %2371 = vmatprep.subr.mxu0 0.0
    %2372 = vmatpush1.msra.mxu0 0.0
    %2373 = vmatprep.subr.mxu0 0.0
    %2374 = vmatpush1.msra.mxu0 0.0
    %2375 = vmatprep.subr.mxu0 0.0
    %2376 = vmatpush1.msra.mxu0 0.0
    %2377 = vmatprep.subr.mxu0 0.0
    %2378 = vmatpush1.msra.mxu0 0.0
    %2379 = vmatprep.subr.mxu0 0.0
    %2380 = vmatpush1.msra.mxu0 0.0
    %2381 = vmatprep.subr.mxu0 0.0
    %2382 = vmatpush1.msra.mxu0 0.0
    %2383 = vmatprep.subr.mxu0 0.0
    %2384 = vmatpush1.msra.mxu0 0.0
    %2385 = vmatprep.subr.mxu0 0.0
    %2386 = vmatpush1.msra.mxu0 0.0
    %2387 = vmatprep.subr.mxu0 0.0
    %2388 = vmatpush1.msra.mxu0 0.0
    %2389 = vmatprep.subr.mxu0 0.0
    %2390 = vmatpush1.msra.mxu0 0.0
    %2391 = vmatprep.subr.mxu0 0.0
    %2392 = vmatpush1.msra.mxu0 0.0
    %2393 = vmatprep.subr.mxu0 0.0
    %2394 = vmatpush1.msra.mxu0 0.0
    %2395 = vmatprep.subr.mxu0 0.0
    %2396 = vmatpush1.msra.mxu0 0.0
    %2397 = vmatprep.subr.mxu0 0.0
    %2398 = vmatpush1.msra.mxu0 0.0
    %2399 = vmatprep.subr.mxu0 0.0
    %2400 = vmatpush1.msra.mxu0 0.0
    %2401 = vmatprep.subr.mxu0 0.0
    %2402 = vmatpush1.msra.mxu0 0.0
    %2403 = vmatprep.subr.mxu0 0.0
    %2404 = vmatpush1.msra.mxu0 0.0
    %2405 = vmatprep.subr.mxu0 0.0
    %2406 = vmatpush1.msra.mxu0 0.0
    %2407 = vmatprep.subr.mxu0 0.0
    %2408 = vmatpush1.msra.mxu0 0.0
    %2409 = vmatprep.subr.mxu0 0.0
    %2410 = vmatpush1.msra.mxu0 0.0
    %2411 = vmatprep.subr.mxu0 0.0
    %2412 = vmatpush1.msra.mxu0 0.0
    %2413 = vmatprep.subr.mxu0 0.0
    %2414 = vmatpush1.msra.mxu0 0.0
    %2415 = vmatprep.subr.mxu0 0.0
    %2416 = vmatpush1.msra.mxu0 0.0
    %2417 = vmatprep.subr.mxu0 0.0
    %2418 = vmatpush1.msra.mxu0 0.0
    %2419 = vmatprep.subr.mxu0 0.0
    %2420 = vmatpush1.msra.mxu0 0.0
    %2421 = vmatprep.subr.mxu0 0.0
    %2422 = vmatpush1.msra.mxu0 0.0
    %2423 = vmatprep.subr.mxu0 0.0
    %2424 = vmatpush1.msra.mxu0 0.0
    %2425 = vmatprep.subr.mxu0 0.0
    %2426 = vmatpush1.msra.mxu0 0.0
    %2427 = vmatprep.subr.mxu0 0.0
    %2428 = vmatpush1.msra.mxu0 0.0
    %2429 = vmatprep.subr.mxu0 0.0
    %2430 = vmatpush1.msra.mxu0 0.0
    %2431 = vmatprep.mubr.f32.mxu0 0.0
    %2432 = vmatmul.mubr.f32.gmra.mrb[0].mxu0 %v2365
    %v2433 = vpop.f32.mrb[0].mxu0
    %v2434 = vadd.f32 0.0, %v2433
    %v2435 = vpop.f32.mrb[0].mxu0
    %2436 = vdwg.mxu0
    %v2438 = vsel %vm986, %v1152, 0
    %2440 = vmatprep.subr.mxu0 0.0
    %2441 = vmatpush1.msra.mxu0 %v1637
    %2442 = vmatprep.subr.mxu0 0.0
    %2443 = vmatpush1.msra.mxu0 0.0
    %2444 = vmatprep.subr.mxu0 0.0
    %2445 = vmatpush1.msra.mxu0 0.0
    %2446 = vmatprep.subr.mxu0 0.0
    %2447 = vmatpush1.msra.mxu0 0.0
    %2448 = vmatprep.subr.mxu0 0.0
    %2449 = vmatpush1.msra.mxu0 0.0
    %2450 = vmatprep.subr.mxu0 0.0
    %2451 = vmatpush1.msra.mxu0 0.0
    %2452 = vmatprep.subr.mxu0 0.0
    %2453 = vmatpush1.msra.mxu0 0.0
    %2454 = vmatprep.subr.mxu0 0.0
    %2455 = vmatpush1.msra.mxu0 0.0
    %2456 = vmatprep.subr.mxu0 0.0
    %2457 = vmatpush1.msra.mxu0 0.0
    %2458 = vmatprep.subr.mxu0 0.0
    %2459 = vmatpush1.msra.mxu0 0.0
    %2460 = vmatprep.subr.mxu0 0.0
    %2461 = vmatpush1.msra.mxu0 0.0
    %2462 = vmatprep.subr.mxu0 0.0
    %2463 = vmatpush1.msra.mxu0 0.0
    %2464 = vmatprep.subr.mxu0 0.0
    %2465 = vmatpush1.msra.mxu0 0.0
    %2466 = vmatprep.subr.mxu0 0.0
    %2467 = vmatpush1.msra.mxu0 0.0
    %2468 = vmatprep.subr.mxu0 0.0
    %2469 = vmatpush1.msra.mxu0 0.0
    %2470 = vmatprep.subr.mxu0 0.0
    %2471 = vmatpush1.msra.mxu0 0.0
    %2472 = vmatprep.subr.mxu0 0.0
    %2473 = vmatpush1.msra.mxu0 0.0
    %2474 = vmatprep.subr.mxu0 0.0
    %2475 = vmatpush1.msra.mxu0 0.0
    %2476 = vmatprep.subr.mxu0 0.0
    %2477 = vmatpush1.msra.mxu0 0.0
    %2478 = vmatprep.subr.mxu0 0.0
    %2479 = vmatpush1.msra.mxu0 0.0
    %2480 = vmatprep.subr.mxu0 0.0
    %2481 = vmatpush1.msra.mxu0 0.0
    %2482 = vmatprep.subr.mxu0 0.0
    %2483 = vmatpush1.msra.mxu0 0.0
    %2484 = vmatprep.subr.mxu0 0.0
    %2485 = vmatpush1.msra.mxu0 0.0
    %2486 = vmatprep.subr.mxu0 0.0
    %2487 = vmatpush1.msra.mxu0 0.0
    %2488 = vmatprep.subr.mxu0 0.0
    %2489 = vmatpush1.msra.mxu0 0.0
    %2490 = vmatprep.subr.mxu0 0.0
    %2491 = vmatpush1.msra.mxu0 0.0
    %2492 = vmatprep.subr.mxu0 0.0
    %2493 = vmatpush1.msra.mxu0 0.0
    %2494 = vmatprep.subr.mxu0 0.0
    %2495 = vmatpush1.msra.mxu0 0.0
    %2496 = vmatprep.subr.mxu0 0.0
    %2497 = vmatpush1.msra.mxu0 0.0
    %2498 = vmatprep.subr.mxu0 0.0
    %2499 = vmatpush1.msra.mxu0 0.0
    %2500 = vmatprep.subr.mxu0 0.0
    %2501 = vmatpush1.msra.mxu0 0.0
    %2502 = vmatprep.subr.mxu0 0.0
    %2503 = vmatpush1.msra.mxu0 0.0
    %2504 = vmatprep.mubr.f32.mxu0 0.0
    %2505 = vmatmul.mubr.f32.gmra.mrb[0].mxu0 %v2438
    %v2506 = vpop.f32.mrb[0].mxu0
    %v2507 = vadd.f32 0.0, %v2506
    %v2508 = vpop.f32.mrb[0].mxu0
    %2509 = vdwg.mxu0
    %v2511 = vsel %vm986, %v1154, 0
    %2513 = vmatprep.subr.mxu0 0.0
    %2514 = vmatpush1.msra.mxu0 %v1638
    %2515 = vmatprep.subr.mxu0 0.0
    %2516 = vmatpush1.msra.mxu0 0.0
    %2517 = vmatprep.subr.mxu0 0.0
    %2518 = vmatpush1.msra.mxu0 0.0
    %2519 = vmatprep.subr.mxu0 0.0
    %2520 = vmatpush1.msra.mxu0 0.0
    %2521 = vmatprep.subr.mxu0 0.0
    %2522 = vmatpush1.msra.mxu0 0.0
    %2523 = vmatprep.subr.mxu0 0.0
    %2524 = vmatpush1.msra.mxu0 0.0
    %2525 = vmatprep.subr.mxu0 0.0
    %2526 = vmatpush1.msra.mxu0 0.0
    %2527 = vmatprep.subr.mxu0 0.0
    %2528 = vmatpush1.msra.mxu0 0.0
    %2529 = vmatprep.subr.mxu0 0.0
    %2530 = vmatpush1.msra.mxu0 0.0
    %2531 = vmatprep.subr.mxu0 0.0
    %2532 = vmatpush1.msra.mxu0 0.0
    %2533 = vmatprep.subr.mxu0 0.0
    %2534 = vmatpush1.msra.mxu0 0.0
    %2535 = vmatprep.subr.mxu0 0.0
    %2536 = vmatpush1.msra.mxu0 0.0
    %2537 = vmatprep.subr.mxu0 0.0
    %2538 = vmatpush1.msra.mxu0 0.0
    %2539 = vmatprep.subr.mxu0 0.0
    %2540 = vmatpush1.msra.mxu0 0.0
    %2541 = vmatprep.subr.mxu0 0.0
    %2542 = vmatpush1.msra.mxu0 0.0
    %2543 = vmatprep.subr.mxu0 0.0
    %2544 = vmatpush1.msra.mxu0 0.0
    %2545 = vmatprep.subr.mxu0 0.0
    %2546 = vmatpush1.msra.mxu0 0.0
    %2547 = vmatprep.subr.mxu0 0.0
    %2548 = vmatpush1.msra.mxu0 0.0
    %2549 = vmatprep.subr.mxu0 0.0
    %2550 = vmatpush1.msra.mxu0 0.0
    %2551 = vmatprep.subr.mxu0 0.0
    %2552 = vmatpush1.msra.mxu0 0.0
    %2553 = vmatprep.subr.mxu0 0.0
    %2554 = vmatpush1.msra.mxu0 0.0
    %2555 = vmatprep.subr.mxu0 0.0
    %2556 = vmatpush1.msra.mxu0 0.0
    %2557 = vmatprep.subr.mxu0 0.0
    %2558 = vmatpush1.msra.mxu0 0.0
    %2559 = vmatprep.subr.mxu0 0.0
    %2560 = vmatpush1.msra.mxu0 0.0
    %2561 = vmatprep.subr.mxu0 0.0
    %2562 = vmatpush1.msra.mxu0 0.0
    %2563 = vmatprep.subr.mxu0 0.0
    %2564 = vmatpush1.msra.mxu0 0.0
    %2565 = vmatprep.subr.mxu0 0.0
    %2566 = vmatpush1.msra.mxu0 0.0
    %2567 = vmatprep.subr.mxu0 0.0
    %2568 = vmatpush1.msra.mxu0 0.0
    %2569 = vmatprep.subr.mxu0 0.0
    %2570 = vmatpush1.msra.mxu0 0.0
    %2571 = vmatprep.subr.mxu0 0.0
    %2572 = vmatpush1.msra.mxu0 0.0
    %2573 = vmatprep.subr.mxu0 0.0
    %2574 = vmatpush1.msra.mxu0 0.0
    %2575 = vmatprep.subr.mxu0 0.0
    %2576 = vmatpush1.msra.mxu0 0.0
    %2577 = vmatprep.mubr.f32.mxu0 0.0
    %2578 = vmatmul.mubr.f32.gmra.mrb[0].mxu0 %v2511
    %v2579 = vpop.f32.mrb[0].mxu0
    %v2580 = vadd.f32 0.0, %v2579
    %v2581 = vpop.f32.mrb[0].mxu0
    %2582 = vdwg.mxu0
    %v2584 = vsel %vm986, %v1156, 0
    %2586 = vmatprep.subr.mxu0 0.0
    %2587 = vmatpush1.msra.mxu0 %v1703
    %2588 = vmatprep.subr.mxu0 0.0
    %2589 = vmatpush1.msra.mxu0 0.0
    %2590 = vmatprep.subr.mxu0 0.0
    %2591 = vmatpush1.msra.mxu0 0.0
    %2592 = vmatprep.subr.mxu0 0.0
    %2593 = vmatpush1.msra.mxu0 0.0
    %2594 = vmatprep.subr.mxu0 0.0
    %2595 = vmatpush1.msra.mxu0 0.0
    %2596 = vmatprep.subr.mxu0 0.0
    %2597 = vmatpush1.msra.mxu0 0.0
    %2598 = vmatprep.subr.mxu0 0.0
    %2599 = vmatpush1.msra.mxu0 0.0
    %2600 = vmatprep.subr.mxu0 0.0
    %2601 = vmatpush1.msra.mxu0 0.0
    %2602 = vmatprep.subr.mxu0 0.0
    %2603 = vmatpush1.msra.mxu0 0.0
    %2604 = vmatprep.subr.mxu0 0.0
    %2605 = vmatpush1.msra.mxu0 0.0
    %2606 = vmatprep.subr.mxu0 0.0
    %2607 = vmatpush1.msra.mxu0 0.0
    %2608 = vmatprep.subr.mxu0 0.0
    %2609 = vmatpush1.msra.mxu0 0.0
    %2610 = vmatprep.subr.mxu0 0.0
    %2611 = vmatpush1.msra.mxu0 0.0
    %2612 = vmatprep.subr.mxu0 0.0
    %2613 = vmatpush1.msra.mxu0 0.0
    %2614 = vmatprep.subr.mxu0 0.0
    %2615 = vmatpush1.msra.mxu0 0.0
    %2616 = vmatprep.subr.mxu0 0.0
    %2617 = vmatpush1.msra.mxu0 0.0
    %2618 = vmatprep.subr.mxu0 0.0
    %2619 = vmatpush1.msra.mxu0 0.0
    %2620 = vmatprep.subr.mxu0 0.0
    %2621 = vmatpush1.msra.mxu0 0.0
    %2622 = vmatprep.subr.mxu0 0.0
    %2623 = vmatpush1.msra.mxu0 0.0
    %2624 = vmatprep.subr.mxu0 0.0
    %2625 = vmatpush1.msra.mxu0 0.0
    %2626 = vmatprep.subr.mxu0 0.0
    %2627 = vmatpush1.msra.mxu0 0.0
    %2628 = vmatprep.subr.mxu0 0.0
    %2629 = vmatpush1.msra.mxu0 0.0
    %2630 = vmatprep.subr.mxu0 0.0
    %2631 = vmatpush1.msra.mxu0 0.0
    %2632 = vmatprep.subr.mxu0 0.0
    %2633 = vmatpush1.msra.mxu0 0.0
    %2634 = vmatprep.subr.mxu0 0.0
    %2635 = vmatpush1.msra.mxu0 0.0
    %2636 = vmatprep.subr.mxu0 0.0
    %2637 = vmatpush1.msra.mxu0 0.0
    %2638 = vmatprep.subr.mxu0 0.0
    %2639 = vmatpush1.msra.mxu0 0.0
    %2640 = vmatprep.subr.mxu0 0.0
    %2641 = vmatpush1.msra.mxu0 0.0
    %2642 = vmatprep.subr.mxu0 0.0
    %2643 = vmatpush1.msra.mxu0 0.0
    %2644 = vmatprep.subr.mxu0 0.0
    %2645 = vmatpush1.msra.mxu0 0.0
    %2646 = vmatprep.subr.mxu0 0.0
    %2647 = vmatpush1.msra.mxu0 0.0
    %2648 = vmatprep.subr.mxu0 0.0
    %2649 = vmatpush1.msra.mxu0 0.0
    %2650 = vmatprep.mubr.f32.mxu0 0.0
    %2651 = vmatmul.mubr.f32.gmra.mrb[0].mxu0 %v2584
    %v2652 = vpop.f32.mrb[0].mxu0
    %v2653 = vadd.f32 0.0, %v2652
    %v2654 = vpop.f32.mrb[0].mxu0
    %2655 = vdwg.mxu0
    %v2657 = vsel %vm986, %v1158, 0
    %2659 = vmatprep.subr.mxu0 0.0
    %2660 = vmatpush1.msra.mxu0 %v1704
    %2661 = vmatprep.subr.mxu0 0.0
    %2662 = vmatpush1.msra.mxu0 0.0
    %2663 = vmatprep.subr.mxu0 0.0
    %2664 = vmatpush1.msra.mxu0 0.0
    %2665 = vmatprep.subr.mxu0 0.0
    %2666 = vmatpush1.msra.mxu0 0.0
    %2667 = vmatprep.subr.mxu0 0.0
    %2668 = vmatpush1.msra.mxu0 0.0
    %2669 = vmatprep.subr.mxu0 0.0
    %2670 = vmatpush1.msra.mxu0 0.0
    %2671 = vmatprep.subr.mxu0 0.0
    %2672 = vmatpush1.msra.mxu0 0.0
    %2673 = vmatprep.subr.mxu0 0.0
    %2674 = vmatpush1.msra.mxu0 0.0
    %2675 = vmatprep.subr.mxu0 0.0
    %2676 = vmatpush1.msra.mxu0 0.0
    %2677 = vmatprep.subr.mxu0 0.0
    %2678 = vmatpush1.msra.mxu0 0.0
    %2679 = vmatprep.subr.mxu0 0.0
    %2680 = vmatpush1.msra.mxu0 0.0
    %2681 = vmatprep.subr.mxu0 0.0
    %2682 = vmatpush1.msra.mxu0 0.0
    %2683 = vmatprep.subr.mxu0 0.0
    %2684 = vmatpush1.msra.mxu0 0.0
    %2685 = vmatprep.subr.mxu0 0.0
    %2686 = vmatpush1.msra.mxu0 0.0
    %2687 = vmatprep.subr.mxu0 0.0
    %2688 = vmatpush1.msra.mxu0 0.0
    %2689 = vmatprep.subr.mxu0 0.0
    %2690 = vmatpush1.msra.mxu0 0.0
    %2691 = vmatprep.subr.mxu0 0.0
    %2692 = vmatpush1.msra.mxu0 0.0
    %2693 = vmatprep.subr.mxu0 0.0
    %2694 = vmatpush1.msra.mxu0 0.0
    %2695 = vmatprep.subr.mxu0 0.0
    %2696 = vmatpush1.msra.mxu0 0.0
    %2697 = vmatprep.subr.mxu0 0.0
    %2698 = vmatpush1.msra.mxu0 0.0
    %2699 = vmatprep.subr.mxu0 0.0
    %2700 = vmatpush1.msra.mxu0 0.0
    %2701 = vmatprep.subr.mxu0 0.0
    %2702 = vmatpush1.msra.mxu0 0.0
    %2703 = vmatprep.subr.mxu0 0.0
    %2704 = vmatpush1.msra.mxu0 0.0
    %2705 = vmatprep.subr.mxu0 0.0
    %2706 = vmatpush1.msra.mxu0 0.0
    %2707 = vmatprep.subr.mxu0 0.0
    %2708 = vmatpush1.msra.mxu0 0.0
    %2709 = vmatprep.subr.mxu0 0.0
    %2710 = vmatpush1.msra.mxu0 0.0
    %2711 = vmatprep.subr.mxu0 0.0
    %2712 = vmatpush1.msra.mxu0 0.0
    %2713 = vmatprep.subr.mxu0 0.0
    %2714 = vmatpush1.msra.mxu0 0.0
    %2715 = vmatprep.subr.mxu0 0.0
    %2716 = vmatpush1.msra.mxu0 0.0
    %2717 = vmatprep.subr.mxu0 0.0
    %2718 = vmatpush1.msra.mxu0 0.0
    %2719 = vmatprep.subr.mxu0 0.0
    %2720 = vmatpush1.msra.mxu0 0.0
    %2721 = vmatprep.subr.mxu0 0.0
    %2722 = vmatpush1.msra.mxu0 0.0
    %2723 = vmatprep.mubr.f32.mxu0 0.0
    %2724 = vmatmul.mubr.f32.gmra.mrb[0].mxu0 %v2657
    %v2725 = vpop.f32.mrb[0].mxu0
    %v2726 = vadd.f32 0.0, %v2725
    %v2727 = vpop.f32.mrb[0].mxu0
    %2728 = vdwg.mxu0
    %v2730 = vsel %vm986, %v1160, 0
    %2732 = vmatprep.subr.mxu0 0.0
    %2733 = vmatpush1.msra.mxu0 %v1705
    %2734 = vmatprep.subr.mxu0 0.0
    %2735 = vmatpush1.msra.mxu0 0.0
    %2736 = vmatprep.subr.mxu0 0.0
    %2737 = vmatpush1.msra.mxu0 0.0
    %2738 = vmatprep.subr.mxu0 0.0
    %2739 = vmatpush1.msra.mxu0 0.0
    %2740 = vmatprep.subr.mxu0 0.0
    %2741 = vmatpush1.msra.mxu0 0.0
    %2742 = vmatprep.subr.mxu0 0.0
    %2743 = vmatpush1.msra.mxu0 0.0
    %2744 = vmatprep.subr.mxu0 0.0
    %2745 = vmatpush1.msra.mxu0 0.0
    %2746 = vmatprep.subr.mxu0 0.0
    %2747 = vmatpush1.msra.mxu0 0.0
    %2748 = vmatprep.subr.mxu0 0.0
    %2749 = vmatpush1.msra.mxu0 0.0
    %2750 = vmatprep.subr.mxu0 0.0
    %2751 = vmatpush1.msra.mxu0 0.0
    %2752 = vmatprep.subr.mxu0 0.0
    %2753 = vmatpush1.msra.mxu0 0.0
    %2754 = vmatprep.subr.mxu0 0.0
    %2755 = vmatpush1.msra.mxu0 0.0
    %2756 = vmatprep.subr.mxu0 0.0
    %2757 = vmatpush1.msra.mxu0 0.0
    %2758 = vmatprep.subr.mxu0 0.0
    %2759 = vmatpush1.msra.mxu0 0.0
    %2760 = vmatprep.subr.mxu0 0.0
    %2761 = vmatpush1.msra.mxu0 0.0
    %2762 = vmatprep.subr.mxu0 0.0
    %2763 = vmatpush1.msra.mxu0 0.0
    %2764 = vmatprep.subr.mxu0 0.0
    %2765 = vmatpush1.msra.mxu0 0.0
    %2766 = vmatprep.subr.mxu0 0.0
    %2767 = vmatpush1.msra.mxu0 0.0
    %2768 = vmatprep.subr.mxu0 0.0
    %2769 = vmatpush1.msra.mxu0 0.0
    %2770 = vmatprep.subr.mxu0 0.0
    %2771 = vmatpush1.msra.mxu0 0.0
    %2772 = vmatprep.subr.mxu0 0.0
    %2773 = vmatpush1.msra.mxu0 0.0
    %2774 = vmatprep.subr.mxu0 0.0
    %2775 = vmatpush1.msra.mxu0 0.0
    %2776 = vmatprep.subr.mxu0 0.0
    %2777 = vmatpush1.msra.mxu0 0.0
    %2778 = vmatprep.subr.mxu0 0.0
    %2779 = vmatpush1.msra.mxu0 0.0
    %2780 = vmatprep.subr.mxu0 0.0
    %2781 = vmatpush1.msra.mxu0 0.0
    %2782 = vmatprep.subr.mxu0 0.0
    %2783 = vmatpush1.msra.mxu0 0.0
    %2784 = vmatprep.subr.mxu0 0.0
    %2785 = vmatpush1.msra.mxu0 0.0
    %2786 = vmatprep.subr.mxu0 0.0
    %2787 = vmatpush1.msra.mxu0 0.0
    %2788 = vmatprep.subr.mxu0 0.0
    %2789 = vmatpush1.msra.mxu0 0.0
    %2790 = vmatprep.subr.mxu0 0.0
    %2791 = vmatpush1.msra.mxu0 0.0
    %2792 = vmatprep.subr.mxu0 0.0
    %2793 = vmatpush1.msra.mxu0 0.0
    %2794 = vmatprep.subr.mxu0 0.0
    %2795 = vmatpush1.msra.mxu0 0.0
    %2796 = vmatprep.mubr.f32.mxu0 0.0
    %2797 = vmatmul.mubr.f32.gmra.mrb[0].mxu0 %v2730
    %v2798 = vpop.f32.mrb[0].mxu0
    %v2799 = vadd.f32 0.0, %v2798
    %v2800 = vpop.f32.mrb[0].mxu0
    %2801 = vdwg.mxu0
    %v2803 = vsel %vm986, %v1162, 0
    %2805 = vmatprep.subr.mxu0 0.0
    %2806 = vmatpush1.msra.mxu0 %v1706
    %2807 = vmatprep.subr.mxu0 0.0
    %2808 = vmatpush1.msra.mxu0 0.0
    %2809 = vmatprep.subr.mxu0 0.0
    %2810 = vmatpush1.msra.mxu0 0.0
    %2811 = vmatprep.subr.mxu0 0.0
    %2812 = vmatpush1.msra.mxu0 0.0
    %2813 = vmatprep.subr.mxu0 0.0
    %2814 = vmatpush1.msra.mxu0 0.0
    %2815 = vmatprep.subr.mxu0 0.0
    %2816 = vmatpush1.msra.mxu0 0.0
    %2817 = vmatprep.subr.mxu0 0.0
    %2818 = vmatpush1.msra.mxu0 0.0
    %2819 = vmatprep.subr.mxu0 0.0
    %2820 = vmatpush1.msra.mxu0 0.0
    %2821 = vmatprep.subr.mxu0 0.0
    %2822 = vmatpush1.msra.mxu0 0.0
    %2823 = vmatprep.subr.mxu0 0.0
    %2824 = vmatpush1.msra.mxu0 0.0
    %2825 = vmatprep.subr.mxu0 0.0
    %2826 = vmatpush1.msra.mxu0 0.0
    %2827 = vmatprep.subr.mxu0 0.0
    %2828 = vmatpush1.msra.mxu0 0.0
    %2829 = vmatprep.subr.mxu0 0.0
    %2830 = vmatpush1.msra.mxu0 0.0
    %2831 = vmatprep.subr.mxu0 0.0
    %2832 = vmatpush1.msra.mxu0 0.0
    %2833 = vmatprep.subr.mxu0 0.0
    %2834 = vmatpush1.msra.mxu0 0.0
    %2835 = vmatprep.subr.mxu0 0.0
    %2836 = vmatpush1.msra.mxu0 0.0
    %2837 = vmatprep.subr.mxu0 0.0
    %2838 = vmatpush1.msra.mxu0 0.0
    %2839 = vmatprep.subr.mxu0 0.0
    %2840 = vmatpush1.msra.mxu0 0.0
    %2841 = vmatprep.subr.mxu0 0.0
    %2842 = vmatpush1.msra.mxu0 0.0
    %2843 = vmatprep.subr.mxu0 0.0
    %2844 = vmatpush1.msra.mxu0 0.0
    %2845 = vmatprep.subr.mxu0 0.0
    %2846 = vmatpush1.msra.mxu0 0.0
    %2847 = vmatprep.subr.mxu0 0.0
    %2848 = vmatpush1.msra.mxu0 0.0
    %2849 = vmatprep.subr.mxu0 0.0
    %2850 = vmatpush1.msra.mxu0 0.0
    %2851 = vmatprep.subr.mxu0 0.0
    %2852 = vmatpush1.msra.mxu0 0.0
    %2853 = vmatprep.subr.mxu0 0.0
    %2854 = vmatpush1.msra.mxu0 0.0
    %2855 = vmatprep.subr.mxu0 0.0
    %2856 = vmatpush1.msra.mxu0 0.0
    %2857 = vmatprep.subr.mxu0 0.0
    %2858 = vmatpush1.msra.mxu0 0.0
    %2859 = vmatprep.subr.mxu0 0.0
    %2860 = vmatpush1.msra.mxu0 0.0
    %2861 = vmatprep.subr.mxu0 0.0
    %2862 = vmatpush1.msra.mxu0 0.0
    %2863 = vmatprep.subr.mxu0 0.0
    %2864 = vmatpush1.msra.mxu0 0.0
    %2865 = vmatprep.subr.mxu0 0.0
    %2866 = vmatpush1.msra.mxu0 0.0
    %2867 = vmatprep.subr.mxu0 0.0
    %2868 = vmatpush1.msra.mxu0 0.0
    %2869 = vmatprep.mubr.f32.mxu0 0.0
    %2870 = vmatmul.mubr.f32.gmra.mrb[0].mxu0 %v2803
    %v2871 = vpop.f32.mrb[0].mxu0
    %v2872 = vadd.f32 0.0, %v2871
    %v2873 = vpop.f32.mrb[0].mxu0
    %2874 = vdwg.mxu0
    %v2875 = vcombine.low %v1777, %v1923
    %v2876 = vcombine.high %v1777, %v1923
    %v2878 = vunpack.c.l.s4 1983009808
    %v2879 = vunpack.c.0.s8 %v2878
    %v2880 = vlaneseq
    %v2881 = vshrl.u32 %v2880, 7
    %v2882 = vsub.s32 %v2879, %v2881
    %v2883 = vrot.slane %v2875, %v2882
    %v2885 = vunpack.c.l.s4 1983009808
    %v2886 = vunpack.c.0.s8 %v2885
    %v2887 = vlaneseq
    %v2888 = vshrl.u32 %v2887, 7
    %v2889 = vsub.s32 %v2886, %v2888
    %v2890 = vrot.slane %v2876, %v2889
    %v2891 = vcombine.low %v1850, %v1996
    %v2892 = vcombine.high %v1850, %v1996
    %v2894 = vunpack.c.l.s4 1983009808
    %v2895 = vunpack.c.0.s8 %v2894
    %v2896 = vlaneseq
    %v2897 = vshrl.u32 %v2896, 7
    %v2898 = vsub.s32 %v2895, %v2897
    %v2899 = vrot.slane %v2891, %v2898
    %v2901 = vunpack.c.l.s4 1983009808
    %v2902 = vunpack.c.0.s8 %v2901
    %v2903 = vlaneseq
    %v2904 = vshrl.u32 %v2903, 7
    %v2905 = vsub.s32 %v2902, %v2904
    %v2906 = vrot.slane %v2892, %v2905
    %v2907 = vcombine.low %v2069, %v2215
    %v2908 = vcombine.high %v2069, %v2215
    %v2910 = vunpack.c.l.s4 1983009808
    %v2911 = vunpack.c.0.s8 %v2910
    %v2912 = vlaneseq
    %v2913 = vshrl.u32 %v2912, 7
    %v2914 = vsub.s32 %v2911, %v2913
    %v2915 = vrot.slane %v2907, %v2914
    %v2917 = vunpack.c.l.s4 1983009808
    %v2918 = vunpack.c.0.s8 %v2917
    %v2919 = vlaneseq
    %v2920 = vshrl.u32 %v2919, 7
    %v2921 = vsub.s32 %v2918, %v2920
    %v2922 = vrot.slane %v2908, %v2921
    %v2923 = vcombine.low %v2142, %v2288
    %v2924 = vcombine.high %v2142, %v2288
    %v2926 = vunpack.c.l.s4 1983009808
    %v2927 = vunpack.c.0.s8 %v2926
    %v2928 = vlaneseq
    %v2929 = vshrl.u32 %v2928, 7
    %v2930 = vsub.s32 %v2927, %v2929
    %v2931 = vrot.slane %v2923, %v2930
    %v2933 = vunpack.c.l.s4 1983009808
    %v2934 = vunpack.c.0.s8 %v2933
    %v2935 = vlaneseq
    %v2936 = vshrl.u32 %v2935, 7
    %v2937 = vsub.s32 %v2934, %v2936
    %v2938 = vrot.slane %v2924, %v2937
    %v2939 = vcombine.low %v2883, %v2899
    %v2940 = vcombine.high %v2883, %v2899
    %v2942 = vunpack.c.l.s4 1934713408
    %v2943 = vunpack.c.0.s8 %v2942
    %v2944 = vlaneseq
    %v2945 = vshrl.u32 %v2944, 7
    %v2946 = vsub.s32 %v2943, %v2945
    %v2947 = vrot.slane %v2939, %v2946
    %v2949 = vunpack.c.l.s4 1934713408
    %v2950 = vunpack.c.0.s8 %v2949
    %v2951 = vlaneseq
    %v2952 = vshrl.u32 %v2951, 7
    %v2953 = vsub.s32 %v2950, %v2952
    %v2954 = vrot.slane %v2940, %v2953
    %v2955 = vcombine.low %v2890, %v2906
    %v2956 = vcombine.high %v2890, %v2906
    %v2958 = vunpack.c.l.s4 1934713408
    %v2959 = vunpack.c.0.s8 %v2958
    %v2960 = vlaneseq
    %v2961 = vshrl.u32 %v2960, 7
    %v2962 = vsub.s32 %v2959, %v2961
    %v2963 = vrot.slane %v2955, %v2962
    %v2965 = vunpack.c.l.s4 1934713408
    %v2966 = vunpack.c.0.s8 %v2965
    %v2967 = vlaneseq
    %v2968 = vshrl.u32 %v2967, 7
    %v2969 = vsub.s32 %v2966, %v2968
    %v2970 = vrot.slane %v2956, %v2969
    %v2971 = vcombine.low %v2915, %v2931
    %v2972 = vcombine.high %v2915, %v2931
    %v2974 = vunpack.c.l.s4 1934713408
    %v2975 = vunpack.c.0.s8 %v2974
    %v2976 = vlaneseq
    %v2977 = vshrl.u32 %v2976, 7
    %v2978 = vsub.s32 %v2975, %v2977
    %v2979 = vrot.slane %v2971, %v2978
    %v2981 = vunpack.c.l.s4 1934713408
    %v2982 = vunpack.c.0.s8 %v2981
    %v2983 = vlaneseq
    %v2984 = vshrl.u32 %v2983, 7
    %v2985 = vsub.s32 %v2982, %v2984
    %v2986 = vrot.slane %v2972, %v2985
    %v2987 = vcombine.low %v2922, %v2938
    %v2988 = vcombine.high %v2922, %v2938
    %v2990 = vunpack.c.l.s4 1934713408
    %v2991 = vunpack.c.0.s8 %v2990
    %v2992 = vlaneseq
    %v2993 = vshrl.u32 %v2992, 7
    %v2994 = vsub.s32 %v2991, %v2993
    %v2995 = vrot.slane %v2987, %v2994
    %v2997 = vunpack.c.l.s4 1934713408
    %v2998 = vunpack.c.0.s8 %v2997
    %v2999 = vlaneseq
    %v3000 = vshrl.u32 %v2999, 7
    %v3001 = vsub.s32 %v2998, %v3000
    %v3002 = vrot.slane %v2988, %v3001
    %v3003 = vcombine.low %v2947, %v2979
    %v3004 = vcombine.high %v2947, %v2979
    %v3005 = vcombine.low %v2954, %v2986
    %v3006 = vcombine.high %v2954, %v2986
    %v3007 = vcombine.low %v2963, %v2995
    %v3008 = vcombine.high %v2963, %v2995
    %v3009 = vcombine.low %v2970, %v3002
    %v3010 = vcombine.high %v2970, %v3002
    %v3011 = vcombine.low %v2361, %v2507
    %v3012 = vcombine.high %v2361, %v2507
    %v3014 = vunpack.c.l.s4 1983009808
    %v3015 = vunpack.c.0.s8 %v3014
    %v3016 = vlaneseq
    %v3017 = vshrl.u32 %v3016, 7
    %v3018 = vsub.s32 %v3015, %v3017
    %v3019 = vrot.slane %v3011, %v3018
    %v3021 = vunpack.c.l.s4 1983009808
    %v3022 = vunpack.c.0.s8 %v3021
    %v3023 = vlaneseq
    %v3024 = vshrl.u32 %v3023, 7
    %v3025 = vsub.s32 %v3022, %v3024
    %v3026 = vrot.slane %v3012, %v3025
    %v3027 = vcombine.low %v2434, %v2580
    %v3028 = vcombine.high %v2434, %v2580
    %v3030 = vunpack.c.l.s4 1983009808
    %v3031 = vunpack.c.0.s8 %v3030
    %v3032 = vlaneseq
    %v3033 = vshrl.u32 %v3032, 7
    %v3034 = vsub.s32 %v3031, %v3033
    %v3035 = vrot.slane %v3027, %v3034
    %v3037 = vunpack.c.l.s4 1983009808
    %v3038 = vunpack.c.0.s8 %v3037
    %v3039 = vlaneseq
    %v3040 = vshrl.u32 %v3039, 7
    %v3041 = vsub.s32 %v3038, %v3040
    %v3042 = vrot.slane %v3028, %v3041
    %v3043 = vcombine.low %v2653, %v2799
    %v3044 = vcombine.high %v2653, %v2799
    %v3046 = vunpack.c.l.s4 1983009808
    %v3047 = vunpack.c.0.s8 %v3046
    %v3048 = vlaneseq
    %v3049 = vshrl.u32 %v3048, 7
    %v3050 = vsub.s32 %v3047, %v3049
    %v3051 = vrot.slane %v3043, %v3050
    %v3053 = vunpack.c.l.s4 1983009808
    %v3054 = vunpack.c.0.s8 %v3053
    %v3055 = vlaneseq
    %v3056 = vshrl.u32 %v3055, 7
    %v3057 = vsub.s32 %v3054, %v3056
    %v3058 = vrot.slane %v3044, %v3057
    %v3059 = vcombine.low %v2726, %v2872
    %v3060 = vcombine.high %v2726, %v2872
    %v3062 = vunpack.c.l.s4 1983009808
    %v3063 = vunpack.c.0.s8 %v3062
    %v3064 = vlaneseq
    %v3065 = vshrl.u32 %v3064, 7
    %v3066 = vsub.s32 %v3063, %v3065
    %v3067 = vrot.slane %v3059, %v3066
    %v3069 = vunpack.c.l.s4 1983009808
    %v3070 = vunpack.c.0.s8 %v3069
    %v3071 = vlaneseq
    %v3072 = vshrl.u32 %v3071, 7
    %v3073 = vsub.s32 %v3070, %v3072
    %v3074 = vrot.slane %v3060, %v3073
    %v3075 = vcombine.low %v3019, %v3035
    %v3076 = vcombine.high %v3019, %v3035
    %v3078 = vunpack.c.l.s4 1934713408
    %v3079 = vunpack.c.0.s8 %v3078
    %v3080 = vlaneseq
    %v3081 = vshrl.u32 %v3080, 7
    %v3082 = vsub.s32 %v3079, %v3081
    %v3083 = vrot.slane %v3075, %v3082
    %v3085 = vunpack.c.l.s4 1934713408
    %v3086 = vunpack.c.0.s8 %v3085
    %v3087 = vlaneseq
    %v3088 = vshrl.u32 %v3087, 7
    %v3089 = vsub.s32 %v3086, %v3088
    %v3090 = vrot.slane %v3076, %v3089
    %v3091 = vcombine.low %v3026, %v3042
    %v3092 = vcombine.high %v3026, %v3042
    %v3094 = vunpack.c.l.s4 1934713408
    %v3095 = vunpack.c.0.s8 %v3094
    %v3096 = vlaneseq
    %v3097 = vshrl.u32 %v3096, 7
    %v3098 = vsub.s32 %v3095, %v3097
    %v3099 = vrot.slane %v3091, %v3098
    %v3101 = vunpack.c.l.s4 1934713408
    %v3102 = vunpack.c.0.s8 %v3101
    %v3103 = vlaneseq
    %v3104 = vshrl.u32 %v3103, 7
    %v3105 = vsub.s32 %v3102, %v3104
    %v3106 = vrot.slane %v3092, %v3105
    %v3107 = vcombine.low %v3051, %v3067
    %v3108 = vcombine.high %v3051, %v3067
    %v3110 = vunpack.c.l.s4 1934713408
    %v3111 = vunpack.c.0.s8 %v3110
    %v3112 = vlaneseq
    %v3113 = vshrl.u32 %v3112, 7
    %v3114 = vsub.s32 %v3111, %v3113
    %v3115 = vrot.slane %v3107, %v3114
    %v3117 = vunpack.c.l.s4 1934713408
    %v3118 = vunpack.c.0.s8 %v3117
    %v3119 = vlaneseq
    %v3120 = vshrl.u32 %v3119, 7
    %v3121 = vsub.s32 %v3118, %v3120
    %v3122 = vrot.slane %v3108, %v3121
    %v3123 = vcombine.low %v3058, %v3074
    %v3124 = vcombine.high %v3058, %v3074
    %v3126 = vunpack.c.l.s4 1934713408
    %v3127 = vunpack.c.0.s8 %v3126
    %v3128 = vlaneseq
    %v3129 = vshrl.u32 %v3128, 7
    %v3130 = vsub.s32 %v3127, %v3129
    %v3131 = vrot.slane %v3123, %v3130
    %v3133 = vunpack.c.l.s4 1934713408
    %v3134 = vunpack.c.0.s8 %v3133
    %v3135 = vlaneseq
    %v3136 = vshrl.u32 %v3135, 7
    %v3137 = vsub.s32 %v3134, %v3136
    %v3138 = vrot.slane %v3124, %v3137
    %v3139 = vcombine.low %v3083, %v3115
    %v3140 = vcombine.high %v3083, %v3115
    %v3141 = vcombine.low %v3090, %v3122
    %v3142 = vcombine.high %v3090, %v3122
    %v3143 = vcombine.low %v3099, %v3131
    %v3144 = vcombine.high %v3099, %v3131
    %v3145 = vcombine.low %v3106, %v3138
    %v3146 = vcombine.high %v3106, %v3138
    %v3163 = vcombine.high %v3003, %v3003
    %v3164 = vcombine.high %v3139, %v3139
    %v3165 = vcombine.high %v3004, %v3004
    %v3166 = vcombine.high %v3140, %v3140
    %v3167 = vcombine.high %v3005, %v3005
    %v3168 = vcombine.high %v3141, %v3141
    %v3169 = vcombine.high %v3006, %v3006
    %v3170 = vcombine.high %v3142, %v3142
    %v3171 = vcombine.high %v3007, %v3007
    %v3172 = vcombine.high %v3143, %v3143
    %v3173 = vcombine.high %v3008, %v3008
    %v3174 = vcombine.high %v3144, %v3144
    %v3175 = vcombine.high %v3009, %v3009
    %v3176 = vcombine.high %v3145, %v3145
    %v3177 = vcombine.high %v3010, %v3010
    %v3178 = vcombine.high %v3146, %v3146
    %vm3195 = vcmask 1043456
    %v3196 = vsel %vm3195, %v3003, 0.0
    %v3197 = vrot.slane %v3196, 4
    %v3198 = vadd.f32 %v3196, %v3197
    %v3199 = vrot.slane %v3198, 2
    %v3200 = vadd.f32 %v3198, %v3199
    %v3201 = vrot.slane %v3200, 1
    %v3202 = vadd.f32 %v3200, %v3201
    %v3203 = vsel %vm3195, %v3163, 0.0
    %v3204 = vrot.slane %v3203, 4
    %v3205 = vadd.f32 %v3203, %v3204
    %v3206 = vrot.slane %v3205, 2
    %v3207 = vadd.f32 %v3205, %v3206
    %v3208 = vrot.slane %v3207, 1
    %v3209 = vadd.f32 %v3207, %v3208
    %v3210 = vsel %vm3195, %v3139, 0.0
    %v3211 = vrot.slane %v3210, 4
    %v3212 = vadd.f32 %v3210, %v3211
    %v3213 = vrot.slane %v3212, 2
    %v3214 = vadd.f32 %v3212, %v3213
    %v3215 = vrot.slane %v3214, 1
    %v3216 = vadd.f32 %v3214, %v3215
    %v3217 = vsel %vm3195, %v3164, 0.0
    %v3218 = vrot.slane %v3217, 4
    %v3219 = vadd.f32 %v3217, %v3218
    %v3220 = vrot.slane %v3219, 2
    %v3221 = vadd.f32 %v3219, %v3220
    %v3222 = vrot.slane %v3221, 1
    %v3223 = vadd.f32 %v3221, %v3222
    %v3224 = vsel %vm3195, %v3004, 0.0
    %v3225 = vrot.slane %v3224, 4
    %v3226 = vadd.f32 %v3224, %v3225
    %v3227 = vrot.slane %v3226, 2
    %v3228 = vadd.f32 %v3226, %v3227
    %v3229 = vrot.slane %v3228, 1
    %v3230 = vadd.f32 %v3228, %v3229
    %v3231 = vsel %vm3195, %v3165, 0.0
    %v3232 = vrot.slane %v3231, 4
    %v3233 = vadd.f32 %v3231, %v3232
    %v3234 = vrot.slane %v3233, 2
    %v3235 = vadd.f32 %v3233, %v3234
    %v3236 = vrot.slane %v3235, 1
    %v3237 = vadd.f32 %v3235, %v3236
    %v3238 = vsel %vm3195, %v3140, 0.0
    %v3239 = vrot.slane %v3238, 4
    %v3240 = vadd.f32 %v3238, %v3239
    %v3241 = vrot.slane %v3240, 2
    %v3242 = vadd.f32 %v3240, %v3241
    %v3243 = vrot.slane %v3242, 1
    %v3244 = vadd.f32 %v3242, %v3243
    %v3245 = vsel %vm3195, %v3166, 0.0
    %v3246 = vrot.slane %v3245, 4
    %v3247 = vadd.f32 %v3245, %v3246
    %v3248 = vrot.slane %v3247, 2
    %v3249 = vadd.f32 %v3247, %v3248
    %v3250 = vrot.slane %v3249, 1
    %v3251 = vadd.f32 %v3249, %v3250
    %v3252 = vsel %vm3195, %v3005, 0.0
    %v3253 = vrot.slane %v3252, 4
    %v3254 = vadd.f32 %v3252, %v3253
    %v3255 = vrot.slane %v3254, 2
    %v3256 = vadd.f32 %v3254, %v3255
    %v3257 = vrot.slane %v3256, 1
    %v3258 = vadd.f32 %v3256, %v3257
    %v3259 = vsel %vm3195, %v3167, 0.0
    %v3260 = vrot.slane %v3259, 4
    %v3261 = vadd.f32 %v3259, %v3260
    %v3262 = vrot.slane %v3261, 2
    %v3263 = vadd.f32 %v3261, %v3262
    %v3264 = vrot.slane %v3263, 1
    %v3265 = vadd.f32 %v3263, %v3264
    %v3266 = vsel %vm3195, %v3141, 0.0
    %v3267 = vrot.slane %v3266, 4
    %v3268 = vadd.f32 %v3266, %v3267
    %v3269 = vrot.slane %v3268, 2
    %v3270 = vadd.f32 %v3268, %v3269
    %v3271 = vrot.slane %v3270, 1
    %v3272 = vadd.f32 %v3270, %v3271
    %v3273 = vsel %vm3195, %v3168, 0.0
    %v3274 = vrot.slane %v3273, 4
    %v3275 = vadd.f32 %v3273, %v3274
    %v3276 = vrot.slane %v3275, 2
    %v3277 = vadd.f32 %v3275, %v3276
    %v3278 = vrot.slane %v3277, 1
    %v3279 = vadd.f32 %v3277, %v3278
    %v3280 = vsel %vm3195, %v3006, 0.0
    %v3281 = vrot.slane %v3280, 4
    %v3282 = vadd.f32 %v3280, %v3281
    %v3283 = vrot.slane %v3282, 2
    %v3284 = vadd.f32 %v3282, %v3283
    %v3285 = vrot.slane %v3284, 1
    %v3286 = vadd.f32 %v3284, %v3285
    %v3287 = vsel %vm3195, %v3169, 0.0
    %v3288 = vrot.slane %v3287, 4
    %v3289 = vadd.f32 %v3287, %v3288
    %v3290 = vrot.slane %v3289, 2
    %v3291 = vadd.f32 %v3289, %v3290
    %v3292 = vrot.slane %v3291, 1
    %v3293 = vadd.f32 %v3291, %v3292
    %v3294 = vsel %vm3195, %v3142, 0.0
    %v3295 = vrot.slane %v3294, 4
    %v3296 = vadd.f32 %v3294, %v3295
    %v3297 = vrot.slane %v3296, 2
    %v3298 = vadd.f32 %v3296, %v3297
    %v3299 = vrot.slane %v3298, 1
    %v3300 = vadd.f32 %v3298, %v3299
    %v3301 = vsel %vm3195, %v3170, 0.0
    %v3302 = vrot.slane %v3301, 4
    %v3303 = vadd.f32 %v3301, %v3302
    %v3304 = vrot.slane %v3303, 2
    %v3305 = vadd.f32 %v3303, %v3304
    %v3306 = vrot.slane %v3305, 1
    %v3307 = vadd.f32 %v3305, %v3306
    %v3308 = vsel %vm3195, %v3007, 0.0
    %v3309 = vrot.slane %v3308, 4
    %v3310 = vadd.f32 %v3308, %v3309
    %v3311 = vrot.slane %v3310, 2
    %v3312 = vadd.f32 %v3310, %v3311
    %v3313 = vrot.slane %v3312, 1
    %v3314 = vadd.f32 %v3312, %v3313
    %v3315 = vsel %vm3195, %v3171, 0.0
    %v3316 = vrot.slane %v3315, 4
    %v3317 = vadd.f32 %v3315, %v3316
    %v3318 = vrot.slane %v3317, 2
    %v3319 = vadd.f32 %v3317, %v3318
    %v3320 = vrot.slane %v3319, 1
    %v3321 = vadd.f32 %v3319, %v3320
    %v3322 = vsel %vm3195, %v3143, 0.0
    %v3323 = vrot.slane %v3322, 4
    %v3324 = vadd.f32 %v3322, %v3323
    %v3325 = vrot.slane %v3324, 2
    %v3326 = vadd.f32 %v3324, %v3325
    %v3327 = vrot.slane %v3326, 1
    %v3328 = vadd.f32 %v3326, %v3327
    %v3329 = vsel %vm3195, %v3172, 0.0
    %v3330 = vrot.slane %v3329, 4
    %v3331 = vadd.f32 %v3329, %v3330
    %v3332 = vrot.slane %v3331, 2
    %v3333 = vadd.f32 %v3331, %v3332
    %v3334 = vrot.slane %v3333, 1
    %v3335 = vadd.f32 %v3333, %v3334
    %v3336 = vsel %vm3195, %v3008, 0.0
    %v3337 = vrot.slane %v3336, 4
    %v3338 = vadd.f32 %v3336, %v3337
    %v3339 = vrot.slane %v3338, 2
    %v3340 = vadd.f32 %v3338, %v3339
    %v3341 = vrot.slane %v3340, 1
    %v3342 = vadd.f32 %v3340, %v3341
    %v3343 = vsel %vm3195, %v3173, 0.0
    %v3344 = vrot.slane %v3343, 4
    %v3345 = vadd.f32 %v3343, %v3344
    %v3346 = vrot.slane %v3345, 2
    %v3347 = vadd.f32 %v3345, %v3346
    %v3348 = vrot.slane %v3347, 1
    %v3349 = vadd.f32 %v3347, %v3348
    %v3350 = vsel %vm3195, %v3144, 0.0
    %v3351 = vrot.slane %v3350, 4
    %v3352 = vadd.f32 %v3350, %v3351
    %v3353 = vrot.slane %v3352, 2
    %v3354 = vadd.f32 %v3352, %v3353
    %v3355 = vrot.slane %v3354, 1
    %v3356 = vadd.f32 %v3354, %v3355
    %v3357 = vsel %vm3195, %v3174, 0.0
    %v3358 = vrot.slane %v3357, 4
    %v3359 = vadd.f32 %v3357, %v3358
    %v3360 = vrot.slane %v3359, 2
    %v3361 = vadd.f32 %v3359, %v3360
    %v3362 = vrot.slane %v3361, 1
    %v3363 = vadd.f32 %v3361, %v3362
    %v3364 = vsel %vm3195, %v3009, 0.0
    %v3365 = vrot.slane %v3364, 4
    %v3366 = vadd.f32 %v3364, %v3365
    %v3367 = vrot.slane %v3366, 2
    %v3368 = vadd.f32 %v3366, %v3367
    %v3369 = vrot.slane %v3368, 1
    %v3370 = vadd.f32 %v3368, %v3369
    %v3371 = vsel %vm3195, %v3175, 0.0
    %v3372 = vrot.slane %v3371, 4
    %v3373 = vadd.f32 %v3371, %v3372
    %v3374 = vrot.slane %v3373, 2
    %v3375 = vadd.f32 %v3373, %v3374
    %v3376 = vrot.slane %v3375, 1
    %v3377 = vadd.f32 %v3375, %v3376
    %v3378 = vsel %vm3195, %v3145, 0.0
    %v3379 = vrot.slane %v3378, 4
    %v3380 = vadd.f32 %v3378, %v3379
    %v3381 = vrot.slane %v3380, 2
    %v3382 = vadd.f32 %v3380, %v3381
    %v3383 = vrot.slane %v3382, 1
    %v3384 = vadd.f32 %v3382, %v3383
    %v3385 = vsel %vm3195, %v3176, 0.0
    %v3386 = vrot.slane %v3385, 4
    %v3387 = vadd.f32 %v3385, %v3386
    %v3388 = vrot.slane %v3387, 2
    %v3389 = vadd.f32 %v3387, %v3388
    %v3390 = vrot.slane %v3389, 1
    %v3391 = vadd.f32 %v3389, %v3390
    %v3392 = vsel %vm3195, %v3010, 0.0
    %v3393 = vrot.slane %v3392, 4
    %v3394 = vadd.f32 %v3392, %v3393
    %v3395 = vrot.slane %v3394, 2
    %v3396 = vadd.f32 %v3394, %v3395
    %v3397 = vrot.slane %v3396, 1
    %v3398 = vadd.f32 %v3396, %v3397
    %v3399 = vsel %vm3195, %v3177, 0.0
    %v3400 = vrot.slane %v3399, 4
    %v3401 = vadd.f32 %v3399, %v3400
    %v3402 = vrot.slane %v3401, 2
    %v3403 = vadd.f32 %v3401, %v3402
    %v3404 = vrot.slane %v3403, 1
    %v3405 = vadd.f32 %v3403, %v3404
    %v3406 = vsel %vm3195, %v3146, 0.0
    %v3407 = vrot.slane %v3406, 4
    %v3408 = vadd.f32 %v3406, %v3407
    %v3409 = vrot.slane %v3408, 2
    %v3410 = vadd.f32 %v3408, %v3409
    %v3411 = vrot.slane %v3410, 1
    %v3412 = vadd.f32 %v3410, %v3411
    %v3413 = vsel %vm3195, %v3178, 0.0
    %v3414 = vrot.slane %v3413, 4
    %v3415 = vadd.f32 %v3413, %v3414
    %v3416 = vrot.slane %v3415, 2
    %v3417 = vadd.f32 %v3415, %v3416
    %v3418 = vrot.slane %v3417, 1
    %v3419 = vadd.f32 %v3417, %v3418
    %v3420 = vrcp.pop 4.0
    %v3421 = vmul.f32 %v3202, %v3420
    %v3422 = vmul.f32 %v3209, %v3420
    %v3423 = vmul.f32 %v3216, %v3420
    %v3424 = vmul.f32 %v3223, %v3420
    %v3425 = vmul.f32 %v3230, %v3420
    %v3426 = vmul.f32 %v3237, %v3420
    %v3427 = vmul.f32 %v3244, %v3420
    %v3428 = vmul.f32 %v3251, %v3420
    %v3429 = vmul.f32 %v3258, %v3420
    %v3430 = vmul.f32 %v3265, %v3420
    %v3431 = vmul.f32 %v3272, %v3420
    %v3432 = vmul.f32 %v3279, %v3420
    %v3433 = vmul.f32 %v3286, %v3420
    %v3434 = vmul.f32 %v3293, %v3420
    %v3435 = vmul.f32 %v3300, %v3420
    %v3436 = vmul.f32 %v3307, %v3420
    %v3437 = vmul.f32 %v3314, %v3420
    %v3438 = vmul.f32 %v3321, %v3420
    %v3439 = vmul.f32 %v3328, %v3420
    %v3440 = vmul.f32 %v3335, %v3420
    %v3441 = vmul.f32 %v3342, %v3420
    %v3442 = vmul.f32 %v3349, %v3420
    %v3443 = vmul.f32 %v3356, %v3420
    %v3444 = vmul.f32 %v3363, %v3420
    %v3445 = vmul.f32 %v3370, %v3420
    %v3446 = vmul.f32 %v3377, %v3420
    %v3447 = vmul.f32 %v3384, %v3420
    %v3448 = vmul.f32 %v3391, %v3420
    %v3449 = vmul.f32 %v3398, %v3420
    %v3450 = vmul.f32 %v3405, %v3420
    %v3451 = vmul.f32 %v3412, %v3420
    %v3452 = vmul.f32 %v3419, %v3420
    %vm3485 = vcmask 1041409
    %v3486 = vsel %vm3485, %v3422, %v3421
    %vm3487 = vcmask 1042434
    %v3488 = vsel %vm3487, %v3423, %v3486
    %vm3489 = vcmask 1043459
    %v3490 = vsel %vm3489, %v3424, %v3488
    %v3491 = vsel %vm3485, %v3426, %v3425
    %v3492 = vsel %vm3487, %v3427, %v3491
    %v3493 = vsel %vm3489, %v3428, %v3492
    %v3494 = vsel %vm3485, %v3430, %v3429
    %v3495 = vsel %vm3487, %v3431, %v3494
    %v3496 = vsel %vm3489, %v3432, %v3495
    %v3497 = vsel %vm3485, %v3434, %v3433
    %v3498 = vsel %vm3487, %v3435, %v3497
    %v3499 = vsel %vm3489, %v3436, %v3498
    %v3500 = vsel %vm3485, %v3438, %v3437
    %v3501 = vsel %vm3487, %v3439, %v3500
    %v3502 = vsel %vm3489, %v3440, %v3501
    %v3503 = vsel %vm3485, %v3442, %v3441
    %v3504 = vsel %vm3487, %v3443, %v3503
    %v3505 = vsel %vm3489, %v3444, %v3504
    %v3506 = vsel %vm3485, %v3446, %v3445
    %v3507 = vsel %vm3487, %v3447, %v3506
    %v3508 = vsel %vm3489, %v3448, %v3507
    %v3509 = vsel %vm3485, %v3450, %v3449
    %v3510 = vsel %vm3487, %v3451, %v3509
    %v3511 = vsel %vm3489, %v3452, %v3510
    %3520 = vst [vmem:[#allocation7] sm:$0xf] %v3490
    %3521 = vst [vmem:[#allocation7 + $0x4] sm:$0xf] %v3493
    %3522 = vst [vmem:[#allocation7 + $0x8] sm:$0xf] %v3496
    %3523 = vst [vmem:[#allocation7 + $0xc] sm:$0xf] %v3499
    %3524 = vst [vmem:[#allocation7 + $0x10] sm:$0xf] %v3502
    %3525 = vst [vmem:[#allocation7 + $0x14] sm:$0xf] %v3505
    %3526 = vst [vmem:[#allocation7 + $0x18] sm:$0xf] %v3508
    %3527 = vst [vmem:[#allocation7 + $0x1c] sm:$0xf] %v3511
    %v3528 = vcombine.low %v1132, %v1136
    %v3529 = vcombine.high %v1132, %v1136
    %v3531 = vunpack.c.l.s4 1983009808
    %v3532 = vunpack.c.0.s8 %v3531
    %v3533 = vlaneseq
    %v3534 = vshrl.u32 %v3533, 7
    %v3535 = vsub.s32 %v3532, %v3534
    %v3536 = vrot.slane %v3528, %v3535
    %v3538 = vunpack.c.l.s4 1983009808
    %v3539 = vunpack.c.0.s8 %v3538
    %v3540 = vlaneseq
    %v3541 = vshrl.u32 %v3540, 7
    %v3542 = vsub.s32 %v3539, %v3541
    %v3543 = vrot.slane %v3529, %v3542
    %v3544 = vcombine.low %v1134, %v1138
    %v3545 = vcombine.high %v1134, %v1138
    %v3547 = vunpack.c.l.s4 1983009808
    %v3548 = vunpack.c.0.s8 %v3547
    %v3549 = vlaneseq
    %v3550 = vshrl.u32 %v3549, 7
    %v3551 = vsub.s32 %v3548, %v3550
    %v3552 = vrot.slane %v3544, %v3551
    %v3554 = vunpack.c.l.s4 1983009808
    %v3555 = vunpack.c.0.s8 %v3554
    %v3556 = vlaneseq
    %v3557 = vshrl.u32 %v3556, 7
    %v3558 = vsub.s32 %v3555, %v3557
    %v3559 = vrot.slane %v3545, %v3558
    %v3560 = vcombine.low %v3536, %v3552
    %v3561 = vcombine.high %v3536, %v3552
    %v3563 = vunpack.c.l.s4 1934713408
    %v3564 = vunpack.c.0.s8 %v3563
    %v3565 = vlaneseq
    %v3566 = vshrl.u32 %v3565, 7
    %v3567 = vsub.s32 %v3564, %v3566
    %v3568 = vrot.slane %v3560, %v3567
    %v3570 = vunpack.c.l.s4 1934713408
    %v3571 = vunpack.c.0.s8 %v3570
    %v3572 = vlaneseq
    %v3573 = vshrl.u32 %v3572, 7
    %v3574 = vsub.s32 %v3571, %v3573
    %v3575 = vrot.slane %v3561, %v3574
    %v3576 = vcombine.low %v3543, %v3559
    %v3577 = vcombine.high %v3543, %v3559
    %v3579 = vunpack.c.l.s4 1934713408
    %v3580 = vunpack.c.0.s8 %v3579
    %v3581 = vlaneseq
    %v3582 = vshrl.u32 %v3581, 7
    %v3583 = vsub.s32 %v3580, %v3582
    %v3584 = vrot.slane %v3576, %v3583
    %v3586 = vunpack.c.l.s4 1934713408
    %v3587 = vunpack.c.0.s8 %v3586
    %v3588 = vlaneseq
    %v3589 = vshrl.u32 %v3588, 7
    %v3590 = vsub.s32 %v3587, %v3589
    %v3591 = vrot.slane %v3577, %v3590
    %v3592 = vcombine.high %v3568, 0.0
    %v3593 = vcombine.high %v3575, 0.0
    %v3594 = vcombine.high %v3584, 0.0
    %v3595 = vcombine.high %v3591, 0.0
    %v3596 = vcombine.low %v1140, %v1144
    %v3597 = vcombine.high %v1140, %v1144
    %v3599 = vunpack.c.l.s4 1983009808
    %v3600 = vunpack.c.0.s8 %v3599
    %v3601 = vlaneseq
    %v3602 = vshrl.u32 %v3601, 7
    %v3603 = vsub.s32 %v3600, %v3602
    %v3604 = vrot.slane %v3596, %v3603
    %v3606 = vunpack.c.l.s4 1983009808
    %v3607 = vunpack.c.0.s8 %v3606
    %v3608 = vlaneseq
    %v3609 = vshrl.u32 %v3608, 7
    %v3610 = vsub.s32 %v3607, %v3609
    %v3611 = vrot.slane %v3597, %v3610
    %v3612 = vcombine.low %v1142, %v1146
    %v3613 = vcombine.high %v1142, %v1146
    %v3615 = vunpack.c.l.s4 1983009808
    %v3616 = vunpack.c.0.s8 %v3615
    %v3617 = vlaneseq
    %v3618 = vshrl.u32 %v3617, 7
    %v3619 = vsub.s32 %v3616, %v3618
    %v3620 = vrot.slane %v3612, %v3619
    %v3622 = vunpack.c.l.s4 1983009808
    %v3623 = vunpack.c.0.s8 %v3622
    %v3624 = vlaneseq
    %v3625 = vshrl.u32 %v3624, 7
    %v3626 = vsub.s32 %v3623, %v3625
    %v3627 = vrot.slane %v3613, %v3626
    %v3628 = vcombine.low %v3604, %v3620
    %v3629 = vcombine.high %v3604, %v3620
    %v3631 = vunpack.c.l.s4 1934713408
    %v3632 = vunpack.c.0.s8 %v3631
    %v3633 = vlaneseq
    %v3634 = vshrl.u32 %v3633, 7
    %v3635 = vsub.s32 %v3632, %v3634
    %v3636 = vrot.slane %v3628, %v3635
    %v3638 = vunpack.c.l.s4 1934713408
    %v3639 = vunpack.c.0.s8 %v3638
    %v3640 = vlaneseq
    %v3641 = vshrl.u32 %v3640, 7
    %v3642 = vsub.s32 %v3639, %v3641
    %v3643 = vrot.slane %v3629, %v3642
    %v3644 = vcombine.low %v3611, %v3627
    %v3645 = vcombine.high %v3611, %v3627
    %v3647 = vunpack.c.l.s4 1934713408
    %v3648 = vunpack.c.0.s8 %v3647
    %v3649 = vlaneseq
    %v3650 = vshrl.u32 %v3649, 7
    %v3651 = vsub.s32 %v3648, %v3650
    %v3652 = vrot.slane %v3644, %v3651
    %v3654 = vunpack.c.l.s4 1934713408
    %v3655 = vunpack.c.0.s8 %v3654
    %v3656 = vlaneseq
    %v3657 = vshrl.u32 %v3656, 7
    %v3658 = vsub.s32 %v3655, %v3657
    %v3659 = vrot.slane %v3645, %v3658
    %v3660 = vcombine.high %v3636, 0.0
    %v3661 = vcombine.high %v3643, 0.0
    %v3662 = vcombine.high %v3652, 0.0
    %v3663 = vcombine.high %v3659, 0.0
    %v3664 = vcombine.low %v1148, %v1152
    %v3665 = vcombine.high %v1148, %v1152
    %v3667 = vunpack.c.l.s4 1983009808
    %v3668 = vunpack.c.0.s8 %v3667
    %v3669 = vlaneseq
    %v3670 = vshrl.u32 %v3669, 7
    %v3671 = vsub.s32 %v3668, %v3670
    %v3672 = vrot.slane %v3664, %v3671
    %v3674 = vunpack.c.l.s4 1983009808
    %v3675 = vunpack.c.0.s8 %v3674
    %v3676 = vlaneseq
    %v3677 = vshrl.u32 %v3676, 7
    %v3678 = vsub.s32 %v3675, %v3677
    %v3679 = vrot.slane %v3665, %v3678
    %v3680 = vcombine.low %v1150, %v1154
    %v3681 = vcombine.high %v1150, %v1154
    %v3683 = vunpack.c.l.s4 1983009808
    %v3684 = vunpack.c.0.s8 %v3683
    %v3685 = vlaneseq
    %v3686 = vshrl.u32 %v3685, 7
    %v3687 = vsub.s32 %v3684, %v3686
    %v3688 = vrot.slane %v3680, %v3687
    %v3690 = vunpack.c.l.s4 1983009808
    %v3691 = vunpack.c.0.s8 %v3690
    %v3692 = vlaneseq
    %v3693 = vshrl.u32 %v3692, 7
    %v3694 = vsub.s32 %v3691, %v3693
    %v3695 = vrot.slane %v3681, %v3694
    %v3696 = vcombine.low %v3672, %v3688
    %v3697 = vcombine.high %v3672, %v3688
    %v3699 = vunpack.c.l.s4 1934713408
    %v3700 = vunpack.c.0.s8 %v3699
    %v3701 = vlaneseq
    %v3702 = vshrl.u32 %v3701, 7
    %v3703 = vsub.s32 %v3700, %v3702
    %v3704 = vrot.slane %v3696, %v3703
    %v3706 = vunpack.c.l.s4 1934713408
    %v3707 = vunpack.c.0.s8 %v3706
    %v3708 = vlaneseq
    %v3709 = vshrl.u32 %v3708, 7
    %v3710 = vsub.s32 %v3707, %v3709
    %v3711 = vrot.slane %v3697, %v3710
    %v3712 = vcombine.low %v3679, %v3695
    %v3713 = vcombine.high %v3679, %v3695
    %v3715 = vunpack.c.l.s4 1934713408
    %v3716 = vunpack.c.0.s8 %v3715
    %v3717 = vlaneseq
    %v3718 = vshrl.u32 %v3717, 7
    %v3719 = vsub.s32 %v3716, %v3718
    %v3720 = vrot.slane %v3712, %v3719
    %v3722 = vunpack.c.l.s4 1934713408
    %v3723 = vunpack.c.0.s8 %v3722
    %v3724 = vlaneseq
    %v3725 = vshrl.u32 %v3724, 7
    %v3726 = vsub.s32 %v3723, %v3725
    %v3727 = vrot.slane %v3713, %v3726
    %v3728 = vcombine.high %v3704, 0.0
    %v3729 = vcombine.high %v3711, 0.0
    %v3730 = vcombine.high %v3720, 0.0
    %v3731 = vcombine.high %v3727, 0.0
    %v3732 = vcombine.low %v1156, %v1160
    %v3733 = vcombine.high %v1156, %v1160
    %v3735 = vunpack.c.l.s4 1983009808
    %v3736 = vunpack.c.0.s8 %v3735
    %v3737 = vlaneseq
    %v3738 = vshrl.u32 %v3737, 7
    %v3739 = vsub.s32 %v3736, %v3738
    %v3740 = vrot.slane %v3732, %v3739
    %v3742 = vunpack.c.l.s4 1983009808
    %v3743 = vunpack.c.0.s8 %v3742
    %v3744 = vlaneseq
    %v3745 = vshrl.u32 %v3744, 7
    %v3746 = vsub.s32 %v3743, %v3745
    %v3747 = vrot.slane %v3733, %v3746
    %v3748 = vcombine.low %v1158, %v1162
    %v3749 = vcombine.high %v1158, %v1162
    %v3751 = vunpack.c.l.s4 1983009808
    %v3752 = vunpack.c.0.s8 %v3751
    %v3753 = vlaneseq
    %v3754 = vshrl.u32 %v3753, 7
    %v3755 = vsub.s32 %v3752, %v3754
    %v3756 = vrot.slane %v3748, %v3755
    %v3758 = vunpack.c.l.s4 1983009808
    %v3759 = vunpack.c.0.s8 %v3758
    %v3760 = vlaneseq
    %v3761 = vshrl.u32 %v3760, 7
    %v3762 = vsub.s32 %v3759, %v3761
    %v3763 = vrot.slane %v3749, %v3762
    %v3764 = vcombine.low %v3740, %v3756
    %v3765 = vcombine.high %v3740, %v3756
    %v3767 = vunpack.c.l.s4 1934713408
    %v3768 = vunpack.c.0.s8 %v3767
    %v3769 = vlaneseq
    %v3770 = vshrl.u32 %v3769, 7
    %v3771 = vsub.s32 %v3768, %v3770
    %v3772 = vrot.slane %v3764, %v3771
    %v3774 = vunpack.c.l.s4 1934713408
    %v3775 = vunpack.c.0.s8 %v3774
    %v3776 = vlaneseq
    %v3777 = vshrl.u32 %v3776, 7
    %v3778 = vsub.s32 %v3775, %v3777
    %v3779 = vrot.slane %v3765, %v3778
    %v3780 = vcombine.low %v3747, %v3763
    %v3781 = vcombine.high %v3747, %v3763
    %v3783 = vunpack.c.l.s4 1934713408
    %v3784 = vunpack.c.0.s8 %v3783
    %v3785 = vlaneseq
    %v3786 = vshrl.u32 %v3785, 7
    %v3787 = vsub.s32 %v3784, %v3786
    %v3788 = vrot.slane %v3780, %v3787
    %v3790 = vunpack.c.l.s4 1934713408
    %v3791 = vunpack.c.0.s8 %v3790
    %v3792 = vlaneseq
    %v3793 = vshrl.u32 %v3792, 7
    %v3794 = vsub.s32 %v3791, %v3793
    %v3795 = vrot.slane %v3781, %v3794
    %v3796 = vcombine.high %v3772, 0.0
    %v3797 = vcombine.high %v3779, 0.0
    %v3798 = vcombine.high %v3788, 0.0
    %v3799 = vcombine.high %v3795, 0.0
    %3804 = vrot.lane.b32.xlu0 %v3592, 8
    %v3805 = vpop.permute.xlu0 %3804
    %3806 = vrot.lane.b32.xlu0 %v3660, 8
    %v3807 = vpop.permute.xlu0 %3806
    %3808 = vrot.lane.b32.xlu0 %v3728, 8
    %v3809 = vpop.permute.xlu0 %3808
    %3810 = vrot.lane.b32.xlu0 %v3796, 8
    %v3811 = vpop.permute.xlu0 %3810
    %3820 = vrot.lane.b32.xlu0 %v3575, 16
    %v3821 = vpop.permute.xlu0 %3820
    %3822 = vrot.lane.b32.xlu0 %v3643, 16
    %v3823 = vpop.permute.xlu0 %3822
    %3824 = vrot.lane.b32.xlu0 %v3711, 16
    %v3825 = vpop.permute.xlu0 %3824
    %3826 = vrot.lane.b32.xlu0 %v3779, 16
    %v3827 = vpop.permute.xlu0 %3826
    %3836 = vrot.lane.b32.xlu0 %v3593, 24
    %v3837 = vpop.permute.xlu0 %3836
    %3838 = vrot.lane.b32.xlu0 %v3661, 24
    %v3839 = vpop.permute.xlu0 %3838
    %3840 = vrot.lane.b32.xlu0 %v3729, 24
    %v3841 = vpop.permute.xlu0 %3840
    %3842 = vrot.lane.b32.xlu0 %v3797, 24
    %v3843 = vpop.permute.xlu0 %3842
    %3852 = vrot.lane.b32.xlu0 %v3584, 32
    %v3853 = vpop.permute.xlu0 %3852
    %3854 = vrot.lane.b32.xlu0 %v3652, 32
    %v3855 = vpop.permute.xlu0 %3854
    %3856 = vrot.lane.b32.xlu0 %v3720, 32
    %v3857 = vpop.permute.xlu0 %3856
    %3858 = vrot.lane.b32.xlu0 %v3788, 32
    %v3859 = vpop.permute.xlu0 %3858
    %3868 = vrot.lane.b32.xlu0 %v3594, 40
    %v3869 = vpop.permute.xlu0 %3868
    %3870 = vrot.lane.b32.xlu0 %v3662, 40
    %v3871 = vpop.permute.xlu0 %3870
    %3872 = vrot.lane.b32.xlu0 %v3730, 40
    %v3873 = vpop.permute.xlu0 %3872
    %3874 = vrot.lane.b32.xlu0 %v3798, 40
    %v3875 = vpop.permute.xlu0 %3874
    %3884 = vrot.lane.b32.xlu0 %v3591, 48
    %v3885 = vpop.permute.xlu0 %3884
    %3886 = vrot.lane.b32.xlu0 %v3659, 48
    %v3887 = vpop.permute.xlu0 %3886
    %3888 = vrot.lane.b32.xlu0 %v3727, 48
    %v3889 = vpop.permute.xlu0 %3888
    %3890 = vrot.lane.b32.xlu0 %v3795, 48
    %v3891 = vpop.permute.xlu0 %3890
    %3900 = vrot.lane.b32.xlu0 %v3595, 56
    %v3901 = vpop.permute.xlu0 %3900
    %3902 = vrot.lane.b32.xlu0 %v3663, 56
    %v3903 = vpop.permute.xlu0 %3902
    %3904 = vrot.lane.b32.xlu0 %v3731, 56
    %v3905 = vpop.permute.xlu0 %3904
    %3906 = vrot.lane.b32.xlu0 %v3799, 56
    %v3907 = vpop.permute.xlu0 %3906
    %v3912 = vsel %vm986, %v3568, %v3805
    %v3913 = vsel %vm986, %v3636, %v3807
    %v3914 = vsel %vm986, %v3704, %v3809
    %v3915 = vsel %vm986, %v3772, %v3811
    %vm3916 = vcmask 130048
    %v3917 = vsel %vm3916, %v3912, %v3821
    %v3918 = vsel %vm3916, %v3913, %v3823
    %v3919 = vsel %vm3916, %v3914, %v3825
    %v3920 = vsel %vm3916, %v3915, %v3827
    %vm3921 = vcmask 195584
    %v3922 = vsel %vm3921, %v3917, %v3837
    %v3923 = vsel %vm3921, %v3918, %v3839
    %v3924 = vsel %vm3921, %v3919, %v3841
    %v3925 = vsel %vm3921, %v3920, %v3843
    %v3926 = vsel %vm71, %v3922, %v3853
    %v3927 = vsel %vm71, %v3923, %v3855
    %v3928 = vsel %vm71, %v3924, %v3857
    %v3929 = vsel %vm71, %v3925, %v3859
    %vm3930 = vcmask 326656
    %v3931 = vsel %vm3930, %v3926, %v3869
    %v3932 = vsel %vm3930, %v3927, %v3871
    %v3933 = vsel %vm3930, %v3928, %v3873
    %v3934 = vsel %vm3930, %v3929, %v3875
    %vm3935 = vcmask 392192
    %v3936 = vsel %vm3935, %v3931, %v3885
    %v3937 = vsel %vm3935, %v3932, %v3887
    %v3938 = vsel %vm3935, %v3933, %v3889
    %v3939 = vsel %vm3935, %v3934, %v3891
    %vm3940 = vcmask 457728
    %v3941 = vsel %vm3940, %v3936, %v3901
    %v3942 = vsel %vm3940, %v3937, %v3903
    %v3943 = vsel %vm3940, %v3938, %v3905
    %v3944 = vsel %vm3940, %v3939, %v3907
    %3945 = vxpose.xlu0.b32.start [1/16] %v3941, 128
    %3946 = vxpose.xlu0.b32.cont [2/16] 0.0, 128
    %3947 = vxpose.xlu0.b32.cont [3/16] 0.0, 128
    %3948 = vxpose.xlu0.b32.cont [4/16] 0.0, 128
    %3949 = vxpose.xlu0.b32.cont [5/16] 0.0, 128
    %3950 = vxpose.xlu0.b32.cont [6/16] 0.0, 128
    %3951 = vxpose.xlu0.b32.cont [7/16] 0.0, 128
    %3952 = vxpose.xlu0.b32.cont [8/16] 0.0, 128
    %3953 = vxpose.xlu0.b32.cont [9/16] 0.0, 128
    %3954 = vxpose.xlu0.b32.cont [10/16] 0.0, 128
    %3955 = vxpose.xlu0.b32.cont [11/16] 0.0, 128
    %3956 = vxpose.xlu0.b32.cont [12/16] 0.0, 128
    %3957 = vxpose.xlu0.b32.cont [13/16] 0.0, 128
    %3958 = vxpose.xlu0.b32.cont [14/16] 0.0, 128
    %3959 = vxpose.xlu0.b32.cont [15/16] 0.0, 128
    %3960 = vxpose.xlu0.b32.end [16/16] 0.0, 128
    %v3961 = vpop.trf.xlu0
    %v3962 = vpop.trf.xlu0
    %v3963 = vpop.trf.xlu0
    %v3964 = vpop.trf.xlu0
    %v3965 = vpop.trf.xlu0
    %v3966 = vpop.trf.xlu0
    %v3967 = vpop.trf.xlu0
    %v3968 = vpop.trf.xlu0
    %v3969 = vpop.trf.xlu0
    %v3970 = vpop.trf.xlu0
    %v3971 = vpop.trf.xlu0
    %v3972 = vpop.trf.xlu0
    %v3973 = vpop.trf.xlu0
    %v3974 = vpop.trf.xlu0
    %v3975 = vpop.trf.xlu0
    %v3976 = vpop.trf.xlu0
    %3977 = vxpose.xlu0.b32.start [1/16] %v3942, 128
    %3978 = vxpose.xlu0.b32.cont [2/16] 0.0, 128
    %3979 = vxpose.xlu0.b32.cont [3/16] 0.0, 128
    %3980 = vxpose.xlu0.b32.cont [4/16] 0.0, 128
    %3981 = vxpose.xlu0.b32.cont [5/16] 0.0, 128
    %3982 = vxpose.xlu0.b32.cont [6/16] 0.0, 128
    %3983 = vxpose.xlu0.b32.cont [7/16] 0.0, 128
    %3984 = vxpose.xlu0.b32.cont [8/16] 0.0, 128
    %3985 = vxpose.xlu0.b32.cont [9/16] 0.0, 128
    %3986 = vxpose.xlu0.b32.cont [10/16] 0.0, 128
    %3987 = vxpose.xlu0.b32.cont [11/16] 0.0, 128
    %3988 = vxpose.xlu0.b32.cont [12/16] 0.0, 128
    %3989 = vxpose.xlu0.b32.cont [13/16] 0.0, 128
    %3990 = vxpose.xlu0.b32.cont [14/16] 0.0, 128
    %3991 = vxpose.xlu0.b32.cont [15/16] 0.0, 128
    %3992 = vxpose.xlu0.b32.end [16/16] 0.0, 128
    %v3993 = vpop.trf.xlu0
    %v3994 = vpop.trf.xlu0
    %v3995 = vpop.trf.xlu0
    %v3996 = vpop.trf.xlu0
    %v3997 = vpop.trf.xlu0
    %v3998 = vpop.trf.xlu0
    %v3999 = vpop.trf.xlu0
    %v4000 = vpop.trf.xlu0
    %v4001 = vpop.trf.xlu0
    %v4002 = vpop.trf.xlu0
    %v4003 = vpop.trf.xlu0
    %v4004 = vpop.trf.xlu0
    %v4005 = vpop.trf.xlu0
    %v4006 = vpop.trf.xlu0
    %v4007 = vpop.trf.xlu0
    %v4008 = vpop.trf.xlu0
    %4009 = vxpose.xlu0.b32.start [1/16] %v3943, 128
    %4010 = vxpose.xlu0.b32.cont [2/16] 0.0, 128
    %4011 = vxpose.xlu0.b32.cont [3/16] 0.0, 128
    %4012 = vxpose.xlu0.b32.cont [4/16] 0.0, 128
    %4013 = vxpose.xlu0.b32.cont [5/16] 0.0, 128
    %4014 = vxpose.xlu0.b32.cont [6/16] 0.0, 128
    %4015 = vxpose.xlu0.b32.cont [7/16] 0.0, 128
    %4016 = vxpose.xlu0.b32.cont [8/16] 0.0, 128
    %4017 = vxpose.xlu0.b32.cont [9/16] 0.0, 128
    %4018 = vxpose.xlu0.b32.cont [10/16] 0.0, 128
    %4019 = vxpose.xlu0.b32.cont [11/16] 0.0, 128
    %4020 = vxpose.xlu0.b32.cont [12/16] 0.0, 128
    %4021 = vxpose.xlu0.b32.cont [13/16] 0.0, 128
    %4022 = vxpose.xlu0.b32.cont [14/16] 0.0, 128
    %4023 = vxpose.xlu0.b32.cont [15/16] 0.0, 128
    %4024 = vxpose.xlu0.b32.end [16/16] 0.0, 128
    %v4025 = vpop.trf.xlu0
    %v4026 = vpop.trf.xlu0
    %v4027 = vpop.trf.xlu0
    %v4028 = vpop.trf.xlu0
    %v4029 = vpop.trf.xlu0
    %v4030 = vpop.trf.xlu0
    %v4031 = vpop.trf.xlu0
    %v4032 = vpop.trf.xlu0
    %v4033 = vpop.trf.xlu0
    %v4034 = vpop.trf.xlu0
    %v4035 = vpop.trf.xlu0
    %v4036 = vpop.trf.xlu0
    %v4037 = vpop.trf.xlu0
    %v4038 = vpop.trf.xlu0
    %v4039 = vpop.trf.xlu0
    %v4040 = vpop.trf.xlu0
    %4041 = vxpose.xlu0.b32.start [1/16] %v3944, 128
    %4042 = vxpose.xlu0.b32.cont [2/16] 0.0, 128
    %4043 = vxpose.xlu0.b32.cont [3/16] 0.0, 128
    %4044 = vxpose.xlu0.b32.cont [4/16] 0.0, 128
    %4045 = vxpose.xlu0.b32.cont [5/16] 0.0, 128
    %4046 = vxpose.xlu0.b32.cont [6/16] 0.0, 128
    %4047 = vxpose.xlu0.b32.cont [7/16] 0.0, 128
    %4048 = vxpose.xlu0.b32.cont [8/16] 0.0, 128
    %4049 = vxpose.xlu0.b32.cont [9/16] 0.0, 128
    %4050 = vxpose.xlu0.b32.cont [10/16] 0.0, 128
    %4051 = vxpose.xlu0.b32.cont [11/16] 0.0, 128
    %4052 = vxpose.xlu0.b32.cont [12/16] 0.0, 128
    %4053 = vxpose.xlu0.b32.cont [13/16] 0.0, 128
    %4054 = vxpose.xlu0.b32.cont [14/16] 0.0, 128
    %4055 = vxpose.xlu0.b32.cont [15/16] 0.0, 128
    %4056 = vxpose.xlu0.b32.end [16/16] 0.0, 128
    %v4057 = vpop.trf.xlu0
    %v4058 = vpop.trf.xlu0
    %v4059 = vpop.trf.xlu0
    %v4060 = vpop.trf.xlu0
    %v4061 = vpop.trf.xlu0
    %v4062 = vpop.trf.xlu0
    %v4063 = vpop.trf.xlu0
    %v4064 = vpop.trf.xlu0
    %v4065 = vpop.trf.xlu0
    %v4066 = vpop.trf.xlu0
    %v4067 = vpop.trf.xlu0
    %v4068 = vpop.trf.xlu0
    %v4069 = vpop.trf.xlu0
    %v4070 = vpop.trf.xlu0
    %v4071 = vpop.trf.xlu0
    %v4072 = vpop.trf.xlu0
    %v4073 = vcombine.low %v3961, %v4025
    %v4074 = vcombine.high %v3961, %v4025
    %v4076 = vunpack.c.l.s4 1983009808
    %v4077 = vunpack.c.0.s8 %v4076
    %v4078 = vlaneseq
    %v4079 = vshrl.u32 %v4078, 7
    %v4080 = vsub.s32 %v4077, %v4079
    %v4081 = vrot.slane %v4073, %v4080
    %v4083 = vunpack.c.l.s4 1983009808
    %v4084 = vunpack.c.0.s8 %v4083
    %v4085 = vlaneseq
    %v4086 = vshrl.u32 %v4085, 7
    %v4087 = vsub.s32 %v4084, %v4086
    %v4088 = vrot.slane %v4074, %v4087
    %v4089 = vcombine.low %v3993, %v4057
    %v4090 = vcombine.high %v3993, %v4057
    %v4092 = vunpack.c.l.s4 1983009808
    %v4093 = vunpack.c.0.s8 %v4092
    %v4094 = vlaneseq
    %v4095 = vshrl.u32 %v4094, 7
    %v4096 = vsub.s32 %v4093, %v4095
    %v4097 = vrot.slane %v4089, %v4096
    %v4099 = vunpack.c.l.s4 1983009808
    %v4100 = vunpack.c.0.s8 %v4099
    %v4101 = vlaneseq
    %v4102 = vshrl.u32 %v4101, 7
    %v4103 = vsub.s32 %v4100, %v4102
    %v4104 = vrot.slane %v4090, %v4103
    %v4105 = vcombine.low %v4081, %v4097
    %v4106 = vcombine.high %v4081, %v4097
    %v4108 = vunpack.c.l.s4 1934713408
    %v4109 = vunpack.c.0.s8 %v4108
    %v4110 = vlaneseq
    %v4111 = vshrl.u32 %v4110, 7
    %v4112 = vsub.s32 %v4109, %v4111
    %v4113 = vrot.slane %v4105, %v4112
    %v4115 = vunpack.c.l.s4 1934713408
    %v4116 = vunpack.c.0.s8 %v4115
    %v4117 = vlaneseq
    %v4118 = vshrl.u32 %v4117, 7
    %v4119 = vsub.s32 %v4116, %v4118
    %v4120 = vrot.slane %v4106, %v4119
    %v4121 = vcombine.low %v4088, %v4104
    %v4122 = vcombine.high %v4088, %v4104
    %v4124 = vunpack.c.l.s4 1934713408
    %v4125 = vunpack.c.0.s8 %v4124
    %v4126 = vlaneseq
    %v4127 = vshrl.u32 %v4126, 7
    %v4128 = vsub.s32 %v4125, %v4127
    %v4129 = vrot.slane %v4121, %v4128
    %v4131 = vunpack.c.l.s4 1934713408
    %v4132 = vunpack.c.0.s8 %v4131
    %v4133 = vlaneseq
    %v4134 = vshrl.u32 %v4133, 7
    %v4135 = vsub.s32 %v4132, %v4134
    %v4136 = vrot.slane %v4122, %v4135
    %v4137 = vcombine.high %v4113, 0.0
    %v4138 = vcombine.high %v4120, 0.0
    %v4139 = vcombine.high %v4129, 0.0
    %v4140 = vcombine.high %v4136, 0.0
    %v4141 = vcombine.low %v3962, %v4026
    %v4142 = vcombine.high %v3962, %v4026
    %v4144 = vunpack.c.l.s4 1983009808
    %v4145 = vunpack.c.0.s8 %v4144
    %v4146 = vlaneseq
    %v4147 = vshrl.u32 %v4146, 7
    %v4148 = vsub.s32 %v4145, %v4147
    %v4149 = vrot.slane %v4141, %v4148
    %v4151 = vunpack.c.l.s4 1983009808
    %v4152 = vunpack.c.0.s8 %v4151
    %v4153 = vlaneseq
    %v4154 = vshrl.u32 %v4153, 7
    %v4155 = vsub.s32 %v4152, %v4154
    %v4156 = vrot.slane %v4142, %v4155
    %v4157 = vcombine.low %v3994, %v4058
    %v4158 = vcombine.high %v3994, %v4058
    %v4160 = vunpack.c.l.s4 1983009808
    %v4161 = vunpack.c.0.s8 %v4160
    %v4162 = vlaneseq
    %v4163 = vshrl.u32 %v4162, 7
    %v4164 = vsub.s32 %v4161, %v4163
    %v4165 = vrot.slane %v4157, %v4164
    %v4167 = vunpack.c.l.s4 1983009808
    %v4168 = vunpack.c.0.s8 %v4167
    %v4169 = vlaneseq
    %v4170 = vshrl.u32 %v4169, 7
    %v4171 = vsub.s32 %v4168, %v4170
    %v4172 = vrot.slane %v4158, %v4171
    %v4173 = vcombine.low %v4149, %v4165
    %v4174 = vcombine.high %v4149, %v4165
    %v4176 = vunpack.c.l.s4 1934713408
    %v4177 = vunpack.c.0.s8 %v4176
    %v4178 = vlaneseq
    %v4179 = vshrl.u32 %v4178, 7
    %v4180 = vsub.s32 %v4177, %v4179
    %v4181 = vrot.slane %v4173, %v4180
    %v4183 = vunpack.c.l.s4 1934713408
    %v4184 = vunpack.c.0.s8 %v4183
    %v4185 = vlaneseq
    %v4186 = vshrl.u32 %v4185, 7
    %v4187 = vsub.s32 %v4184, %v4186
    %v4188 = vrot.slane %v4174, %v4187
    %v4189 = vcombine.low %v4156, %v4172
    %v4190 = vcombine.high %v4156, %v4172
    %v4192 = vunpack.c.l.s4 1934713408
    %v4193 = vunpack.c.0.s8 %v4192
    %v4194 = vlaneseq
    %v4195 = vshrl.u32 %v4194, 7
    %v4196 = vsub.s32 %v4193, %v4195
    %v4197 = vrot.slane %v4189, %v4196
    %v4199 = vunpack.c.l.s4 1934713408
    %v4200 = vunpack.c.0.s8 %v4199
    %v4201 = vlaneseq
    %v4202 = vshrl.u32 %v4201, 7
    %v4203 = vsub.s32 %v4200, %v4202
    %v4204 = vrot.slane %v4190, %v4203
    %v4205 = vcombine.high %v4181, 0.0
    %v4206 = vcombine.high %v4188, 0.0
    %v4207 = vcombine.high %v4197, 0.0
    %v4208 = vcombine.high %v4204, 0.0
    %v4209 = vcombine.low %v3963, %v4027
    %v4210 = vcombine.high %v3963, %v4027
    %v4212 = vunpack.c.l.s4 1983009808
    %v4213 = vunpack.c.0.s8 %v4212
    %v4214 = vlaneseq
    %v4215 = vshrl.u32 %v4214, 7
    %v4216 = vsub.s32 %v4213, %v4215
    %v4217 = vrot.slane %v4209, %v4216
    %v4219 = vunpack.c.l.s4 1983009808
    %v4220 = vunpack.c.0.s8 %v4219
    %v4221 = vlaneseq
    %v4222 = vshrl.u32 %v4221, 7
    %v4223 = vsub.s32 %v4220, %v4222
    %v4224 = vrot.slane %v4210, %v4223
    %v4225 = vcombine.low %v3995, %v4059
    %v4226 = vcombine.high %v3995, %v4059
    %v4228 = vunpack.c.l.s4 1983009808
    %v4229 = vunpack.c.0.s8 %v4228
    %v4230 = vlaneseq
    %v4231 = vshrl.u32 %v4230, 7
    %v4232 = vsub.s32 %v4229, %v4231
    %v4233 = vrot.slane %v4225, %v4232
    %v4235 = vunpack.c.l.s4 1983009808
    %v4236 = vunpack.c.0.s8 %v4235
    %v4237 = vlaneseq
    %v4238 = vshrl.u32 %v4237, 7
    %v4239 = vsub.s32 %v4236, %v4238
    %v4240 = vrot.slane %v4226, %v4239
    %v4241 = vcombine.low %v4217, %v4233
    %v4242 = vcombine.high %v4217, %v4233
    %v4244 = vunpack.c.l.s4 1934713408
    %v4245 = vunpack.c.0.s8 %v4244
    %v4246 = vlaneseq
    %v4247 = vshrl.u32 %v4246, 7
    %v4248 = vsub.s32 %v4245, %v4247
    %v4249 = vrot.slane %v4241, %v4248
    %v4251 = vunpack.c.l.s4 1934713408
    %v4252 = vunpack.c.0.s8 %v4251
    %v4253 = vlaneseq
    %v4254 = vshrl.u32 %v4253, 7
    %v4255 = vsub.s32 %v4252, %v4254
    %v4256 = vrot.slane %v4242, %v4255
    %v4257 = vcombine.low %v4224, %v4240
    %v4258 = vcombine.high %v4224, %v4240
    %v4260 = vunpack.c.l.s4 1934713408
    %v4261 = vunpack.c.0.s8 %v4260
    %v4262 = vlaneseq
    %v4263 = vshrl.u32 %v4262, 7
    %v4264 = vsub.s32 %v4261, %v4263
    %v4265 = vrot.slane %v4257, %v4264
    %v4267 = vunpack.c.l.s4 1934713408
    %v4268 = vunpack.c.0.s8 %v4267
    %v4269 = vlaneseq
    %v4270 = vshrl.u32 %v4269, 7
    %v4271 = vsub.s32 %v4268, %v4270
    %v4272 = vrot.slane %v4258, %v4271
    %v4273 = vcombine.high %v4249, 0.0
    %v4274 = vcombine.high %v4256, 0.0
    %v4275 = vcombine.high %v4265, 0.0
    %v4276 = vcombine.high %v4272, 0.0
    %v4277 = vcombine.low %v3964, %v4028
    %v4278 = vcombine.high %v3964, %v4028
    %v4280 = vunpack.c.l.s4 1983009808
    %v4281 = vunpack.c.0.s8 %v4280
    %v4282 = vlaneseq
    %v4283 = vshrl.u32 %v4282, 7
    %v4284 = vsub.s32 %v4281, %v4283
    %v4285 = vrot.slane %v4277, %v4284
    %v4287 = vunpack.c.l.s4 1983009808
    %v4288 = vunpack.c.0.s8 %v4287
    %v4289 = vlaneseq
    %v4290 = vshrl.u32 %v4289, 7
    %v4291 = vsub.s32 %v4288, %v4290
    %v4292 = vrot.slane %v4278, %v4291
    %v4293 = vcombine.low %v3996, %v4060
    %v4294 = vcombine.high %v3996, %v4060
    %v4296 = vunpack.c.l.s4 1983009808
    %v4297 = vunpack.c.0.s8 %v4296
    %v4298 = vlaneseq
    %v4299 = vshrl.u32 %v4298, 7
    %v4300 = vsub.s32 %v4297, %v4299
    %v4301 = vrot.slane %v4293, %v4300
    %v4303 = vunpack.c.l.s4 1983009808
    %v4304 = vunpack.c.0.s8 %v4303
    %v4305 = vlaneseq
    %v4306 = vshrl.u32 %v4305, 7
    %v4307 = vsub.s32 %v4304, %v4306
    %v4308 = vrot.slane %v4294, %v4307
    %v4309 = vcombine.low %v4285, %v4301
    %v4310 = vcombine.high %v4285, %v4301
    %v4312 = vunpack.c.l.s4 1934713408
    %v4313 = vunpack.c.0.s8 %v4312
    %v4314 = vlaneseq
    %v4315 = vshrl.u32 %v4314, 7
    %v4316 = vsub.s32 %v4313, %v4315
    %v4317 = vrot.slane %v4309, %v4316
    %v4319 = vunpack.c.l.s4 1934713408
    %v4320 = vunpack.c.0.s8 %v4319
    %v4321 = vlaneseq
    %v4322 = vshrl.u32 %v4321, 7
    %v4323 = vsub.s32 %v4320, %v4322
    %v4324 = vrot.slane %v4310, %v4323
    %v4325 = vcombine.low %v4292, %v4308
    %v4326 = vcombine.high %v4292, %v4308
    %v4328 = vunpack.c.l.s4 1934713408
    %v4329 = vunpack.c.0.s8 %v4328
    %v4330 = vlaneseq
    %v4331 = vshrl.u32 %v4330, 7
    %v4332 = vsub.s32 %v4329, %v4331
    %v4333 = vrot.slane %v4325, %v4332
    %v4335 = vunpack.c.l.s4 1934713408
    %v4336 = vunpack.c.0.s8 %v4335
    %v4337 = vlaneseq
    %v4338 = vshrl.u32 %v4337, 7
    %v4339 = vsub.s32 %v4336, %v4338
    %v4340 = vrot.slane %v4326, %v4339
    %v4341 = vcombine.high %v4317, 0.0
    %v4342 = vcombine.high %v4324, 0.0
    %v4343 = vcombine.high %v4333, 0.0
    %v4344 = vcombine.high %v4340, 0.0
    %v4345 = vcombine.low %v3965, %v4029
    %v4346 = vcombine.high %v3965, %v4029
    %v4348 = vunpack.c.l.s4 1983009808
    %v4349 = vunpack.c.0.s8 %v4348
    %v4350 = vlaneseq
    %v4351 = vshrl.u32 %v4350, 7
    %v4352 = vsub.s32 %v4349, %v4351
    %v4353 = vrot.slane %v4345, %v4352
    %v4355 = vunpack.c.l.s4 1983009808
    %v4356 = vunpack.c.0.s8 %v4355
    %v4357 = vlaneseq
    %v4358 = vshrl.u32 %v4357, 7
    %v4359 = vsub.s32 %v4356, %v4358
    %v4360 = vrot.slane %v4346, %v4359
    %v4361 = vcombine.low %v3997, %v4061
    %v4362 = vcombine.high %v3997, %v4061
    %v4364 = vunpack.c.l.s4 1983009808
    %v4365 = vunpack.c.0.s8 %v4364
    %v4366 = vlaneseq
    %v4367 = vshrl.u32 %v4366, 7
    %v4368 = vsub.s32 %v4365, %v4367
    %v4369 = vrot.slane %v4361, %v4368
    %v4371 = vunpack.c.l.s4 1983009808
    %v4372 = vunpack.c.0.s8 %v4371
    %v4373 = vlaneseq
    %v4374 = vshrl.u32 %v4373, 7
    %v4375 = vsub.s32 %v4372, %v4374
    %v4376 = vrot.slane %v4362, %v4375
    %v4377 = vcombine.low %v4353, %v4369
    %v4378 = vcombine.high %v4353, %v4369
    %v4380 = vunpack.c.l.s4 1934713408
    %v4381 = vunpack.c.0.s8 %v4380
    %v4382 = vlaneseq
    %v4383 = vshrl.u32 %v4382, 7
    %v4384 = vsub.s32 %v4381, %v4383
    %v4385 = vrot.slane %v4377, %v4384
    %v4387 = vunpack.c.l.s4 1934713408
    %v4388 = vunpack.c.0.s8 %v4387
    %v4389 = vlaneseq
    %v4390 = vshrl.u32 %v4389, 7
    %v4391 = vsub.s32 %v4388, %v4390
    %v4392 = vrot.slane %v4378, %v4391
    %v4393 = vcombine.low %v4360, %v4376
    %v4394 = vcombine.high %v4360, %v4376
    %v4396 = vunpack.c.l.s4 1934713408
    %v4397 = vunpack.c.0.s8 %v4396
    %v4398 = vlaneseq
    %v4399 = vshrl.u32 %v4398, 7
    %v4400 = vsub.s32 %v4397, %v4399
    %v4401 = vrot.slane %v4393, %v4400
    %v4403 = vunpack.c.l.s4 1934713408
    %v4404 = vunpack.c.0.s8 %v4403
    %v4405 = vlaneseq
    %v4406 = vshrl.u32 %v4405, 7
    %v4407 = vsub.s32 %v4404, %v4406
    %v4408 = vrot.slane %v4394, %v4407
    %v4409 = vcombine.high %v4385, 0.0
    %v4410 = vcombine.high %v4392, 0.0
    %v4411 = vcombine.high %v4401, 0.0
    %v4412 = vcombine.high %v4408, 0.0
    %v4413 = vcombine.low %v3966, %v4030
    %v4414 = vcombine.high %v3966, %v4030
    %v4416 = vunpack.c.l.s4 1983009808
    %v4417 = vunpack.c.0.s8 %v4416
    %v4418 = vlaneseq
    %v4419 = vshrl.u32 %v4418, 7
    %v4420 = vsub.s32 %v4417, %v4419
    %v4421 = vrot.slane %v4413, %v4420
    %v4423 = vunpack.c.l.s4 1983009808
    %v4424 = vunpack.c.0.s8 %v4423
    %v4425 = vlaneseq
    %v4426 = vshrl.u32 %v4425, 7
    %v4427 = vsub.s32 %v4424, %v4426
    %v4428 = vrot.slane %v4414, %v4427
    %v4429 = vcombine.low %v3998, %v4062
    %v4430 = vcombine.high %v3998, %v4062
    %v4432 = vunpack.c.l.s4 1983009808
    %v4433 = vunpack.c.0.s8 %v4432
    %v4434 = vlaneseq
    %v4435 = vshrl.u32 %v4434, 7
    %v4436 = vsub.s32 %v4433, %v4435
    %v4437 = vrot.slane %v4429, %v4436
    %v4439 = vunpack.c.l.s4 1983009808
    %v4440 = vunpack.c.0.s8 %v4439
    %v4441 = vlaneseq
    %v4442 = vshrl.u32 %v4441, 7
    %v4443 = vsub.s32 %v4440, %v4442
    %v4444 = vrot.slane %v4430, %v4443
    %v4445 = vcombine.low %v4421, %v4437
    %v4446 = vcombine.high %v4421, %v4437
    %v4448 = vunpack.c.l.s4 1934713408
    %v4449 = vunpack.c.0.s8 %v4448
    %v4450 = vlaneseq
    %v4451 = vshrl.u32 %v4450, 7
    %v4452 = vsub.s32 %v4449, %v4451
    %v4453 = vrot.slane %v4445, %v4452
    %v4455 = vunpack.c.l.s4 1934713408
    %v4456 = vunpack.c.0.s8 %v4455
    %v4457 = vlaneseq
    %v4458 = vshrl.u32 %v4457, 7
    %v4459 = vsub.s32 %v4456, %v4458
    %v4460 = vrot.slane %v4446, %v4459
    %v4461 = vcombine.low %v4428, %v4444
    %v4462 = vcombine.high %v4428, %v4444
    %v4464 = vunpack.c.l.s4 1934713408
    %v4465 = vunpack.c.0.s8 %v4464
    %v4466 = vlaneseq
    %v4467 = vshrl.u32 %v4466, 7
    %v4468 = vsub.s32 %v4465, %v4467
    %v4469 = vrot.slane %v4461, %v4468
    %v4471 = vunpack.c.l.s4 1934713408
    %v4472 = vunpack.c.0.s8 %v4471
    %v4473 = vlaneseq
    %v4474 = vshrl.u32 %v4473, 7
    %v4475 = vsub.s32 %v4472, %v4474
    %v4476 = vrot.slane %v4462, %v4475
    %v4477 = vcombine.high %v4453, 0.0
    %v4478 = vcombine.high %v4460, 0.0
    %v4479 = vcombine.high %v4469, 0.0
    %v4480 = vcombine.high %v4476, 0.0
    %v4481 = vcombine.low %v3967, %v4031
    %v4482 = vcombine.high %v3967, %v4031
    %v4484 = vunpack.c.l.s4 1983009808
    %v4485 = vunpack.c.0.s8 %v4484
    %v4486 = vlaneseq
    %v4487 = vshrl.u32 %v4486, 7
    %v4488 = vsub.s32 %v4485, %v4487
    %v4489 = vrot.slane %v4481, %v4488
    %v4491 = vunpack.c.l.s4 1983009808
    %v4492 = vunpack.c.0.s8 %v4491
    %v4493 = vlaneseq
    %v4494 = vshrl.u32 %v4493, 7
    %v4495 = vsub.s32 %v4492, %v4494
    %v4496 = vrot.slane %v4482, %v4495
    %v4497 = vcombine.low %v3999, %v4063
    %v4498 = vcombine.high %v3999, %v4063
    %v4500 = vunpack.c.l.s4 1983009808
    %v4501 = vunpack.c.0.s8 %v4500
    %v4502 = vlaneseq
    %v4503 = vshrl.u32 %v4502, 7
    %v4504 = vsub.s32 %v4501, %v4503
    %v4505 = vrot.slane %v4497, %v4504
    %v4507 = vunpack.c.l.s4 1983009808
    %v4508 = vunpack.c.0.s8 %v4507
    %v4509 = vlaneseq
    %v4510 = vshrl.u32 %v4509, 7
    %v4511 = vsub.s32 %v4508, %v4510
    %v4512 = vrot.slane %v4498, %v4511
    %v4513 = vcombine.low %v4489, %v4505
    %v4514 = vcombine.high %v4489, %v4505
    %v4516 = vunpack.c.l.s4 1934713408
    %v4517 = vunpack.c.0.s8 %v4516
    %v4518 = vlaneseq
    %v4519 = vshrl.u32 %v4518, 7
    %v4520 = vsub.s32 %v4517, %v4519
    %v4521 = vrot.slane %v4513, %v4520
    %v4523 = vunpack.c.l.s4 1934713408
    %v4524 = vunpack.c.0.s8 %v4523
    %v4525 = vlaneseq
    %v4526 = vshrl.u32 %v4525, 7
    %v4527 = vsub.s32 %v4524, %v4526
    %v4528 = vrot.slane %v4514, %v4527
    %v4529 = vcombine.low %v4496, %v4512
    %v4530 = vcombine.high %v4496, %v4512
    %v4532 = vunpack.c.l.s4 1934713408
    %v4533 = vunpack.c.0.s8 %v4532
    %v4534 = vlaneseq
    %v4535 = vshrl.u32 %v4534, 7
    %v4536 = vsub.s32 %v4533, %v4535
    %v4537 = vrot.slane %v4529, %v4536
    %v4539 = vunpack.c.l.s4 1934713408
    %v4540 = vunpack.c.0.s8 %v4539
    %v4541 = vlaneseq
    %v4542 = vshrl.u32 %v4541, 7
    %v4543 = vsub.s32 %v4540, %v4542
    %v4544 = vrot.slane %v4530, %v4543
    %v4545 = vcombine.high %v4521, 0.0
    %v4546 = vcombine.high %v4528, 0.0
    %v4547 = vcombine.high %v4537, 0.0
    %v4548 = vcombine.high %v4544, 0.0
    %v4549 = vcombine.low %v3968, %v4032
    %v4550 = vcombine.high %v3968, %v4032
    %v4552 = vunpack.c.l.s4 1983009808
    %v4553 = vunpack.c.0.s8 %v4552
    %v4554 = vlaneseq
    %v4555 = vshrl.u32 %v4554, 7
    %v4556 = vsub.s32 %v4553, %v4555
    %v4557 = vrot.slane %v4549, %v4556
    %v4559 = vunpack.c.l.s4 1983009808
    %v4560 = vunpack.c.0.s8 %v4559
    %v4561 = vlaneseq
    %v4562 = vshrl.u32 %v4561, 7
    %v4563 = vsub.s32 %v4560, %v4562
    %v4564 = vrot.slane %v4550, %v4563
    %v4565 = vcombine.low %v4000, %v4064
    %v4566 = vcombine.high %v4000, %v4064
    %v4568 = vunpack.c.l.s4 1983009808
    %v4569 = vunpack.c.0.s8 %v4568
    %v4570 = vlaneseq
    %v4571 = vshrl.u32 %v4570, 7
    %v4572 = vsub.s32 %v4569, %v4571
    %v4573 = vrot.slane %v4565, %v4572
    %v4575 = vunpack.c.l.s4 1983009808
    %v4576 = vunpack.c.0.s8 %v4575
    %v4577 = vlaneseq
    %v4578 = vshrl.u32 %v4577, 7
    %v4579 = vsub.s32 %v4576, %v4578
    %v4580 = vrot.slane %v4566, %v4579
    %v4581 = vcombine.low %v4557, %v4573
    %v4582 = vcombine.high %v4557, %v4573
    %v4584 = vunpack.c.l.s4 1934713408
    %v4585 = vunpack.c.0.s8 %v4584
    %v4586 = vlaneseq
    %v4587 = vshrl.u32 %v4586, 7
    %v4588 = vsub.s32 %v4585, %v4587
    %v4589 = vrot.slane %v4581, %v4588
    %v4591 = vunpack.c.l.s4 1934713408
    %v4592 = vunpack.c.0.s8 %v4591
    %v4593 = vlaneseq
    %v4594 = vshrl.u32 %v4593, 7
    %v4595 = vsub.s32 %v4592, %v4594
    %v4596 = vrot.slane %v4582, %v4595
    %v4597 = vcombine.low %v4564, %v4580
    %v4598 = vcombine.high %v4564, %v4580
    %v4600 = vunpack.c.l.s4 1934713408
    %v4601 = vunpack.c.0.s8 %v4600
    %v4602 = vlaneseq
    %v4603 = vshrl.u32 %v4602, 7
    %v4604 = vsub.s32 %v4601, %v4603
    %v4605 = vrot.slane %v4597, %v4604
    %v4607 = vunpack.c.l.s4 1934713408
    %v4608 = vunpack.c.0.s8 %v4607
    %v4609 = vlaneseq
    %v4610 = vshrl.u32 %v4609, 7
    %v4611 = vsub.s32 %v4608, %v4610
    %v4612 = vrot.slane %v4598, %v4611
    %v4613 = vcombine.high %v4589, 0.0
    %v4614 = vcombine.high %v4596, 0.0
    %v4615 = vcombine.high %v4605, 0.0
    %v4616 = vcombine.high %v4612, 0.0
    %4618 = vrot.lane.b32.xlu0 %v4137, 4
    %v4619 = vpop.permute.xlu0 %4618
    %4622 = vrot.lane.b32.xlu0 %v4120, 8
    %v4623 = vpop.permute.xlu0 %4622
    %4626 = vrot.lane.b32.xlu0 %v4138, 12
    %v4627 = vpop.permute.xlu0 %4626
    %4630 = vrot.lane.b32.xlu0 %v4129, 16
    %v4631 = vpop.permute.xlu0 %4630
    %4634 = vrot.lane.b32.xlu0 %v4139, 20
    %v4635 = vpop.permute.xlu0 %4634
    %4638 = vrot.lane.b32.xlu0 %v4136, 24
    %v4639 = vpop.permute.xlu0 %4638
    %4642 = vrot.lane.b32.xlu0 %v4140, 28
    %v4643 = vpop.permute.xlu0 %4642
    %4646 = vrot.lane.b32.xlu0 %v4181, 32
    %v4647 = vpop.permute.xlu0 %4646
    %4650 = vrot.lane.b32.xlu0 %v4205, 36
    %v4651 = vpop.permute.xlu0 %4650
    %4654 = vrot.lane.b32.xlu0 %v4188, 40
    %v4655 = vpop.permute.xlu0 %4654
    %4658 = vrot.lane.b32.xlu0 %v4206, 44
    %v4659 = vpop.permute.xlu0 %4658
    %4662 = vrot.lane.b32.xlu0 %v4197, 48
    %v4663 = vpop.permute.xlu0 %4662
    %4666 = vrot.lane.b32.xlu0 %v4207, 52
    %v4667 = vpop.permute.xlu0 %4666
    %4670 = vrot.lane.b32.xlu0 %v4204, 56
    %v4671 = vpop.permute.xlu0 %4670
    %4674 = vrot.lane.b32.xlu0 %v4208, 60
    %v4675 = vpop.permute.xlu0 %4674
    %4678 = vrot.lane.b32.xlu0 %v4249, 64
    %v4679 = vpop.permute.xlu0 %4678
    %4682 = vrot.lane.b32.xlu0 %v4273, 68
    %v4683 = vpop.permute.xlu0 %4682
    %4686 = vrot.lane.b32.xlu0 %v4256, 72
    %v4687 = vpop.permute.xlu0 %4686
    %4690 = vrot.lane.b32.xlu0 %v4274, 76
    %v4691 = vpop.permute.xlu0 %4690
    %4694 = vrot.lane.b32.xlu0 %v4265, 80
    %v4695 = vpop.permute.xlu0 %4694
    %4698 = vrot.lane.b32.xlu0 %v4275, 84
    %v4699 = vpop.permute.xlu0 %4698
    %4702 = vrot.lane.b32.xlu0 %v4272, 88
    %v4703 = vpop.permute.xlu0 %4702
    %4706 = vrot.lane.b32.xlu0 %v4276, 92
    %v4707 = vpop.permute.xlu0 %4706
    %4710 = vrot.lane.b32.xlu0 %v4317, 96
    %v4711 = vpop.permute.xlu0 %4710
    %4714 = vrot.lane.b32.xlu0 %v4341, 100
    %v4715 = vpop.permute.xlu0 %4714
    %4718 = vrot.lane.b32.xlu0 %v4324, 104
    %v4719 = vpop.permute.xlu0 %4718
    %4722 = vrot.lane.b32.xlu0 %v4342, 108
    %v4723 = vpop.permute.xlu0 %4722
    %4726 = vrot.lane.b32.xlu0 %v4333, 112
    %v4727 = vpop.permute.xlu0 %4726
    %4730 = vrot.lane.b32.xlu0 %v4343, 116
    %v4731 = vpop.permute.xlu0 %4730
    %4734 = vrot.lane.b32.xlu0 %v4340, 120
    %v4735 = vpop.permute.xlu0 %4734
    %4738 = vrot.lane.b32.xlu0 %v4344, 124
    %v4739 = vpop.permute.xlu0 %4738
    %4742 = vrot.lane.b32.xlu0 %v4409, 4
    %v4743 = vpop.permute.xlu0 %4742
    %4746 = vrot.lane.b32.xlu0 %v4392, 8
    %v4747 = vpop.permute.xlu0 %4746
    %4750 = vrot.lane.b32.xlu0 %v4410, 12
    %v4751 = vpop.permute.xlu0 %4750
    %4754 = vrot.lane.b32.xlu0 %v4401, 16
    %v4755 = vpop.permute.xlu0 %4754
    %4758 = vrot.lane.b32.xlu0 %v4411, 20
    %v4759 = vpop.permute.xlu0 %4758
    %4762 = vrot.lane.b32.xlu0 %v4408, 24
    %v4763 = vpop.permute.xlu0 %4762
    %4766 = vrot.lane.b32.xlu0 %v4412, 28
    %v4767 = vpop.permute.xlu0 %4766
    %4770 = vrot.lane.b32.xlu0 %v4453, 32
    %v4771 = vpop.permute.xlu0 %4770
    %4774 = vrot.lane.b32.xlu0 %v4477, 36
    %v4775 = vpop.permute.xlu0 %4774
    %4778 = vrot.lane.b32.xlu0 %v4460, 40
    %v4779 = vpop.permute.xlu0 %4778
    %4782 = vrot.lane.b32.xlu0 %v4478, 44
    %v4783 = vpop.permute.xlu0 %4782
    %4786 = vrot.lane.b32.xlu0 %v4469, 48
    %v4787 = vpop.permute.xlu0 %4786
    %4790 = vrot.lane.b32.xlu0 %v4479, 52
    %v4791 = vpop.permute.xlu0 %4790
    %4794 = vrot.lane.b32.xlu0 %v4476, 56
    %v4795 = vpop.permute.xlu0 %4794
    %4798 = vrot.lane.b32.xlu0 %v4480, 60
    %v4799 = vpop.permute.xlu0 %4798
    %4802 = vrot.lane.b32.xlu0 %v4521, 64
    %v4803 = vpop.permute.xlu0 %4802
    %4806 = vrot.lane.b32.xlu0 %v4545, 68
    %v4807 = vpop.permute.xlu0 %4806
    %4810 = vrot.lane.b32.xlu0 %v4528, 72
    %v4811 = vpop.permute.xlu0 %4810
    %4814 = vrot.lane.b32.xlu0 %v4546, 76
    %v4815 = vpop.permute.xlu0 %4814
    %4818 = vrot.lane.b32.xlu0 %v4537, 80
    %v4819 = vpop.permute.xlu0 %4818
    %4822 = vrot.lane.b32.xlu0 %v4547, 84
    %v4823 = vpop.permute.xlu0 %4822
    %4826 = vrot.lane.b32.xlu0 %v4544, 88
    %v4827 = vpop.permute.xlu0 %4826
    %4830 = vrot.lane.b32.xlu0 %v4548, 92
    %v4831 = vpop.permute.xlu0 %4830
    %4834 = vrot.lane.b32.xlu0 %v4589, 96
    %v4835 = vpop.permute.xlu0 %4834
    %4838 = vrot.lane.b32.xlu0 %v4613, 100
    %v4839 = vpop.permute.xlu0 %4838
    %4842 = vrot.lane.b32.xlu0 %v4596, 104
    %v4843 = vpop.permute.xlu0 %4842
    %4846 = vrot.lane.b32.xlu0 %v4614, 108
    %v4847 = vpop.permute.xlu0 %4846
    %4850 = vrot.lane.b32.xlu0 %v4605, 112
    %v4851 = vpop.permute.xlu0 %4850
    %4854 = vrot.lane.b32.xlu0 %v4615, 116
    %v4855 = vpop.permute.xlu0 %4854
    %4858 = vrot.lane.b32.xlu0 %v4612, 120
    %v4859 = vpop.permute.xlu0 %4858
    %4862 = vrot.lane.b32.xlu0 %v4616, 124
    %v4863 = vpop.permute.xlu0 %4862
    %vm4865 = vcmask 31744
    %v4866 = vsel %vm4865, %v4113, %v4619
    %v4867 = vsel %vm986, %v4866, %v4623
    %vm4868 = vcmask 97280
    %v4869 = vsel %vm4868, %v4867, %v4627
    %v4870 = vsel %vm3916, %v4869, %v4631
    %vm4871 = vcmask 162816
    %v4872 = vsel %vm4871, %v4870, %v4635
    %v4873 = vsel %vm3921, %v4872, %v4639
    %vm4874 = vcmask 228352
    %v4875 = vsel %vm4874, %v4873, %v4643
    %v4876 = vsel %vm71, %v4875, %v4647
    %vm4877 = vcmask 293888
    %v4878 = vsel %vm4877, %v4876, %v4651
    %v4879 = vsel %vm3930, %v4878, %v4655
    %vm4880 = vcmask 359424
    %v4881 = vsel %vm4880, %v4879, %v4659
    %v4882 = vsel %vm3935, %v4881, %v4663
    %vm4883 = vcmask 424960
    %v4884 = vsel %vm4883, %v4882, %v4667
    %v4885 = vsel %vm3940, %v4884, %v4671
    %vm4886 = vcmask 490496
    %v4887 = vsel %vm4886, %v4885, %v4675
    %vm4888 = vcmask 523264
    %v4889 = vsel %vm4888, %v4887, %v4679
    %vm4890 = vcmask 556032
    %v4891 = vsel %vm4890, %v4889, %v4683
    %vm4892 = vcmask 588800
    %v4893 = vsel %vm4892, %v4891, %v4687
    %vm4894 = vcmask 621568
    %v4895 = vsel %vm4894, %v4893, %v4691
    %vm4896 = vcmask 654336
    %v4897 = vsel %vm4896, %v4895, %v4695
    %vm4898 = vcmask 687104
    %v4899 = vsel %vm4898, %v4897, %v4699
    %vm4900 = vcmask 719872
    %v4901 = vsel %vm4900, %v4899, %v4703
    %vm4902 = vcmask 752640
    %v4903 = vsel %vm4902, %v4901, %v4707
    %vm4904 = vcmask 785408
    %v4905 = vsel %vm4904, %v4903, %v4711
    %vm4906 = vcmask 818176
    %v4907 = vsel %vm4906, %v4905, %v4715
    %vm4908 = vcmask 850944
    %v4909 = vsel %vm4908, %v4907, %v4719
    %vm4910 = vcmask 883712
    %v4911 = vsel %vm4910, %v4909, %v4723
    %vm4912 = vcmask 916480
    %v4913 = vsel %vm4912, %v4911, %v4727
    %vm4914 = vcmask 949248
    %v4915 = vsel %vm4914, %v4913, %v4731
    %vm4916 = vcmask 982016
    %v4917 = vsel %vm4916, %v4915, %v4735
    %vm4918 = vcmask 1014784
    %v4919 = vsel %vm4918, %v4917, %v4739
    %v4920 = vsel %vm4865, %v4385, %v4743
    %v4921 = vsel %vm986, %v4920, %v4747
    %v4922 = vsel %vm4868, %v4921, %v4751
    %v4923 = vsel %vm3916, %v4922, %v4755
    %v4924 = vsel %vm4871, %v4923, %v4759
    %v4925 = vsel %vm3921, %v4924, %v4763
    %v4926 = vsel %vm4874, %v4925, %v4767
    %v4927 = vsel %vm71, %v4926, %v4771
    %v4928 = vsel %vm4877, %v4927, %v4775
    %v4929 = vsel %vm3930, %v4928, %v4779
    %v4930 = vsel %vm4880, %v4929, %v4783
    %v4931 = vsel %vm3935, %v4930, %v4787
    %v4932 = vsel %vm4883, %v4931, %v4791
    %v4933 = vsel %vm3940, %v4932, %v4795
    %v4934 = vsel %vm4886, %v4933, %v4799
    %v4935 = vsel %vm4888, %v4934, %v4803
    %v4936 = vsel %vm4890, %v4935, %v4807
    %v4937 = vsel %vm4892, %v4936, %v4811
    %v4938 = vsel %vm4894, %v4937, %v4815
    %v4939 = vsel %vm4896, %v4938, %v4819
    %v4940 = vsel %vm4898, %v4939, %v4823
    %v4941 = vsel %vm4900, %v4940, %v4827
    %v4942 = vsel %vm4902, %v4941, %v4831
    %v4943 = vsel %vm4904, %v4942, %v4835
    %v4944 = vsel %vm4906, %v4943, %v4839
    %v4945 = vsel %vm4908, %v4944, %v4843
    %v4946 = vsel %vm4910, %v4945, %v4847
    %v4947 = vsel %vm4912, %v4946, %v4851
    %v4948 = vsel %vm4914, %v4947, %v4855
    %v4949 = vsel %vm4916, %v4948, %v4859
    %v4950 = vsel %vm4918, %v4949, %v4863
    %v4953 = vcombine.low %v4919, %v4950
    %4955 = vst [vmem:[#allocation8] sm:$0xff] %v4953
    // Predicated region
    $region18: #{tpu_custom_call.1} parent=1 // pred_check
      _
    $region19: #{tpu_custom_call.1} parent=1 // pred_check_branch
      %4957 = sbr.rel (0) target = $region21
    $region20: #{tpu_custom_call.1} parent=1 // pred_region
      %s4959 = ssub.s32 512, 512
      %4960 = vsyncadd [#allocation4], %s4959
      %s4961 = sshll.u32 [#allocation7], 4
      %s4962 = int_to_ptr.vmem [resolvable:$true] %s4961
      %4967 = dma.vmem_to_hbm [thread:$0]  %s4962, 512, %s2, [#allocation4], 64, 64, 4
    $region21: #{tpu_custom_call.1} parent=1 // pred_fallthru
      _
    // Predicated region
    $region22: #{tpu_custom_call.1} parent=1 // pred_check
      _
    $region23: #{tpu_custom_call.1} parent=1 // pred_check_branch
      %4969 = sbr.rel (0) target = $region25
    $region24: #{tpu_custom_call.1} parent=1 // pred_region
      %s4971 = ssub.s32 128, 128
      %4972 = vsyncadd [#allocation9], %s4971
      %s4974 = sshll.u32 [#allocation8], 4
      %s4975 = int_to_ptr.vmem [resolvable:$true] %s4974
      %4977 = dma.vmem_to_hbm [thread:$0]  %s4975, 128, %s3, [#allocation9]
    $region25: #{tpu_custom_call.1} parent=1 // pred_fallthru
      _
    // Predicated region
    $region26: #{tpu_custom_call.1} parent=1 // pred_check
      _
    $region27: #{tpu_custom_call.1} parent=1 // pred_check_branch
      %4979 = sbr.rel (0) target = $region29
    $region28: #{tpu_custom_call.1} parent=1 // pred_region
      %4980 = dma.done [#allocation4], 512
    $region29: #{tpu_custom_call.1} parent=1 // pred_fallthru
      _
    // Predicated region
    $region30: #{tpu_custom_call.1} parent=1 // pred_check
      _
    $region31: #{tpu_custom_call.1} parent=1 // pred_check_branch
      %4982 = sbr.rel (0) target = $region33
    $region32: #{tpu_custom_call.1} parent=1 // pred_region
      %4983 = dma.done [#allocation9], 128
    $region33: #{tpu_custom_call.1} parent=1 // pred_fallthru
      _
    %4984 = vsyncpa [#allocation3], 1
    %4985 = vsyncpa [#allocation6], 1
    %4986 = vsyncpa [#allocation4], 1
    %4987 = vsyncpa [#allocation9], 1

</llo_original>
